<compile_context>
chip_gen: v6e
topology: v6e:2x2x1
jax: 0.10.0
libtpu: 0.0.40
codegen_flags: <defaults>
</compile_context>

<pallas_src>
import functools

import jax
import jax.numpy as jnp
from jax import lax
from jax.experimental import pallas as pl
from jax.experimental.pallas import tpu as pltpu


def _dot(a, b):
    return jnp.dot(a, b, preferred_element_type=jnp.float32)


def _dotT(a, b):
    # a^T @ b without materializing the transpose (contract dim 0 with dim 0).
    return lax.dot_general(a, b, (((0,), (0,)), ((), ())),
                           preferred_element_type=jnp.float32)


def _silu(x):
    return x * jax.nn.sigmoid(x)


# Row layout of the packed per-layer parameter slab [n_layers, 8, hidden_nf]:
_W1R, _W1E, _B1, _W2T, _WV1, _BV1, _WV2T, _BV2 = range(8)


def rf_vel_fused_kernel(x_ref, vel_ref, veln_ref, eattr_ref,
                        oh_row_ref, oh_col_ref, rcnt_ref,
                        bo_div_ref, bo_mod_ref,
                        pslab_ref, gfull_ref,
                        out_ref, *, n_layers, l):
    """All RF_vel layers (GCL_rf_vel + Norm('get_norm')) fused in one kernel."""
    x = x_ref[...]            # [N, 3] coordinates (carried across layers)
    vel = vel_ref[...]        # [N, 3]
    veln = veln_ref[...]      # [N, 1] |vel|
    ea = eattr_ref[...]       # [E, 1] edge attributes (edge_attr_nf == 1)
    oh_row = oh_row_ref[...]  # [E, N] one-hot of row indices (host precomputed)
    oh_col = oh_col_ref[...]  # [E, N] one-hot of col indices (host precomputed)
    rcnt = rcnt_ref[...]      # [N, 1] 1 / max(segment_count, 1) (host precomputed)
    bo_div = bo_div_ref[...]  # [B, N]: node n belongs to graph n // l
    bo_mod = bo_mod_ref[...]  # [B, N]: torch .repeat(l,1) tiling (n % B == b)

    inv_l = 1.0 / float(l)

    for li in range(n_layers):                 # static unrolled layer loop
        p = pslab_ref[li]                      # [8, nf] packed layer params
        w1r = p[_W1R:_W1R + 1, :]              # [1, nf]
        w1e = p[_W1E:_W1E + 1, :]
        b1 = p[_B1:_B1 + 1, :]
        w2t = p[_W2T:_W2T + 1, :]
        wv1 = p[_WV1:_WV1 + 1, :]
        bv1 = p[_BV1:_BV1 + 1, :]
        wv2t = p[_WV2T:_WV2T + 1, :]
        bv2 = p[_BV2:_BV2 + 1, 0:1]            # [1, 1] scalar bias
        g_full = gfull_ref[li]                 # [N, 1] g tiled torch-style

        # ------------- GCL_rf_vel edge model (gathers via one-hot matmuls) --
        x_row = _dot(oh_row, x)                # x[row]  [E, 3]
        x_col = _dot(oh_col, x)                # x[col]  [E, 3]
        x_diff = x_row - x_col
        radial = jnp.sqrt(jnp.sum(x_diff * x_diff, axis=1, keepdims=True))  # [E,1]

        # phi: Linear(1+EA, nf) -> SiLU -> Linear(nf, 1, bias=False) -> Tanh
        # K=1 projections as VPU broadcast-multiplies; nf->1 as lane reduction.
        h = _silu(radial * w1r + ea * w1e + b1)                       # [E, nf]
        e_out = jnp.tanh(jnp.sum(h * w2t, axis=1, keepdims=True))     # [E, 1]
        m_ij = x_diff * e_out                                         # [E, 3]

        # ------------- node model: unsorted_segment_mean over `row` ---------
        agg = _dotT(oh_row, m_ij) * rcnt                              # [N, 3]
        x_new = x + agg                                               # coords_weight = 1.0

        # ------------- velocity term: x += vel * coord_mlp_vel(vel_norm) ----
        hv = _silu(veln * wv1 + bv1)                                  # [N, nf]
        sv = jnp.sum(hv * wv2t, axis=1, keepdims=True) + bv2          # [N, 1]
        x_new = x_new + vel * sv

        # ------------- Norm ('get_norm') -------------------------------------
        mu = _dot(bo_div, x_new) * inv_l                              # [B, 3]
        mu_full = _dotT(bo_div, mu)                                   # [N, 3]
        d = x_new - mu_full
        sq = jnp.sum(d * d, axis=1, keepdims=True)                    # [N, 1]
        std = jnp.sqrt(_dot(bo_div, sq))                              # [B, 1]
        std_full = _dotT(bo_mod, std)                                 # [N, 1] (torch tiling)

        s = std_full + 1e-5
        r = pl.reciprocal(s, approx=True)      # EUP slot (off the VPU chain)
        r = r * (2.0 - s * r)                  # one Newton step -> f32 accuracy
        x = g_full * (d * r) + mu_full

    out_ref[...] = x


def rf_vel_forward(x, vel, vel_norm, edge_attr, row, col, params_list, *, B, l):
    """RF_vel.forward(vel_norm, x, edges, vel, edge_attr) with norm_type='get_norm'."""
    N = B * l
    n_layers = len(params_list)
    nf = params_list[0]['w1r'].shape[1]
    assert edge_attr.shape[1] == 1, "kernel is specialized for edge_attr_nf == 1"

    # ---- host-side, layer-invariant graph structure (glue / setup) ---------
    node_iota = jnp.arange(N, dtype=jnp.int32)[None, :]
    oh_row = (row[:, None].astype(jnp.int32) == node_iota).astype(jnp.float32)  # [E, N]
    oh_col = (col[:, None].astype(jnp.int32) == node_iota).astype(jnp.float32)  # [E, N]
    counts = jnp.sum(oh_row, axis=0)[:, None]                                   # [N, 1]
    rcnt = 1.0 / jnp.maximum(counts, 1.0)                                       # [N, 1]

    b_idx = jnp.arange(B, dtype=jnp.int32)[:, None]
    bo_div = (node_iota // l == b_idx).astype(jnp.float32)   # [B, N] block layout
    bo_mod = (node_iota % B == b_idx).astype(jnp.float32)    # [B, N] torch .repeat(l,1)

    # ---- pack the per-layer parameters into two slabs (2 DMAs total) -------
    def pack_layer(p):
        rows = [p['w1r'], p['w1e'], p['b1'], p['w2'].T,
                p['wv1'], p['bv1'], p['wv2'].T,
                jnp.broadcast_to(p['bv2'], (1, nf))]
        return jnp.concatenate(rows, axis=0)                 # [8, nf]

    pslab = jnp.stack([pack_layer(p) for p in params_list])                  # [L, 8, nf]
    gfull = jnp.stack([jnp.tile(p['g'], (l, 1)) for p in params_list])       # [L, N, 1]

    kernel = functools.partial(rf_vel_fused_kernel, n_layers=n_layers, l=l)
    n_in = 11
    return pl.pallas_call(
        kernel,
        out_shape=jax.ShapeDtypeStruct((N, 3), jnp.float32),
        in_specs=[pl.BlockSpec(memory_space=pltpu.MemorySpace.VMEM)] * n_in,
        out_specs=pl.BlockSpec(memory_space=pltpu.MemorySpace.VMEM),
    )(x, vel, vel_norm, edge_attr, oh_row, oh_col, rcnt,
      bo_div, bo_mod, pslab, gfull)


# ---------------------------- pure-JAX reference ----------------------------
def rf_vel_reference(x, vel, vel_norm, edge_attr, row, col, params_list, *, B, l):
    N = B * l
    for p in params_list:
        x_diff = x[row] - x[col]
        radial = jnp.sqrt(jnp.sum(x_diff ** 2, axis=1, keepdims=True))
        h = jax.nn.silu(radial @ p['w1r'] + edge_attr @ p['w1e'] + p['b1'])
        e_out = jnp.tanh(h @ p['w2'])
        m = x_diff * e_out
        agg_sum = jax.ops.segment_sum(m, row, num_segments=N)
        counts = jax.ops.segment_sum(jnp.ones((row.shape[0],), jnp.float32),
                                     row, num_segments=N)
        agg = agg_sum / jnp.maximum(counts, 1.0)[:, None]
        xn = x + agg
        hv = jax.nn.silu(vel_norm @ p['wv1'] + p['bv1'])
        sv = hv @ p['wv2'] + p['bv2']
        xn = xn + vel * sv
        # get_norm (replicating torch's .repeat(l, 1) tiling for g and std)
        xb = xn.reshape(B, l, 3)
        mu = xb.mean(axis=1, keepdims=True)
        d = xb - mu
        std = jnp.sqrt(jnp.sum(jnp.sum(d * d, axis=-1), axis=1))   # [B]
        g_rep = jnp.tile(p['g'], (l, 1))                           # [B*l, 1]
        std_rep = jnp.tile(std[:, None], (l, 1))                   # [B*l, 1]
        mu_full = jnp.broadcast_to(mu, (B, l, 3)).reshape(B * l, 3)
        d_flat = d.reshape(B * l, 3)
        x = g_rep * (d_flat / (std_rep + 1e-5)) + mu_full
    return x


def init_params(key, hidden_nf, edge_attr_nf, n_layers, batch_size):
    params = []
    for _ in range(n_layers):
        key, *ks = jax.random.split(key, 10)
        params.append({
            # phi: Linear(1+EA, nf) -> SiLU -> Linear(nf, 1, bias=False) -> Tanh
            'w1r': 0.1 * jax.random.normal(ks[0], (1, hidden_nf), jnp.float32),
            'w1e': 0.1 * jax.random.normal(ks[1], (edge_attr_nf, hidden_nf), jnp.float32),
            'b1':  0.1 * jax.random.normal(ks[2], (1, hidden_nf), jnp.float32),
            'w2':  0.001 * jax.random.normal(ks[3], (hidden_nf, 1), jnp.float32),
            # coord_mlp_vel: Linear(1, nf) -> SiLU -> Linear(nf, 1)
            'wv1': 0.1 * jax.random.normal(ks[4], (1, hidden_nf), jnp.float32),
            'bv1': 0.1 * jax.random.normal(ks[5], (1, hidden_nf), jnp.float32),
            'wv2': 0.1 * jax.random.normal(ks[6], (hidden_nf, 1), jnp.float32),
            'bv2': 0.1 * jax.random.normal(ks[7], (1, 1), jnp.float32),
            # Norm('get_norm'): g = Parameter(randn(batch_size))
            'g':   jax.random.normal(ks[8], (batch_size, 1), jnp.float32),
        })
    return params


if __name__ == "__main__":
    B, l = 2, 5              # batch graphs, bodies per graph
    N = B * l                # n_body (total nodes)
    hidden_nf = 32
    edge_attr_nf = 1
    n_layers = 4

    key = jax.random.PRNGKey(0)
    k1, k2, k3, kp = jax.random.split(key, 4)
    x = jax.random.normal(k1, (N, 3), jnp.float32)
    vel = jax.random.normal(k2, (N, 3), jnp.float32)
    vel_norm = jnp.sqrt(jnp.sum(vel * vel, axis=1, keepdims=True))

    # fully-connected edges within each graph
    rows, cols = [], []
    for b in range(B):
        for i in range(l):
            for j in range(l):
                if i != j:
                    rows.append(b * l + i)
                    cols.append(b * l + j)
    row = jnp.array(rows, dtype=jnp.int32)
    col = jnp.array(cols, dtype=jnp.int32)
    E = row.shape[0]
    edge_attr = jax.random.normal(k3, (E, edge_attr_nf), jnp.float32)

    params = init_params(kp, hidden_nf, edge_attr_nf, n_layers, B)

    out = rf_vel_forward(x, vel, vel_norm, edge_attr, row, col, params, B=B, l=l)
    out = jax.block_until_ready(out)

    ref = rf_vel_reference(x, vel, vel_norm, edge_attr, row, col, params, B=B, l=l)
    err = float(jnp.max(jnp.abs(out - ref)))
    assert err < 1e-2, f"kernel/reference mismatch: max abs err = {err}"
    print("KERNEL_OK")
</pallas_src>

<mosaic_0001>
module attributes {stable_mosaic.version = 11 : i64} {
  func.func @rf_vel_fused_kernel(%arg0: memref<10x3xf32, #tpu.memory_space<vmem>>, %arg1: memref<10x3xf32, #tpu.memory_space<vmem>>, %arg2: memref<10x1xf32, #tpu.memory_space<vmem>>, %arg3: memref<40x1xf32, #tpu.memory_space<vmem>>, %arg4: memref<40x10xf32, #tpu.memory_space<vmem>>, %arg5: memref<40x10xf32, #tpu.memory_space<vmem>>, %arg6: memref<10x1xf32, #tpu.memory_space<vmem>>, %arg7: memref<2x10xf32, #tpu.memory_space<vmem>>, %arg8: memref<2x10xf32, #tpu.memory_space<vmem>>, %arg9: memref<4x8x32xf32, #tpu.memory_space<vmem>>, %arg10: memref<4x10x1xf32, #tpu.memory_space<vmem>>, %arg11: memref<10x3xf32, #tpu.memory_space<vmem>>) attributes {dimension_semantics = [], scalar_prefetch = 0 : i64, scratch_operands = 0 : i64, tpu.core_type = #tpu.core_type<tc>} {
    %c0 = arith.constant 0 : index
    %c0_0 = arith.constant 0 : index
    %0 = vector.load %arg0[%c0, %c0_0] : memref<10x3xf32, #tpu.memory_space<vmem>>, vector<10x3xf32>
    %c0_1 = arith.constant 0 : index
    %c0_2 = arith.constant 0 : index
    %1 = vector.load %arg1[%c0_1, %c0_2] : memref<10x3xf32, #tpu.memory_space<vmem>>, vector<10x3xf32>
    %c0_3 = arith.constant 0 : index
    %c0_4 = arith.constant 0 : index
    %2 = vector.load %arg2[%c0_3, %c0_4] : memref<10x1xf32, #tpu.memory_space<vmem>>, vector<10x1xf32>
    %c0_5 = arith.constant 0 : index
    %c0_6 = arith.constant 0 : index
    %3 = vector.load %arg3[%c0_5, %c0_6] : memref<40x1xf32, #tpu.memory_space<vmem>>, vector<40x1xf32>
    %c0_7 = arith.constant 0 : index
    %c0_8 = arith.constant 0 : index
    %4 = vector.load %arg4[%c0_7, %c0_8] : memref<40x10xf32, #tpu.memory_space<vmem>>, vector<40x10xf32>
    %c0_9 = arith.constant 0 : index
    %c0_10 = arith.constant 0 : index
    %5 = vector.load %arg5[%c0_9, %c0_10] : memref<40x10xf32, #tpu.memory_space<vmem>>, vector<40x10xf32>
    %c0_11 = arith.constant 0 : index
    %c0_12 = arith.constant 0 : index
    %6 = vector.load %arg6[%c0_11, %c0_12] : memref<10x1xf32, #tpu.memory_space<vmem>>, vector<10x1xf32>
    %c0_13 = arith.constant 0 : index
    %c0_14 = arith.constant 0 : index
    %7 = vector.load %arg7[%c0_13, %c0_14] : memref<2x10xf32, #tpu.memory_space<vmem>>, vector<2x10xf32>
    %c0_15 = arith.constant 0 : index
    %c0_16 = arith.constant 0 : index
    %8 = vector.load %arg8[%c0_15, %c0_16] : memref<2x10xf32, #tpu.memory_space<vmem>>, vector<2x10xf32>
    %c0_17 = arith.constant 0 : index
    %c0_18 = arith.constant 0 : index
    %c0_19 = arith.constant 0 : index
    %9 = vector.load %arg9[%c0_17, %c0_18, %c0_19] : memref<4x8x32xf32, #tpu.memory_space<vmem>>, vector<1x8x32xf32>
    %10 = vector.shape_cast %9 : vector<1x8x32xf32> to vector<8x32xf32>
    %11 = vector.extract_strided_slice %10 {offsets = [0, 0], sizes = [1, 32], strides = [1, 1]} : vector<8x32xf32> to vector<1x32xf32>
    %12 = vector.extract_strided_slice %10 {offsets = [1, 0], sizes = [1, 32], strides = [1, 1]} : vector<8x32xf32> to vector<1x32xf32>
    %13 = vector.extract_strided_slice %10 {offsets = [2, 0], sizes = [1, 32], strides = [1, 1]} : vector<8x32xf32> to vector<1x32xf32>
    %14 = vector.extract_strided_slice %10 {offsets = [3, 0], sizes = [1, 32], strides = [1, 1]} : vector<8x32xf32> to vector<1x32xf32>
    %15 = vector.extract_strided_slice %10 {offsets = [4, 0], sizes = [1, 32], strides = [1, 1]} : vector<8x32xf32> to vector<1x32xf32>
    %16 = vector.extract_strided_slice %10 {offsets = [5, 0], sizes = [1, 32], strides = [1, 1]} : vector<8x32xf32> to vector<1x32xf32>
    %17 = vector.extract_strided_slice %10 {offsets = [6, 0], sizes = [1, 32], strides = [1, 1]} : vector<8x32xf32> to vector<1x32xf32>
    %18 = vector.extract_strided_slice %10 {offsets = [7, 0], sizes = [1, 1], strides = [1, 1]} : vector<8x32xf32> to vector<1x1xf32>
    %c0_20 = arith.constant 0 : index
    %c0_21 = arith.constant 0 : index
    %c0_22 = arith.constant 0 : index
    %19 = vector.load %arg10[%c0_20, %c0_21, %c0_22] : memref<4x10x1xf32, #tpu.memory_space<vmem>>, vector<1x10x1xf32>
    %20 = vector.shape_cast %19 : vector<1x10x1xf32> to vector<10x1xf32>
    %cst = arith.constant dense<0.000000e+00> : vector<40x3xf32>
    %21 = tpu.matmul %4, %0, %cst {dimension_numbers = #tpu.dot_dimension_numbers<[1], [0], [0], [1], [0, 0, 1, 1], [], []>} : vector<40x10xf32>, vector<10x3xf32>, vector<40x3xf32> -> vector<40x3xf32>
    %cst_23 = arith.constant dense<0.000000e+00> : vector<40x3xf32>
    %22 = tpu.matmul %5, %0, %cst_23 {dimension_numbers = #tpu.dot_dimension_numbers<[1], [0], [0], [1], [0, 0, 1, 1], [], []>} : vector<40x10xf32>, vector<10x3xf32>, vector<40x3xf32> -> vector<40x3xf32>
    %23 = arith.subf %21, %22 : vector<40x3xf32>
    %24 = arith.mulf %23, %23 : vector<40x3xf32>
    %cst_24 = arith.constant dense<0.000000e+00> : vector<40xf32>
    %25 = vector.multi_reduction <add>, %24, %cst_24 [1] : vector<40x3xf32> to vector<40xf32>
    %26 = vector.shape_cast %25 : vector<40xf32> to vector<40x1xf32>
    %27 = math.sqrt %26 : vector<40x1xf32>
    %28 = vector.broadcast %27 : vector<40x1xf32> to vector<40x32xf32>
    %29 = vector.broadcast %11 : vector<1x32xf32> to vector<40x32xf32>
    %30 = arith.mulf %28, %29 : vector<40x32xf32>
    %31 = vector.broadcast %3 : vector<40x1xf32> to vector<40x32xf32>
    %32 = vector.broadcast %12 : vector<1x32xf32> to vector<40x32xf32>
    %33 = arith.mulf %31, %32 : vector<40x32xf32>
    %34 = arith.addf %30, %33 : vector<40x32xf32>
    %35 = vector.broadcast %13 : vector<1x32xf32> to vector<40x32xf32>
    %36 = arith.addf %34, %35 : vector<40x32xf32>
    %37 = arith.negf %36 : vector<40x32xf32>
    %38 = math.exp %37 : vector<40x32xf32>
    %cst_25 = arith.constant 1.000000e+00 : f32
    %39 = vector.broadcast %cst_25 : f32 to vector<40x32xf32>
    %40 = arith.addf %39, %38 : vector<40x32xf32>
    %41 = arith.divf %39, %40 : vector<40x32xf32>
    %42 = arith.mulf %36, %41 : vector<40x32xf32>
    %43 = vector.broadcast %14 : vector<1x32xf32> to vector<40x32xf32>
    %44 = arith.mulf %42, %43 : vector<40x32xf32>
    %cst_26 = arith.constant dense<0.000000e+00> : vector<40xf32>
    %45 = vector.multi_reduction <add>, %44, %cst_26 [1] : vector<40x32xf32> to vector<40xf32>
    %46 = vector.shape_cast %45 : vector<40xf32> to vector<40x1xf32>
    %47 = math.tanh %46 : vector<40x1xf32>
    %48 = vector.broadcast %47 : vector<40x1xf32> to vector<40x3xf32>
    %49 = arith.mulf %23, %48 : vector<40x3xf32>
    %cst_27 = arith.constant dense<0.000000e+00> : vector<10x3xf32>
    %50 = tpu.matmul %4, %49, %cst_27 {dimension_numbers = #tpu.dot_dimension_numbers<[0], [0], [1], [1], [0, 1, 1, 1], [], []>} : vector<40x10xf32>, vector<40x3xf32>, vector<10x3xf32> -> vector<10x3xf32>
    %51 = vector.broadcast %6 : vector<10x1xf32> to vector<10x3xf32>
    %52 = arith.mulf %50, %51 : vector<10x3xf32>
    %53 = arith.addf %0, %52 : vector<10x3xf32>
    %54 = vector.broadcast %2 : vector<10x1xf32> to vector<10x32xf32>
    %55 = vector.broadcast %15 : vector<1x32xf32> to vector<10x32xf32>
    %56 = arith.mulf %54, %55 : vector<10x32xf32>
    %57 = vector.broadcast %16 : vector<1x32xf32> to vector<10x32xf32>
    %58 = arith.addf %56, %57 : vector<10x32xf32>
    %59 = arith.negf %58 : vector<10x32xf32>
    %60 = math.exp %59 : vector<10x32xf32>
    %cst_28 = arith.constant 1.000000e+00 : f32
    %61 = vector.broadcast %cst_28 : f32 to vector<10x32xf32>
    %62 = arith.addf %61, %60 : vector<10x32xf32>
    %63 = arith.divf %61, %62 : vector<10x32xf32>
    %64 = arith.mulf %58, %63 : vector<10x32xf32>
    %65 = vector.broadcast %17 : vector<1x32xf32> to vector<10x32xf32>
    %66 = arith.mulf %64, %65 : vector<10x32xf32>
    %cst_29 = arith.constant dense<0.000000e+00> : vector<10xf32>
    %67 = vector.multi_reduction <add>, %66, %cst_29 [1] : vector<10x32xf32> to vector<10xf32>
    %68 = vector.shape_cast %67 : vector<10xf32> to vector<10x1xf32>
    %69 = vector.broadcast %18 : vector<1x1xf32> to vector<10x1xf32>
    %70 = arith.addf %68, %69 : vector<10x1xf32>
    %71 = vector.broadcast %70 : vector<10x1xf32> to vector<10x3xf32>
    %72 = arith.mulf %1, %71 : vector<10x3xf32>
    %73 = arith.addf %53, %72 : vector<10x3xf32>
    %cst_30 = arith.constant dense<0.000000e+00> : vector<2x3xf32>
    %74 = tpu.matmul %7, %73, %cst_30 {dimension_numbers = #tpu.dot_dimension_numbers<[1], [0], [0], [1], [0, 0, 1, 1], [], []>} : vector<2x10xf32>, vector<10x3xf32>, vector<2x3xf32> -> vector<2x3xf32>
    %cst_31 = arith.constant 2.000000e-01 : f32
    %75 = vector.broadcast %cst_31 : f32 to vector<2x3xf32>
    %76 = arith.mulf %74, %75 : vector<2x3xf32>
    %cst_32 = arith.constant dense<0.000000e+00> : vector<10x3xf32>
    %77 = tpu.matmul %7, %76, %cst_32 {dimension_numbers = #tpu.dot_dimension_numbers<[0], [0], [1], [1], [0, 1, 1, 1], [], []>} : vector<2x10xf32>, vector<2x3xf32>, vector<10x3xf32> -> vector<10x3xf32>
    %78 = arith.subf %73, %77 : vector<10x3xf32>
    %79 = arith.mulf %78, %78 : vector<10x3xf32>
    %cst_33 = arith.constant dense<0.000000e+00> : vector<10xf32>
    %80 = vector.multi_reduction <add>, %79, %cst_33 [1] : vector<10x3xf32> to vector<10xf32>
    %81 = vector.shape_cast %80 : vector<10xf32> to vector<10x1xf32>
    %cst_34 = arith.constant dense<0.000000e+00> : vector<2x1xf32>
    %82 = tpu.matmul %7, %81, %cst_34 {dimension_numbers = #tpu.dot_dimension_numbers<[1], [0], [0], [1], [0, 0, 1, 1], [], []>} : vector<2x10xf32>, vector<10x1xf32>, vector<2x1xf32> -> vector<2x1xf32>
    %83 = math.sqrt %82 : vector<2x1xf32>
    %cst_35 = arith.constant dense<0.000000e+00> : vector<10x1xf32>
    %84 = tpu.matmul %8, %83, %cst_35 {dimension_numbers = #tpu.dot_dimension_numbers<[0], [0], [1], [1], [0, 1, 1, 1], [], []>} : vector<2x10xf32>, vector<2x1xf32>, vector<10x1xf32> -> vector<10x1xf32>
    %cst_36 = arith.constant 9.99999974E-6 : f32
    %85 = vector.broadcast %cst_36 : f32 to vector<10x1xf32>
    %86 = arith.addf %84, %85 : vector<10x1xf32>
    %87 = tpu.reciprocal %86 {approx = true} : vector<10x1xf32> -> vector<10x1xf32>
    %88 = arith.mulf %86, %87 : vector<10x1xf32>
    %cst_37 = arith.constant 2.000000e+00 : f32
    %89 = vector.broadcast %cst_37 : f32 to vector<10x1xf32>
    %90 = arith.subf %89, %88 : vector<10x1xf32>
    %91 = arith.mulf %87, %90 : vector<10x1xf32>
    %92 = vector.broadcast %91 : vector<10x1xf32> to vector<10x3xf32>
    %93 = arith.mulf %78, %92 : vector<10x3xf32>
    %94 = vector.broadcast %20 : vector<10x1xf32> to vector<10x3xf32>
    %95 = arith.mulf %94, %93 : vector<10x3xf32>
    %96 = arith.addf %95, %77 : vector<10x3xf32>
    %c1 = arith.constant 1 : index
    %c0_38 = arith.constant 0 : index
    %c0_39 = arith.constant 0 : index
    %97 = vector.load %arg9[%c1, %c0_38, %c0_39] : memref<4x8x32xf32, #tpu.memory_space<vmem>>, vector<1x8x32xf32>
    %98 = vector.shape_cast %97 : vector<1x8x32xf32> to vector<8x32xf32>
    %99 = vector.extract_strided_slice %98 {offsets = [0, 0], sizes = [1, 32], strides = [1, 1]} : vector<8x32xf32> to vector<1x32xf32>
    %100 = vector.extract_strided_slice %98 {offsets = [1, 0], sizes = [1, 32], strides = [1, 1]} : vector<8x32xf32> to vector<1x32xf32>
    %101 = vector.extract_strided_slice %98 {offsets = [2, 0], sizes = [1, 32], strides = [1, 1]} : vector<8x32xf32> to vector<1x32xf32>
    %102 = vector.extract_strided_slice %98 {offsets = [3, 0], sizes = [1, 32], strides = [1, 1]} : vector<8x32xf32> to vector<1x32xf32>
    %103 = vector.extract_strided_slice %98 {offsets = [4, 0], sizes = [1, 32], strides = [1, 1]} : vector<8x32xf32> to vector<1x32xf32>
    %104 = vector.extract_strided_slice %98 {offsets = [5, 0], sizes = [1, 32], strides = [1, 1]} : vector<8x32xf32> to vector<1x32xf32>
    %105 = vector.extract_strided_slice %98 {offsets = [6, 0], sizes = [1, 32], strides = [1, 1]} : vector<8x32xf32> to vector<1x32xf32>
    %106 = vector.extract_strided_slice %98 {offsets = [7, 0], sizes = [1, 1], strides = [1, 1]} : vector<8x32xf32> to vector<1x1xf32>
    %c1_40 = arith.constant 1 : index
    %c0_41 = arith.constant 0 : index
    %c0_42 = arith.constant 0 : index
    %107 = vector.load %arg10[%c1_40, %c0_41, %c0_42] : memref<4x10x1xf32, #tpu.memory_space<vmem>>, vector<1x10x1xf32>
    %108 = vector.shape_cast %107 : vector<1x10x1xf32> to vector<10x1xf32>
    %cst_43 = arith.constant dense<0.000000e+00> : vector<40x3xf32>
    %109 = tpu.matmul %4, %96, %cst_43 {dimension_numbers = #tpu.dot_dimension_numbers<[1], [0], [0], [1], [0, 0, 1, 1], [], []>} : vector<40x10xf32>, vector<10x3xf32>, vector<40x3xf32> -> vector<40x3xf32>
    %cst_44 = arith.constant dense<0.000000e+00> : vector<40x3xf32>
    %110 = tpu.matmul %5, %96, %cst_44 {dimension_numbers = #tpu.dot_dimension_numbers<[1], [0], [0], [1], [0, 0, 1, 1], [], []>} : vector<40x10xf32>, vector<10x3xf32>, vector<40x3xf32> -> vector<40x3xf32>
    %111 = arith.subf %109, %110 : vector<40x3xf32>
    %112 = arith.mulf %111, %111 : vector<40x3xf32>
    %cst_45 = arith.constant dense<0.000000e+00> : vector<40xf32>
    %113 = vector.multi_reduction <add>, %112, %cst_45 [1] : vector<40x3xf32> to vector<40xf32>
    %114 = vector.shape_cast %113 : vector<40xf32> to vector<40x1xf32>
    %115 = math.sqrt %114 : vector<40x1xf32>
    %116 = vector.broadcast %115 : vector<40x1xf32> to vector<40x32xf32>
    %117 = vector.broadcast %99 : vector<1x32xf32> to vector<40x32xf32>
    %118 = arith.mulf %116, %117 : vector<40x32xf32>
    %119 = vector.broadcast %3 : vector<40x1xf32> to vector<40x32xf32>
    %120 = vector.broadcast %100 : vector<1x32xf32> to vector<40x32xf32>
    %121 = arith.mulf %119, %120 : vector<40x32xf32>
    %122 = arith.addf %118, %121 : vector<40x32xf32>
    %123 = vector.broadcast %101 : vector<1x32xf32> to vector<40x32xf32>
    %124 = arith.addf %122, %123 : vector<40x32xf32>
    %125 = arith.negf %124 : vector<40x32xf32>
    %126 = math.exp %125 : vector<40x32xf32>
    %cst_46 = arith.constant 1.000000e+00 : f32
    %127 = vector.broadcast %cst_46 : f32 to vector<40x32xf32>
    %128 = arith.addf %127, %126 : vector<40x32xf32>
    %129 = arith.divf %127, %128 : vector<40x32xf32>
    %130 = arith.mulf %124, %129 : vector<40x32xf32>
    %131 = vector.broadcast %102 : vector<1x32xf32> to vector<40x32xf32>
    %132 = arith.mulf %130, %131 : vector<40x32xf32>
    %cst_47 = arith.constant dense<0.000000e+00> : vector<40xf32>
    %133 = vector.multi_reduction <add>, %132, %cst_47 [1] : vector<40x32xf32> to vector<40xf32>
    %134 = vector.shape_cast %133 : vector<40xf32> to vector<40x1xf32>
    %135 = math.tanh %134 : vector<40x1xf32>
    %136 = vector.broadcast %135 : vector<40x1xf32> to vector<40x3xf32>
    %137 = arith.mulf %111, %136 : vector<40x3xf32>
    %cst_48 = arith.constant dense<0.000000e+00> : vector<10x3xf32>
    %138 = tpu.matmul %4, %137, %cst_48 {dimension_numbers = #tpu.dot_dimension_numbers<[0], [0], [1], [1], [0, 1, 1, 1], [], []>} : vector<40x10xf32>, vector<40x3xf32>, vector<10x3xf32> -> vector<10x3xf32>
    %139 = vector.broadcast %6 : vector<10x1xf32> to vector<10x3xf32>
    %140 = arith.mulf %138, %139 : vector<10x3xf32>
    %141 = arith.addf %96, %140 : vector<10x3xf32>
    %142 = vector.broadcast %2 : vector<10x1xf32> to vector<10x32xf32>
    %143 = vector.broadcast %103 : vector<1x32xf32> to vector<10x32xf32>
    %144 = arith.mulf %142, %143 : vector<10x32xf32>
    %145 = vector.broadcast %104 : vector<1x32xf32> to vector<10x32xf32>
    %146 = arith.addf %144, %145 : vector<10x32xf32>
    %147 = arith.negf %146 : vector<10x32xf32>
    %148 = math.exp %147 : vector<10x32xf32>
    %cst_49 = arith.constant 1.000000e+00 : f32
    %149 = vector.broadcast %cst_49 : f32 to vector<10x32xf32>
    %150 = arith.addf %149, %148 : vector<10x32xf32>
    %151 = arith.divf %149, %150 : vector<10x32xf32>
    %152 = arith.mulf %146, %151 : vector<10x32xf32>
    %153 = vector.broadcast %105 : vector<1x32xf32> to vector<10x32xf32>
    %154 = arith.mulf %152, %153 : vector<10x32xf32>
    %cst_50 = arith.constant dense<0.000000e+00> : vector<10xf32>
    %155 = vector.multi_reduction <add>, %154, %cst_50 [1] : vector<10x32xf32> to vector<10xf32>
    %156 = vector.shape_cast %155 : vector<10xf32> to vector<10x1xf32>
    %157 = vector.broadcast %106 : vector<1x1xf32> to vector<10x1xf32>
    %158 = arith.addf %156, %157 : vector<10x1xf32>
    %159 = vector.broadcast %158 : vector<10x1xf32> to vector<10x3xf32>
    %160 = arith.mulf %1, %159 : vector<10x3xf32>
    %161 = arith.addf %141, %160 : vector<10x3xf32>
    %cst_51 = arith.constant dense<0.000000e+00> : vector<2x3xf32>
    %162 = tpu.matmul %7, %161, %cst_51 {dimension_numbers = #tpu.dot_dimension_numbers<[1], [0], [0], [1], [0, 0, 1, 1], [], []>} : vector<2x10xf32>, vector<10x3xf32>, vector<2x3xf32> -> vector<2x3xf32>
    %cst_52 = arith.constant 2.000000e-01 : f32
    %163 = vector.broadcast %cst_52 : f32 to vector<2x3xf32>
    %164 = arith.mulf %162, %163 : vector<2x3xf32>
    %cst_53 = arith.constant dense<0.000000e+00> : vector<10x3xf32>
    %165 = tpu.matmul %7, %164, %cst_53 {dimension_numbers = #tpu.dot_dimension_numbers<[0], [0], [1], [1], [0, 1, 1, 1], [], []>} : vector<2x10xf32>, vector<2x3xf32>, vector<10x3xf32> -> vector<10x3xf32>
    %166 = arith.subf %161, %165 : vector<10x3xf32>
    %167 = arith.mulf %166, %166 : vector<10x3xf32>
    %cst_54 = arith.constant dense<0.000000e+00> : vector<10xf32>
    %168 = vector.multi_reduction <add>, %167, %cst_54 [1] : vector<10x3xf32> to vector<10xf32>
    %169 = vector.shape_cast %168 : vector<10xf32> to vector<10x1xf32>
    %cst_55 = arith.constant dense<0.000000e+00> : vector<2x1xf32>
    %170 = tpu.matmul %7, %169, %cst_55 {dimension_numbers = #tpu.dot_dimension_numbers<[1], [0], [0], [1], [0, 0, 1, 1], [], []>} : vector<2x10xf32>, vector<10x1xf32>, vector<2x1xf32> -> vector<2x1xf32>
    %171 = math.sqrt %170 : vector<2x1xf32>
    %cst_56 = arith.constant dense<0.000000e+00> : vector<10x1xf32>
    %172 = tpu.matmul %8, %171, %cst_56 {dimension_numbers = #tpu.dot_dimension_numbers<[0], [0], [1], [1], [0, 1, 1, 1], [], []>} : vector<2x10xf32>, vector<2x1xf32>, vector<10x1xf32> -> vector<10x1xf32>
    %cst_57 = arith.constant 9.99999974E-6 : f32
    %173 = vector.broadcast %cst_57 : f32 to vector<10x1xf32>
    %174 = arith.addf %172, %173 : vector<10x1xf32>
    %175 = tpu.reciprocal %174 {approx = true} : vector<10x1xf32> -> vector<10x1xf32>
    %176 = arith.mulf %174, %175 : vector<10x1xf32>
    %cst_58 = arith.constant 2.000000e+00 : f32
    %177 = vector.broadcast %cst_58 : f32 to vector<10x1xf32>
    %178 = arith.subf %177, %176 : vector<10x1xf32>
    %179 = arith.mulf %175, %178 : vector<10x1xf32>
    %180 = vector.broadcast %179 : vector<10x1xf32> to vector<10x3xf32>
    %181 = arith.mulf %166, %180 : vector<10x3xf32>
    %182 = vector.broadcast %108 : vector<10x1xf32> to vector<10x3xf32>
    %183 = arith.mulf %182, %181 : vector<10x3xf32>
    %184 = arith.addf %183, %165 : vector<10x3xf32>
    %c2 = arith.constant 2 : index
    %c0_59 = arith.constant 0 : index
    %c0_60 = arith.constant 0 : index
    %185 = vector.load %arg9[%c2, %c0_59, %c0_60] : memref<4x8x32xf32, #tpu.memory_space<vmem>>, vector<1x8x32xf32>
    %186 = vector.shape_cast %185 : vector<1x8x32xf32> to vector<8x32xf32>
    %187 = vector.extract_strided_slice %186 {offsets = [0, 0], sizes = [1, 32], strides = [1, 1]} : vector<8x32xf32> to vector<1x32xf32>
    %188 = vector.extract_strided_slice %186 {offsets = [1, 0], sizes = [1, 32], strides = [1, 1]} : vector<8x32xf32> to vector<1x32xf32>
    %189 = vector.extract_strided_slice %186 {offsets = [2, 0], sizes = [1, 32], strides = [1, 1]} : vector<8x32xf32> to vector<1x32xf32>
    %190 = vector.extract_strided_slice %186 {offsets = [3, 0], sizes = [1, 32], strides = [1, 1]} : vector<8x32xf32> to vector<1x32xf32>
    %191 = vector.extract_strided_slice %186 {offsets = [4, 0], sizes = [1, 32], strides = [1, 1]} : vector<8x32xf32> to vector<1x32xf32>
    %192 = vector.extract_strided_slice %186 {offsets = [5, 0], sizes = [1, 32], strides = [1, 1]} : vector<8x32xf32> to vector<1x32xf32>
    %193 = vector.extract_strided_slice %186 {offsets = [6, 0], sizes = [1, 32], strides = [1, 1]} : vector<8x32xf32> to vector<1x32xf32>
    %194 = vector.extract_strided_slice %186 {offsets = [7, 0], sizes = [1, 1], strides = [1, 1]} : vector<8x32xf32> to vector<1x1xf32>
    %c2_61 = arith.constant 2 : index
    %c0_62 = arith.constant 0 : index
    %c0_63 = arith.constant 0 : index
    %195 = vector.load %arg10[%c2_61, %c0_62, %c0_63] : memref<4x10x1xf32, #tpu.memory_space<vmem>>, vector<1x10x1xf32>
    %196 = vector.shape_cast %195 : vector<1x10x1xf32> to vector<10x1xf32>
    %cst_64 = arith.constant dense<0.000000e+00> : vector<40x3xf32>
    %197 = tpu.matmul %4, %184, %cst_64 {dimension_numbers = #tpu.dot_dimension_numbers<[1], [0], [0], [1], [0, 0, 1, 1], [], []>} : vector<40x10xf32>, vector<10x3xf32>, vector<40x3xf32> -> vector<40x3xf32>
    %cst_65 = arith.constant dense<0.000000e+00> : vector<40x3xf32>
    %198 = tpu.matmul %5, %184, %cst_65 {dimension_numbers = #tpu.dot_dimension_numbers<[1], [0], [0], [1], [0, 0, 1, 1], [], []>} : vector<40x10xf32>, vector<10x3xf32>, vector<40x3xf32> -> vector<40x3xf32>
    %199 = arith.subf %197, %198 : vector<40x3xf32>
    %200 = arith.mulf %199, %199 : vector<40x3xf32>
    %cst_66 = arith.constant dense<0.000000e+00> : vector<40xf32>
    %201 = vector.multi_reduction <add>, %200, %cst_66 [1] : vector<40x3xf32> to vector<40xf32>
    %202 = vector.shape_cast %201 : vector<40xf32> to vector<40x1xf32>
    %203 = math.sqrt %202 : vector<40x1xf32>
    %204 = vector.broadcast %203 : vector<40x1xf32> to vector<40x32xf32>
    %205 = vector.broadcast %187 : vector<1x32xf32> to vector<40x32xf32>
    %206 = arith.mulf %204, %205 : vector<40x32xf32>
    %207 = vector.broadcast %3 : vector<40x1xf32> to vector<40x32xf32>
    %208 = vector.broadcast %188 : vector<1x32xf32> to vector<40x32xf32>
    %209 = arith.mulf %207, %208 : vector<40x32xf32>
    %210 = arith.addf %206, %209 : vector<40x32xf32>
    %211 = vector.broadcast %189 : vector<1x32xf32> to vector<40x32xf32>
    %212 = arith.addf %210, %211 : vector<40x32xf32>
    %213 = arith.negf %212 : vector<40x32xf32>
    %214 = math.exp %213 : vector<40x32xf32>
    %cst_67 = arith.constant 1.000000e+00 : f32
    %215 = vector.broadcast %cst_67 : f32 to vector<40x32xf32>
    %216 = arith.addf %215, %214 : vector<40x32xf32>
    %217 = arith.divf %215, %216 : vector<40x32xf32>
    %218 = arith.mulf %212, %217 : vector<40x32xf32>
    %219 = vector.broadcast %190 : vector<1x32xf32> to vector<40x32xf32>
    %220 = arith.mulf %218, %219 : vector<40x32xf32>
    %cst_68 = arith.constant dense<0.000000e+00> : vector<40xf32>
    %221 = vector.multi_reduction <add>, %220, %cst_68 [1] : vector<40x32xf32> to vector<40xf32>
    %222 = vector.shape_cast %221 : vector<40xf32> to vector<40x1xf32>
    %223 = math.tanh %222 : vector<40x1xf32>
    %224 = vector.broadcast %223 : vector<40x1xf32> to vector<40x3xf32>
    %225 = arith.mulf %199, %224 : vector<40x3xf32>
    %cst_69 = arith.constant dense<0.000000e+00> : vector<10x3xf32>
    %226 = tpu.matmul %4, %225, %cst_69 {dimension_numbers = #tpu.dot_dimension_numbers<[0], [0], [1], [1], [0, 1, 1, 1], [], []>} : vector<40x10xf32>, vector<40x3xf32>, vector<10x3xf32> -> vector<10x3xf32>
    %227 = vector.broadcast %6 : vector<10x1xf32> to vector<10x3xf32>
    %228 = arith.mulf %226, %227 : vector<10x3xf32>
    %229 = arith.addf %184, %228 : vector<10x3xf32>
    %230 = vector.broadcast %2 : vector<10x1xf32> to vector<10x32xf32>
    %231 = vector.broadcast %191 : vector<1x32xf32> to vector<10x32xf32>
    %232 = arith.mulf %230, %231 : vector<10x32xf32>
    %233 = vector.broadcast %192 : vector<1x32xf32> to vector<10x32xf32>
    %234 = arith.addf %232, %233 : vector<10x32xf32>
    %235 = arith.negf %234 : vector<10x32xf32>
    %236 = math.exp %235 : vector<10x32xf32>
    %cst_70 = arith.constant 1.000000e+00 : f32
    %237 = vector.broadcast %cst_70 : f32 to vector<10x32xf32>
    %238 = arith.addf %237, %236 : vector<10x32xf32>
    %239 = arith.divf %237, %238 : vector<10x32xf32>
    %240 = arith.mulf %234, %239 : vector<10x32xf32>
    %241 = vector.broadcast %193 : vector<1x32xf32> to vector<10x32xf32>
    %242 = arith.mulf %240, %241 : vector<10x32xf32>
    %cst_71 = arith.constant dense<0.000000e+00> : vector<10xf32>
    %243 = vector.multi_reduction <add>, %242, %cst_71 [1] : vector<10x32xf32> to vector<10xf32>
    %244 = vector.shape_cast %243 : vector<10xf32> to vector<10x1xf32>
    %245 = vector.broadcast %194 : vector<1x1xf32> to vector<10x1xf32>
    %246 = arith.addf %244, %245 : vector<10x1xf32>
    %247 = vector.broadcast %246 : vector<10x1xf32> to vector<10x3xf32>
    %248 = arith.mulf %1, %247 : vector<10x3xf32>
    %249 = arith.addf %229, %248 : vector<10x3xf32>
    %cst_72 = arith.constant dense<0.000000e+00> : vector<2x3xf32>
    %250 = tpu.matmul %7, %249, %cst_72 {dimension_numbers = #tpu.dot_dimension_numbers<[1], [0], [0], [1], [0, 0, 1, 1], [], []>} : vector<2x10xf32>, vector<10x3xf32>, vector<2x3xf32> -> vector<2x3xf32>
    %cst_73 = arith.constant 2.000000e-01 : f32
    %251 = vector.broadcast %cst_73 : f32 to vector<2x3xf32>
    %252 = arith.mulf %250, %251 : vector<2x3xf32>
    %cst_74 = arith.constant dense<0.000000e+00> : vector<10x3xf32>
    %253 = tpu.matmul %7, %252, %cst_74 {dimension_numbers = #tpu.dot_dimension_numbers<[0], [0], [1], [1], [0, 1, 1, 1], [], []>} : vector<2x10xf32>, vector<2x3xf32>, vector<10x3xf32> -> vector<10x3xf32>
    %254 = arith.subf %249, %253 : vector<10x3xf32>
    %255 = arith.mulf %254, %254 : vector<10x3xf32>
    %cst_75 = arith.constant dense<0.000000e+00> : vector<10xf32>
    %256 = vector.multi_reduction <add>, %255, %cst_75 [1] : vector<10x3xf32> to vector<10xf32>
    %257 = vector.shape_cast %256 : vector<10xf32> to vector<10x1xf32>
    %cst_76 = arith.constant dense<0.000000e+00> : vector<2x1xf32>
    %258 = tpu.matmul %7, %257, %cst_76 {dimension_numbers = #tpu.dot_dimension_numbers<[1], [0], [0], [1], [0, 0, 1, 1], [], []>} : vector<2x10xf32>, vector<10x1xf32>, vector<2x1xf32> -> vector<2x1xf32>
    %259 = math.sqrt %258 : vector<2x1xf32>
    %cst_77 = arith.constant dense<0.000000e+00> : vector<10x1xf32>
    %260 = tpu.matmul %8, %259, %cst_77 {dimension_numbers = #tpu.dot_dimension_numbers<[0], [0], [1], [1], [0, 1, 1, 1], [], []>} : vector<2x10xf32>, vector<2x1xf32>, vector<10x1xf32> -> vector<10x1xf32>
    %cst_78 = arith.constant 9.99999974E-6 : f32
    %261 = vector.broadcast %cst_78 : f32 to vector<10x1xf32>
    %262 = arith.addf %260, %261 : vector<10x1xf32>
    %263 = tpu.reciprocal %262 {approx = true} : vector<10x1xf32> -> vector<10x1xf32>
    %264 = arith.mulf %262, %263 : vector<10x1xf32>
    %cst_79 = arith.constant 2.000000e+00 : f32
    %265 = vector.broadcast %cst_79 : f32 to vector<10x1xf32>
    %266 = arith.subf %265, %264 : vector<10x1xf32>
    %267 = arith.mulf %263, %266 : vector<10x1xf32>
    %268 = vector.broadcast %267 : vector<10x1xf32> to vector<10x3xf32>
    %269 = arith.mulf %254, %268 : vector<10x3xf32>
    %270 = vector.broadcast %196 : vector<10x1xf32> to vector<10x3xf32>
    %271 = arith.mulf %270, %269 : vector<10x3xf32>
    %272 = arith.addf %271, %253 : vector<10x3xf32>
    %c3 = arith.constant 3 : index
    %c0_80 = arith.constant 0 : index
    %c0_81 = arith.constant 0 : index
    %273 = vector.load %arg9[%c3, %c0_80, %c0_81] : memref<4x8x32xf32, #tpu.memory_space<vmem>>, vector<1x8x32xf32>
    %274 = vector.shape_cast %273 : vector<1x8x32xf32> to vector<8x32xf32>
    %275 = vector.extract_strided_slice %274 {offsets = [0, 0], sizes = [1, 32], strides = [1, 1]} : vector<8x32xf32> to vector<1x32xf32>
    %276 = vector.extract_strided_slice %274 {offsets = [1, 0], sizes = [1, 32], strides = [1, 1]} : vector<8x32xf32> to vector<1x32xf32>
    %277 = vector.extract_strided_slice %274 {offsets = [2, 0], sizes = [1, 32], strides = [1, 1]} : vector<8x32xf32> to vector<1x32xf32>
    %278 = vector.extract_strided_slice %274 {offsets = [3, 0], sizes = [1, 32], strides = [1, 1]} : vector<8x32xf32> to vector<1x32xf32>
    %279 = vector.extract_strided_slice %274 {offsets = [4, 0], sizes = [1, 32], strides = [1, 1]} : vector<8x32xf32> to vector<1x32xf32>
    %280 = vector.extract_strided_slice %274 {offsets = [5, 0], sizes = [1, 32], strides = [1, 1]} : vector<8x32xf32> to vector<1x32xf32>
    %281 = vector.extract_strided_slice %274 {offsets = [6, 0], sizes = [1, 32], strides = [1, 1]} : vector<8x32xf32> to vector<1x32xf32>
    %282 = vector.extract_strided_slice %274 {offsets = [7, 0], sizes = [1, 1], strides = [1, 1]} : vector<8x32xf32> to vector<1x1xf32>
    %c3_82 = arith.constant 3 : index
    %c0_83 = arith.constant 0 : index
    %c0_84 = arith.constant 0 : index
    %283 = vector.load %arg10[%c3_82, %c0_83, %c0_84] : memref<4x10x1xf32, #tpu.memory_space<vmem>>, vector<1x10x1xf32>
    %284 = vector.shape_cast %283 : vector<1x10x1xf32> to vector<10x1xf32>
    %cst_85 = arith.constant dense<0.000000e+00> : vector<40x3xf32>
    %285 = tpu.matmul %4, %272, %cst_85 {dimension_numbers = #tpu.dot_dimension_numbers<[1], [0], [0], [1], [0, 0, 1, 1], [], []>} : vector<40x10xf32>, vector<10x3xf32>, vector<40x3xf32> -> vector<40x3xf32>
    %cst_86 = arith.constant dense<0.000000e+00> : vector<40x3xf32>
    %286 = tpu.matmul %5, %272, %cst_86 {dimension_numbers = #tpu.dot_dimension_numbers<[1], [0], [0], [1], [0, 0, 1, 1], [], []>} : vector<40x10xf32>, vector<10x3xf32>, vector<40x3xf32> -> vector<40x3xf32>
    %287 = arith.subf %285, %286 : vector<40x3xf32>
    %288 = arith.mulf %287, %287 : vector<40x3xf32>
    %cst_87 = arith.constant dense<0.000000e+00> : vector<40xf32>
    %289 = vector.multi_reduction <add>, %288, %cst_87 [1] : vector<40x3xf32> to vector<40xf32>
    %290 = vector.shape_cast %289 : vector<40xf32> to vector<40x1xf32>
    %291 = math.sqrt %290 : vector<40x1xf32>
    %292 = vector.broadcast %291 : vector<40x1xf32> to vector<40x32xf32>
    %293 = vector.broadcast %275 : vector<1x32xf32> to vector<40x32xf32>
    %294 = arith.mulf %292, %293 : vector<40x32xf32>
    %295 = vector.broadcast %3 : vector<40x1xf32> to vector<40x32xf32>
    %296 = vector.broadcast %276 : vector<1x32xf32> to vector<40x32xf32>
    %297 = arith.mulf %295, %296 : vector<40x32xf32>
    %298 = arith.addf %294, %297 : vector<40x32xf32>
    %299 = vector.broadcast %277 : vector<1x32xf32> to vector<40x32xf32>
    %300 = arith.addf %298, %299 : vector<40x32xf32>
    %301 = arith.negf %300 : vector<40x32xf32>
    %302 = math.exp %301 : vector<40x32xf32>
    %cst_88 = arith.constant 1.000000e+00 : f32
    %303 = vector.broadcast %cst_88 : f32 to vector<40x32xf32>
    %304 = arith.addf %303, %302 : vector<40x32xf32>
    %305 = arith.divf %303, %304 : vector<40x32xf32>
    %306 = arith.mulf %300, %305 : vector<40x32xf32>
    %307 = vector.broadcast %278 : vector<1x32xf32> to vector<40x32xf32>
    %308 = arith.mulf %306, %307 : vector<40x32xf32>
    %cst_89 = arith.constant dense<0.000000e+00> : vector<40xf32>
    %309 = vector.multi_reduction <add>, %308, %cst_89 [1] : vector<40x32xf32> to vector<40xf32>
    %310 = vector.shape_cast %309 : vector<40xf32> to vector<40x1xf32>
    %311 = math.tanh %310 : vector<40x1xf32>
    %312 = vector.broadcast %311 : vector<40x1xf32> to vector<40x3xf32>
    %313 = arith.mulf %287, %312 : vector<40x3xf32>
    %cst_90 = arith.constant dense<0.000000e+00> : vector<10x3xf32>
    %314 = tpu.matmul %4, %313, %cst_90 {dimension_numbers = #tpu.dot_dimension_numbers<[0], [0], [1], [1], [0, 1, 1, 1], [], []>} : vector<40x10xf32>, vector<40x3xf32>, vector<10x3xf32> -> vector<10x3xf32>
    %315 = vector.broadcast %6 : vector<10x1xf32> to vector<10x3xf32>
    %316 = arith.mulf %314, %315 : vector<10x3xf32>
    %317 = arith.addf %272, %316 : vector<10x3xf32>
    %318 = vector.broadcast %2 : vector<10x1xf32> to vector<10x32xf32>
    %319 = vector.broadcast %279 : vector<1x32xf32> to vector<10x32xf32>
    %320 = arith.mulf %318, %319 : vector<10x32xf32>
    %321 = vector.broadcast %280 : vector<1x32xf32> to vector<10x32xf32>
    %322 = arith.addf %320, %321 : vector<10x32xf32>
    %323 = arith.negf %322 : vector<10x32xf32>
    %324 = math.exp %323 : vector<10x32xf32>
    %cst_91 = arith.constant 1.000000e+00 : f32
    %325 = vector.broadcast %cst_91 : f32 to vector<10x32xf32>
    %326 = arith.addf %325, %324 : vector<10x32xf32>
    %327 = arith.divf %325, %326 : vector<10x32xf32>
    %328 = arith.mulf %322, %327 : vector<10x32xf32>
    %329 = vector.broadcast %281 : vector<1x32xf32> to vector<10x32xf32>
    %330 = arith.mulf %328, %329 : vector<10x32xf32>
    %cst_92 = arith.constant dense<0.000000e+00> : vector<10xf32>
    %331 = vector.multi_reduction <add>, %330, %cst_92 [1] : vector<10x32xf32> to vector<10xf32>
    %332 = vector.shape_cast %331 : vector<10xf32> to vector<10x1xf32>
    %333 = vector.broadcast %282 : vector<1x1xf32> to vector<10x1xf32>
    %334 = arith.addf %332, %333 : vector<10x1xf32>
    %335 = vector.broadcast %334 : vector<10x1xf32> to vector<10x3xf32>
    %336 = arith.mulf %1, %335 : vector<10x3xf32>
    %337 = arith.addf %317, %336 : vector<10x3xf32>
    %cst_93 = arith.constant dense<0.000000e+00> : vector<2x3xf32>
    %338 = tpu.matmul %7, %337, %cst_93 {dimension_numbers = #tpu.dot_dimension_numbers<[1], [0], [0], [1], [0, 0, 1, 1], [], []>} : vector<2x10xf32>, vector<10x3xf32>, vector<2x3xf32> -> vector<2x3xf32>
    %cst_94 = arith.constant 2.000000e-01 : f32
    %339 = vector.broadcast %cst_94 : f32 to vector<2x3xf32>
    %340 = arith.mulf %338, %339 : vector<2x3xf32>
    %cst_95 = arith.constant dense<0.000000e+00> : vector<10x3xf32>
    %341 = tpu.matmul %7, %340, %cst_95 {dimension_numbers = #tpu.dot_dimension_numbers<[0], [0], [1], [1], [0, 1, 1, 1], [], []>} : vector<2x10xf32>, vector<2x3xf32>, vector<10x3xf32> -> vector<10x3xf32>
    %342 = arith.subf %337, %341 : vector<10x3xf32>
    %343 = arith.mulf %342, %342 : vector<10x3xf32>
    %cst_96 = arith.constant dense<0.000000e+00> : vector<10xf32>
    %344 = vector.multi_reduction <add>, %343, %cst_96 [1] : vector<10x3xf32> to vector<10xf32>
    %345 = vector.shape_cast %344 : vector<10xf32> to vector<10x1xf32>
    %cst_97 = arith.constant dense<0.000000e+00> : vector<2x1xf32>
    %346 = tpu.matmul %7, %345, %cst_97 {dimension_numbers = #tpu.dot_dimension_numbers<[1], [0], [0], [1], [0, 0, 1, 1], [], []>} : vector<2x10xf32>, vector<10x1xf32>, vector<2x1xf32> -> vector<2x1xf32>
    %347 = math.sqrt %346 : vector<2x1xf32>
    %cst_98 = arith.constant dense<0.000000e+00> : vector<10x1xf32>
    %348 = tpu.matmul %8, %347, %cst_98 {dimension_numbers = #tpu.dot_dimension_numbers<[0], [0], [1], [1], [0, 1, 1, 1], [], []>} : vector<2x10xf32>, vector<2x1xf32>, vector<10x1xf32> -> vector<10x1xf32>
    %cst_99 = arith.constant 9.99999974E-6 : f32
    %349 = vector.broadcast %cst_99 : f32 to vector<10x1xf32>
    %350 = arith.addf %348, %349 : vector<10x1xf32>
    %351 = tpu.reciprocal %350 {approx = true} : vector<10x1xf32> -> vector<10x1xf32>
    %352 = arith.mulf %350, %351 : vector<10x1xf32>
    %cst_100 = arith.constant 2.000000e+00 : f32
    %353 = vector.broadcast %cst_100 : f32 to vector<10x1xf32>
    %354 = arith.subf %353, %352 : vector<10x1xf32>
    %355 = arith.mulf %351, %354 : vector<10x1xf32>
    %356 = vector.broadcast %355 : vector<10x1xf32> to vector<10x3xf32>
    %357 = arith.mulf %342, %356 : vector<10x3xf32>
    %358 = vector.broadcast %284 : vector<10x1xf32> to vector<10x3xf32>
    %359 = arith.mulf %358, %357 : vector<10x3xf32>
    %360 = arith.addf %359, %341 : vector<10x3xf32>
    %c0_101 = arith.constant 0 : index
    %c0_102 = arith.constant 0 : index
    %361 = vector.load %arg11[%c0_101, %c0_102] : memref<10x3xf32, #tpu.memory_space<vmem>>, vector<10x3xf32>
    tpu.vector_store %arg11[%c0_101, %c0_102], %360 {strides = array<i32>} : memref<10x3xf32, #tpu.memory_space<vmem>>, vector<10x3xf32>,
    return
  }
}

</mosaic_0001>

<llo_original>
// kernel: tpu_custom_call.1
$region0: #{tpu_custom_call.1}
  #allocation0 [shape = 'u32[]', space=smem, size = 0x4, offset = 0x4, fixed_abs, tag = 'smem constant byte address 0x4 - core index']
  #allocation1 [shape = 'u32[144,128]{1,0:T(1,128)}', space=vmem, size = 0x12000, scoped, tag = 'internal scratch']
  %s0 = inlined_call_operand.vmem [shape: f32[10,3], index: 0, kind: input, shape index: {}]
  %s1 = inlined_call_operand.vmem [shape: f32[10,3], index: 1, kind: input, shape index: {}]
  %s2 = inlined_call_operand.vmem [shape: f32[10,1], index: 2, kind: input, shape index: {}]
  %s3 = inlined_call_operand.vmem [shape: f32[40,1], index: 3, kind: input, shape index: {}]
  %s4 = inlined_call_operand.vmem [shape: f32[40,10], index: 4, kind: input, shape index: {}]
  %s5 = inlined_call_operand.vmem [shape: f32[40,10], index: 5, kind: input, shape index: {}]
  %s6 = inlined_call_operand.vmem [shape: f32[10,1], index: 6, kind: input, shape index: {}]
  %s7 = inlined_call_operand.vmem [shape: f32[2,10], index: 7, kind: input, shape index: {}]
  %s8 = inlined_call_operand.vmem [shape: f32[2,10], index: 8, kind: input, shape index: {}]
  %s9 = inlined_call_operand.vmem [shape: f32[4,8,32], index: 9, kind: input, shape index: {}]
  %s10 = inlined_call_operand.vmem [shape: f32[4,10,1], index: 10, kind: input, shape index: {}]
  %s11 = inlined_call_operand.vmem [shape: f32[10,3], index: 11, kind: output, shape index: {}]
  %s12 = sld [smem:[#allocation0]]
  $region54: #{tpu_custom_call.1} parent=0
    _
  %s14 = ssub.s32 1, %s12
  %s15 = scalar_select 0, %s14, %s12
  // Predicated region
  $region2: #{tpu_custom_call.1} parent=0 // pred_check
    _
  $region3: #{tpu_custom_call.1} parent=0 // pred_check_branch
    %17 = sbr.rel (0) target = $region5
  $region4: #{tpu_custom_call.1} parent=0 // pred_region
    _
  $region5: #{tpu_custom_call.1} parent=0 // pred_fallthru
    _
  // Predicated region
  $region6: #{tpu_custom_call.1} parent=0 // pred_check
    _
  $region7: #{tpu_custom_call.1} parent=0 // pred_check_branch
    %19 = sbr.rel (0) target = $region9
  $region8: #{tpu_custom_call.1} parent=0 // pred_region
    _
  $region9: #{tpu_custom_call.1} parent=0 // pred_fallthru
    _
  // Predicated region
  $region10: #{tpu_custom_call.1} parent=0 // pred_check
    _
  $region11: #{tpu_custom_call.1} parent=0 // pred_check_branch
    %21 = sbr.rel (0) target = $region13
  $region12: #{tpu_custom_call.1} parent=0 // pred_region
    _
  $region13: #{tpu_custom_call.1} parent=0 // pred_fallthru
    _
  // Predicated region
  $region14: #{tpu_custom_call.1} parent=0 // pred_check
    _
  $region15: #{tpu_custom_call.1} parent=0 // pred_check_branch
    %23 = sbr.rel (0) target = $region17
  $region16: #{tpu_custom_call.1} parent=0 // pred_region
    _
  $region17: #{tpu_custom_call.1} parent=0 // pred_fallthru
    _
  // Predicated region
  $region18: #{tpu_custom_call.1} parent=0 // pred_check
    _
  $region19: #{tpu_custom_call.1} parent=0 // pred_check_branch
    %25 = sbr.rel (0) target = $region21
  $region20: #{tpu_custom_call.1} parent=0 // pred_region
    _
  $region21: #{tpu_custom_call.1} parent=0 // pred_fallthru
    _
  // Predicated region
  $region22: #{tpu_custom_call.1} parent=0 // pred_check
    _
  $region23: #{tpu_custom_call.1} parent=0 // pred_check_branch
    %27 = sbr.rel (0) target = $region25
  $region24: #{tpu_custom_call.1} parent=0 // pred_region
    _
  $region25: #{tpu_custom_call.1} parent=0 // pred_fallthru
    _
  // Predicated region
  $region26: #{tpu_custom_call.1} parent=0 // pred_check
    _
  $region27: #{tpu_custom_call.1} parent=0 // pred_check_branch
    %29 = sbr.rel (0) target = $region29
  $region28: #{tpu_custom_call.1} parent=0 // pred_region
    _
  $region29: #{tpu_custom_call.1} parent=0 // pred_fallthru
    _
  // Predicated region
  $region30: #{tpu_custom_call.1} parent=0 // pred_check
    _
  $region31: #{tpu_custom_call.1} parent=0 // pred_check_branch
    %31 = sbr.rel (0) target = $region33
  $region32: #{tpu_custom_call.1} parent=0 // pred_region
    _
  $region33: #{tpu_custom_call.1} parent=0 // pred_fallthru
    _
  // Predicated region
  $region34: #{tpu_custom_call.1} parent=0 // pred_check
    _
  $region35: #{tpu_custom_call.1} parent=0 // pred_check_branch
    %33 = sbr.rel (0) target = $region37
  $region36: #{tpu_custom_call.1} parent=0 // pred_region
    _
  $region37: #{tpu_custom_call.1} parent=0 // pred_fallthru
    _
  // Predicated region
  $region38: #{tpu_custom_call.1} parent=0 // pred_check
    _
  $region39: #{tpu_custom_call.1} parent=0 // pred_check_branch
    %35 = sbr.rel (0) target = $region41
  $region40: #{tpu_custom_call.1} parent=0 // pred_region
    _
  $region41: #{tpu_custom_call.1} parent=0 // pred_fallthru
    _
  // Predicated region
  $region42: #{tpu_custom_call.1} parent=0 // pred_check
    _
  $region43: #{tpu_custom_call.1} parent=0 // pred_check_branch
    %37 = sbr.rel (0) target = $region45
  $region44: #{tpu_custom_call.1} parent=0 // pred_region
    _
  $region45: #{tpu_custom_call.1} parent=0 // pred_fallthru
    _
  %v38 = vld [vmem:[%s0] sm:$0xff]
  %v39 = vld [vmem:[%s0 + $0x8] sm:$0x3]
  %v40 = vld [vmem:[%s1] sm:$0xff]
  %v41 = vld [vmem:[%s1 + $0x8] sm:$0x3]
  %v42 = vld [vmem:[%s2] sm:$0xff]
  %v43 = vld [vmem:[%s2 + $0x8] sm:$0x3]
  %v44 = vld [vmem:[%s3] sm:$0xff]
  %v45 = vld [vmem:[%s3 + $0x8] sm:$0xff]
  %v46 = vld [vmem:[%s3 + $0x10] sm:$0xff]
  %v47 = vld [vmem:[%s3 + $0x18] sm:$0xff]
  %v48 = vld [vmem:[%s3 + $0x20] sm:$0xff]
  %v49 = vld [vmem:[%s4] sm:$0xff]
  %v50 = vld [vmem:[%s4 + $0x8] sm:$0xff]
  %v51 = vld [vmem:[%s4 + $0x10] sm:$0xff]
  %v52 = vld [vmem:[%s4 + $0x18] sm:$0xff]
  %v53 = vld [vmem:[%s4 + $0x20] sm:$0xff]
  %v54 = vld [vmem:[%s5] sm:$0xff]
  %v55 = vld [vmem:[%s5 + $0x8] sm:$0xff]
  %v56 = vld [vmem:[%s5 + $0x10] sm:$0xff]
  %v57 = vld [vmem:[%s5 + $0x18] sm:$0xff]
  %v58 = vld [vmem:[%s5 + $0x20] sm:$0xff]
  %v59 = vld [vmem:[%s6] sm:$0xff]
  %v60 = vld [vmem:[%s6 + $0x8] sm:$0x3]
  %v61 = vld [vmem:[%s7] sm:$0x3]
  %v62 = vld [vmem:[%s8] sm:$0x3]
  %v63 = vld [vmem:[%s9] sm:$0xff]
  %v64 = vld [vmem:[%s10] sm:$0xff]
  %v65 = vld [vmem:[%s10 + $0x8] sm:$0x3]
  %vm66 = vcmask 80896
  %v68 = vsel %vm66, %v49, 0
  %v71 = vsel %vm66, %v50, 0
  %v74 = vsel %vm66, %v51, 0
  %v77 = vsel %vm66, %v52, 0
  %v80 = vsel %vm66, %v53, 0
  %vm82 = vcmask 1041408
  %v84 = vsel %vm82, %v39, 0
  %86 = vmatprep.subr.mxu0 0.0
  %87 = vmatpush1.msra.mxu0 0.0
  %88 = vmatprep.subr.mxu0 0.0
  %89 = vmatpush1.msra.mxu0 0.0
  %90 = vmatprep.subr.mxu0 0.0
  %91 = vmatpush1.msra.mxu0 0.0
  %92 = vmatprep.subr.mxu0 0.0
  %93 = vmatpush1.msra.mxu0 0.0
  %94 = vmatprep.subr.mxu0 0.0
  %95 = vmatpush1.msra.mxu0 0.0
  %96 = vmatprep.subr.mxu0 0.0
  %97 = vmatpush1.msra.mxu0 0.0
  %98 = vmatprep.subr.mxu0 0.0
  %99 = vmatpush1.msra.mxu0 0.0
  %100 = vmatprep.subr.mxu0 0.0
  %101 = vmatpush1.msra.mxu0 0.0
  %102 = vmatprep.subr.mxu0 0.0
  %103 = vmatpush1.msra.mxu0 0.0
  %104 = vmatprep.subr.mxu0 0.0
  %105 = vmatpush1.msra.mxu0 0.0
  %106 = vmatprep.subr.mxu0 0.0
  %107 = vmatpush1.msra.mxu0 0.0
  %108 = vmatprep.subr.mxu0 0.0
  %109 = vmatpush1.msra.mxu0 0.0
  %110 = vmatprep.subr.mxu0 0.0
  %111 = vmatpush1.msra.mxu0 0.0
  %112 = vmatprep.subr.mxu0 0.0
  %113 = vmatpush1.msra.mxu0 0.0
  %114 = vmatprep.subr.mxu0 0.0
  %115 = vmatpush1.msra.mxu0 %v84
  %116 = vmatprep.subr.mxu0 0.0
  %117 = vmatpush1.msra.mxu0 %v38
  %118 = vmatprep.subr.mxu0 0.0
  %119 = vmatpush2.msra.mxu0 0.0
  %120 = vmatprep.subr.mxu0 0.0
  %121 = vmatpush2.msra.mxu0 0.0
  %122 = vmatprep.subr.mxu0 0.0
  %123 = vmatpush2.msra.mxu0 0.0
  %124 = vmatprep.subr.mxu0 0.0
  %125 = vmatpush2.msra.mxu0 0.0
  %126 = vmatprep.subr.mxu0 0.0
  %127 = vmatpush2.msra.mxu0 0.0
  %128 = vmatprep.subr.mxu0 0.0
  %129 = vmatpush2.msra.mxu0 0.0
  %130 = vmatprep.subr.mxu0 0.0
  %131 = vmatpush2.msra.mxu0 0.0
  %132 = vmatprep.subr.mxu0 0.0
  %133 = vmatpush2.msra.mxu0 0.0
  %134 = vmatprep.subr.mxu0 0.0
  %135 = vmatpush2.msra.mxu0 0.0
  %136 = vmatprep.subr.mxu0 0.0
  %137 = vmatpush2.msra.mxu0 0.0
  %138 = vmatprep.subr.mxu0 0.0
  %139 = vmatpush2.msra.mxu0 0.0
  %140 = vmatprep.subr.mxu0 0.0
  %141 = vmatpush2.msra.mxu0 0.0
  %142 = vmatprep.subr.mxu0 0.0
  %143 = vmatpush2.msra.mxu0 0.0
  %144 = vmatprep.subr.mxu0 0.0
  %145 = vmatpush2.msra.mxu0 0.0
  %146 = vmatprep.subr.mxu0 0.0
  %147 = vmatpush2.msra.mxu0 0.0
  %148 = vmatprep.subr.mxu0 0.0
  %149 = vmatpush2.msra.mxu0 0.0
  %150 = vmatprep.mubr.f32.mxu0 0.0
  %151 = vmatmul.mubr.f32.gmra.mxu0 %v68
  %v152 = vpop.f32.mrf.mxu0
  %v153 = vadd.f32 0.0, %v152
  %v154 = vpop.f32.mrf.mxu0
  %155 = vmatprep.mubr.f32.mxu0 0.0
  %156 = vmatmul.mubr.f32.gmra.mxu0 %v71
  %v157 = vpop.f32.mrf.mxu0
  %v158 = vadd.f32 0.0, %v157
  %v159 = vpop.f32.mrf.mxu0
  %160 = vmatprep.mubr.f32.mxu0 0.0
  %161 = vmatmul.mubr.f32.gmra.mxu0 %v74
  %v162 = vpop.f32.mrf.mxu0
  %v163 = vadd.f32 0.0, %v162
  %v164 = vpop.f32.mrf.mxu0
  %165 = vmatprep.mubr.f32.mxu0 0.0
  %166 = vmatmul.mubr.f32.gmra.mxu0 %v77
  %v167 = vpop.f32.mrf.mxu0
  %v168 = vadd.f32 0.0, %v167
  %v169 = vpop.f32.mrf.mxu0
  %170 = vmatprep.mubr.f32.mxu0 0.0
  %171 = vmatmul.mubr.f32.gmra.mxu0 %v80
  %v172 = vpop.f32.mrf.mxu0
  %v173 = vadd.f32 0.0, %v172
  %v174 = vpop.f32.mrf.mxu0
  %175 = vdwg.mxu0
  %v177 = vsel %vm66, %v54, 0
  %v180 = vsel %vm66, %v55, 0
  %v183 = vsel %vm66, %v56, 0
  %v186 = vsel %vm66, %v57, 0
  %v189 = vsel %vm66, %v58, 0
  %191 = vmatprep.subr.mxu0 0.0
  %192 = vmatpush1.msra.mxu0 0.0
  %193 = vmatprep.subr.mxu0 0.0
  %194 = vmatpush1.msra.mxu0 0.0
  %195 = vmatprep.subr.mxu0 0.0
  %196 = vmatpush1.msra.mxu0 0.0
  %197 = vmatprep.subr.mxu0 0.0
  %198 = vmatpush1.msra.mxu0 0.0
  %199 = vmatprep.subr.mxu0 0.0
  %200 = vmatpush1.msra.mxu0 0.0
  %201 = vmatprep.subr.mxu0 0.0
  %202 = vmatpush1.msra.mxu0 0.0
  %203 = vmatprep.subr.mxu0 0.0
  %204 = vmatpush1.msra.mxu0 0.0
  %205 = vmatprep.subr.mxu0 0.0
  %206 = vmatpush1.msra.mxu0 0.0
  %207 = vmatprep.subr.mxu0 0.0
  %208 = vmatpush1.msra.mxu0 0.0
  %209 = vmatprep.subr.mxu0 0.0
  %210 = vmatpush1.msra.mxu0 0.0
  %211 = vmatprep.subr.mxu0 0.0
  %212 = vmatpush1.msra.mxu0 0.0
  %213 = vmatprep.subr.mxu0 0.0
  %214 = vmatpush1.msra.mxu0 0.0
  %215 = vmatprep.subr.mxu0 0.0
  %216 = vmatpush1.msra.mxu0 0.0
  %217 = vmatprep.subr.mxu0 0.0
  %218 = vmatpush1.msra.mxu0 0.0
  %219 = vmatprep.subr.mxu0 0.0
  %220 = vmatpush1.msra.mxu0 %v84
  %221 = vmatprep.subr.mxu0 0.0
  %222 = vmatpush1.msra.mxu0 %v38
  %223 = vmatprep.subr.mxu0 0.0
  %224 = vmatpush2.msra.mxu0 0.0
  %225 = vmatprep.subr.mxu0 0.0
  %226 = vmatpush2.msra.mxu0 0.0
  %227 = vmatprep.subr.mxu0 0.0
  %228 = vmatpush2.msra.mxu0 0.0
  %229 = vmatprep.subr.mxu0 0.0
  %230 = vmatpush2.msra.mxu0 0.0
  %231 = vmatprep.subr.mxu0 0.0
  %232 = vmatpush2.msra.mxu0 0.0
  %233 = vmatprep.subr.mxu0 0.0
  %234 = vmatpush2.msra.mxu0 0.0
  %235 = vmatprep.subr.mxu0 0.0
  %236 = vmatpush2.msra.mxu0 0.0
  %237 = vmatprep.subr.mxu0 0.0
  %238 = vmatpush2.msra.mxu0 0.0
  %239 = vmatprep.subr.mxu0 0.0
  %240 = vmatpush2.msra.mxu0 0.0
  %241 = vmatprep.subr.mxu0 0.0
  %242 = vmatpush2.msra.mxu0 0.0
  %243 = vmatprep.subr.mxu0 0.0
  %244 = vmatpush2.msra.mxu0 0.0
  %245 = vmatprep.subr.mxu0 0.0
  %246 = vmatpush2.msra.mxu0 0.0
  %247 = vmatprep.subr.mxu0 0.0
  %248 = vmatpush2.msra.mxu0 0.0
  %249 = vmatprep.subr.mxu0 0.0
  %250 = vmatpush2.msra.mxu0 0.0
  %251 = vmatprep.subr.mxu0 0.0
  %252 = vmatpush2.msra.mxu0 0.0
  %253 = vmatprep.subr.mxu0 0.0
  %254 = vmatpush2.msra.mxu0 0.0
  %255 = vmatprep.mubr.f32.mxu0 0.0
  %256 = vmatmul.mubr.f32.gmra.mxu0 %v177
  %v257 = vpop.f32.mrf.mxu0
  %v258 = vadd.f32 0.0, %v257
  %v259 = vpop.f32.mrf.mxu0
  %260 = vmatprep.mubr.f32.mxu0 0.0
  %261 = vmatmul.mubr.f32.gmra.mxu0 %v180
  %v262 = vpop.f32.mrf.mxu0
  %v263 = vadd.f32 0.0, %v262
  %v264 = vpop.f32.mrf.mxu0
  %265 = vmatprep.mubr.f32.mxu0 0.0
  %266 = vmatmul.mubr.f32.gmra.mxu0 %v183
  %v267 = vpop.f32.mrf.mxu0
  %v268 = vadd.f32 0.0, %v267
  %v269 = vpop.f32.mrf.mxu0
  %270 = vmatprep.mubr.f32.mxu0 0.0
  %271 = vmatmul.mubr.f32.gmra.mxu0 %v186
  %v272 = vpop.f32.mrf.mxu0
  %v273 = vadd.f32 0.0, %v272
  %v274 = vpop.f32.mrf.mxu0
  %275 = vmatprep.mubr.f32.mxu0 0.0
  %276 = vmatmul.mubr.f32.gmra.mxu0 %v189
  %v277 = vpop.f32.mrf.mxu0
  %v278 = vadd.f32 0.0, %v277
  %v279 = vpop.f32.mrf.mxu0
  %280 = vdwg.mxu0
  %v281 = vsub.f32 %v153, %v258
  %v282 = vsub.f32 %v158, %v263
  %v283 = vsub.f32 %v163, %v268
  %v284 = vsub.f32 %v168, %v273
  %v285 = vsub.f32 %v173, %v278
  %v286 = vmul.f32 %v281, %v281
  %v287 = vmul.f32 %v282, %v282
  %v288 = vmul.f32 %v283, %v283
  %v289 = vmul.f32 %v284, %v284
  %v290 = vmul.f32 %v285, %v285
  %vm291 = vcmask 23552
  %v292 = vsel %vm291, %v286, 0.0
  %293 = vadd.xlane.f32.xlu0 %v292
  %v294 = vpop.xlane.xlu0 %293
  %v295 = vsel %vm291, %v287, 0.0
  %296 = vadd.xlane.f32.xlu0 %v295
  %v297 = vpop.xlane.xlu0 %296
  %v298 = vsel %vm291, %v288, 0.0
  %299 = vadd.xlane.f32.xlu0 %v298
  %v300 = vpop.xlane.xlu0 %299
  %v301 = vsel %vm291, %v289, 0.0
  %302 = vadd.xlane.f32.xlu0 %v301
  %v303 = vpop.xlane.xlu0 %302
  %v304 = vsel %vm291, %v290, 0.0
  %305 = vadd.xlane.f32.xlu0 %v304
  %v306 = vpop.xlane.xlu0 %305
  %v307 = vrsqrt.pop %v294
  %v308 = vmul.f32 %v294, %v307
  %vm309 = vcmp.eq.f32.partialorder %v294, inf
  %v310 = vsel %vm309, %v294, %v308
  %vm311 = vcmp.eq.f32.partialorder %v294, 0.0
  %v312 = vand.u32 %v294, 2147483648
  %v313 = vsel %vm311, %v312, %v310
  %v314 = vrsqrt.pop %v297
  %v315 = vmul.f32 %v297, %v314
  %vm316 = vcmp.eq.f32.partialorder %v297, inf
  %v317 = vsel %vm316, %v297, %v315
  %vm318 = vcmp.eq.f32.partialorder %v297, 0.0
  %v319 = vand.u32 %v297, 2147483648
  %v320 = vsel %vm318, %v319, %v317
  %v321 = vrsqrt.pop %v300
  %v322 = vmul.f32 %v300, %v321
  %vm323 = vcmp.eq.f32.partialorder %v300, inf
  %v324 = vsel %vm323, %v300, %v322
  %vm325 = vcmp.eq.f32.partialorder %v300, 0.0
  %v326 = vand.u32 %v300, 2147483648
  %v327 = vsel %vm325, %v326, %v324
  %v328 = vrsqrt.pop %v303
  %v329 = vmul.f32 %v303, %v328
  %vm330 = vcmp.eq.f32.partialorder %v303, inf
  %v331 = vsel %vm330, %v303, %v329
  %vm332 = vcmp.eq.f32.partialorder %v303, 0.0
  %v333 = vand.u32 %v303, 2147483648
  %v334 = vsel %vm332, %v333, %v331
  %v335 = vrsqrt.pop %v306
  %v336 = vmul.f32 %v306, %v335
  %vm337 = vcmp.eq.f32.partialorder %v306, inf
  %v338 = vsel %vm337, %v306, %v336
  %vm339 = vcmp.eq.f32.partialorder %v306, 0.0
  %v340 = vand.u32 %v306, 2147483648
  %v341 = vsel %vm339, %v340, %v338
  %v342 = vlaneseq
  %v343 = vshrl.u32 %v342, 7
  %v344 = vsub.s32 0, %v343
  %v345 = vrot.slane %v63, %v344
  %v346 = vmul.f32 %v313, %v345
  %v347 = vmul.f32 %v320, %v345
  %v348 = vmul.f32 %v327, %v345
  %v349 = vmul.f32 %v334, %v345
  %v350 = vmul.f32 %v341, %v345
  %352 = vset.pattern.permute.xlu0 0
  %353 = vperm.xlu0 %352, %v44
  %v354 = vpop.permute.xlu0 %353
  %357 = vset.pattern.permute.xlu0 0
  %358 = vperm.xlu0 %357, %v45
  %v359 = vpop.permute.xlu0 %358
  %362 = vset.pattern.permute.xlu0 0
  %363 = vperm.xlu0 %362, %v46
  %v364 = vpop.permute.xlu0 %363
  %367 = vset.pattern.permute.xlu0 0
  %368 = vperm.xlu0 %367, %v47
  %v369 = vpop.permute.xlu0 %368
  %372 = vset.pattern.permute.xlu0 0
  %373 = vperm.xlu0 %372, %v48
  %v374 = vpop.permute.xlu0 %373
  %v376 = vlaneseq
  %v377 = vshrl.u32 %v376, 7
  %v378 = vsub.s32 1, %v377
  %v379 = vrot.slane %v63, %v378
  %v380 = vmul.f32 %v354, %v379
  %v381 = vmul.f32 %v359, %v379
  %v382 = vmul.f32 %v364, %v379
  %v383 = vmul.f32 %v369, %v379
  %v384 = vmul.f32 %v374, %v379
  %v385 = vadd.f32 %v346, %v380
  %v386 = vadd.f32 %v347, %v381
  %v387 = vadd.f32 %v348, %v382
  %v388 = vadd.f32 %v349, %v383
  %v389 = vadd.f32 %v350, %v384
  %v390 = vlaneseq
  %v391 = vshrl.u32 %v390, 7
  %v392 = vsub.s32 2, %v391
  %v393 = vrot.slane %v63, %v392
  %v394 = vadd.f32 %v385, %v393
  %v395 = vadd.f32 %v386, %v393
  %v396 = vadd.f32 %v387, %v393
  %v397 = vadd.f32 %v388, %v393
  %v398 = vadd.f32 %v389, %v393
  %v399 = vxor.u32 %v394, 2147483648
  %v400 = vxor.u32 %v395, 2147483648
  %v401 = vxor.u32 %v396, 2147483648
  %v402 = vxor.u32 %v397, 2147483648
  %v403 = vxor.u32 %v398, 2147483648
  %v404 = vmul.f32 %v399, 1.442695
  %v405 = vpow.pop %v404
  %v406 = vmul.f32 %v400, 1.442695
  %v407 = vpow.pop %v406
  %v408 = vmul.f32 %v401, 1.442695
  %v409 = vpow.pop %v408
  %v410 = vmul.f32 %v402, 1.442695
  %v411 = vpow.pop %v410
  %v412 = vmul.f32 %v403, 1.442695
  %v413 = vpow.pop %v412
  %v414 = vadd.f32 %v405, 1.0
  %v415 = vadd.f32 %v407, 1.0
  %v416 = vadd.f32 %v409, 1.0
  %v417 = vadd.f32 %v411, 1.0
  %v418 = vadd.f32 %v413, 1.0
  %v419 = vrcp.pop %v414
  %v420 = vmul.f32 1.0, %v419
  %v421 = vrcp.pop %v415
  %v422 = vmul.f32 1.0, %v421
  %v423 = vrcp.pop %v416
  %v424 = vmul.f32 1.0, %v423
  %v425 = vrcp.pop %v417
  %v426 = vmul.f32 1.0, %v425
  %v427 = vrcp.pop %v418
  %v428 = vmul.f32 1.0, %v427
  %v429 = vmul.f32 %v394, %v420
  %v430 = vmul.f32 %v395, %v422
  %v431 = vmul.f32 %v396, %v424
  %v432 = vmul.f32 %v397, %v426
  %v433 = vmul.f32 %v398, %v428
  %v434 = vlaneseq
  %v435 = vshrl.u32 %v434, 7
  %v436 = vsub.s32 3, %v435
  %v437 = vrot.slane %v63, %v436
  %v438 = vmul.f32 %v429, %v437
  %v439 = vmul.f32 %v430, %v437
  %v440 = vmul.f32 %v431, %v437
  %v441 = vmul.f32 %v432, %v437
  %v442 = vmul.f32 %v433, %v437
  %vm443 = vcmask 261120
  %v444 = vsel %vm443, %v438, 0.0
  %445 = vadd.xlane.f32.xlu0 %v444
  %v446 = vpop.xlane.xlu0 %445
  %v447 = vsel %vm443, %v439, 0.0
  %448 = vadd.xlane.f32.xlu0 %v447
  %v449 = vpop.xlane.xlu0 %448
  %v450 = vsel %vm443, %v440, 0.0
  %451 = vadd.xlane.f32.xlu0 %v450
  %v452 = vpop.xlane.xlu0 %451
  %v453 = vsel %vm443, %v441, 0.0
  %454 = vadd.xlane.f32.xlu0 %v453
  %v455 = vpop.xlane.xlu0 %454
  %v456 = vsel %vm443, %v442, 0.0
  %457 = vadd.xlane.f32.xlu0 %v456
  %v458 = vpop.xlane.xlu0 %457
  %v459 = vtanh.pop %v446
  %v460 = vtanh.pop %v449
  %v461 = vtanh.pop %v452
  %v462 = vtanh.pop %v455
  %v463 = vtanh.pop %v458
  %v464 = vmul.f32 %v281, %v459
  %v465 = vmul.f32 %v282, %v460
  %v466 = vmul.f32 %v283, %v461
  %v467 = vmul.f32 %v284, %v462
  %v468 = vmul.f32 %v285, %v463
  %469 = vxpose.xlu0.b32.start [1/16] %v49, 128
  %470 = vxpose.xlu0.b32.cont [2/16] %v50, 128
  %471 = vxpose.xlu0.b32.cont [3/16] %v51, 128
  %472 = vxpose.xlu0.b32.cont [4/16] %v52, 128
  %473 = vxpose.xlu0.b32.cont [5/16] %v53, 128
  %474 = vxpose.xlu0.b32.cont [6/16] 0.0, 128
  %475 = vxpose.xlu0.b32.cont [7/16] 0.0, 128
  %476 = vxpose.xlu0.b32.cont [8/16] 0.0, 128
  %477 = vxpose.xlu0.b32.cont [9/16] 0.0, 128
  %478 = vxpose.xlu0.b32.cont [10/16] 0.0, 128
  %479 = vxpose.xlu0.b32.cont [11/16] 0.0, 128
  %480 = vxpose.xlu0.b32.cont [12/16] 0.0, 128
  %481 = vxpose.xlu0.b32.cont [13/16] 0.0, 128
  %482 = vxpose.xlu0.b32.cont [14/16] 0.0, 128
  %483 = vxpose.xlu0.b32.cont [15/16] 0.0, 128
  %484 = vxpose.xlu0.b32.end [16/16] 0.0, 128
  %v485 = vpop.trf.xlu0
  %v486 = vpop.trf.xlu0
  %v487 = vpop.trf.xlu0
  %v488 = vpop.trf.xlu0
  %v489 = vpop.trf.xlu0
  %v490 = vpop.trf.xlu0
  %v491 = vpop.trf.xlu0
  %v492 = vpop.trf.xlu0
  %v493 = vpop.trf.xlu0
  %v494 = vpop.trf.xlu0
  %v495 = vpop.trf.xlu0
  %v496 = vpop.trf.xlu0
  %v497 = vpop.trf.xlu0
  %v498 = vpop.trf.xlu0
  %v499 = vpop.trf.xlu0
  %v500 = vpop.trf.xlu0
  %vm501 = vcmask 326656
  %v503 = vsel %vm501, %v485, 0
  %v506 = vsel %vm501, %v486, 0
  %508 = vmatprep.subr.mxu0 0.0
  %509 = vmatpush1.msra.mxu0 0.0
  %510 = vmatprep.subr.mxu0 0.0
  %511 = vmatpush1.msra.mxu0 0.0
  %512 = vmatprep.subr.mxu0 0.0
  %513 = vmatpush1.msra.mxu0 0.0
  %514 = vmatprep.subr.mxu0 0.0
  %515 = vmatpush1.msra.mxu0 0.0
  %516 = vmatprep.subr.mxu0 0.0
  %517 = vmatpush1.msra.mxu0 0.0
  %518 = vmatprep.subr.mxu0 0.0
  %519 = vmatpush1.msra.mxu0 0.0
  %520 = vmatprep.subr.mxu0 0.0
  %521 = vmatpush1.msra.mxu0 0.0
  %522 = vmatprep.subr.mxu0 0.0
  %523 = vmatpush1.msra.mxu0 0.0
  %524 = vmatprep.subr.mxu0 0.0
  %525 = vmatpush1.msra.mxu0 0.0
  %526 = vmatprep.subr.mxu0 0.0
  %527 = vmatpush1.msra.mxu0 0.0
  %528 = vmatprep.subr.mxu0 0.0
  %529 = vmatpush1.msra.mxu0 0.0
  %530 = vmatprep.subr.mxu0 0.0
  %531 = vmatpush1.msra.mxu0 %v468
  %532 = vmatprep.subr.mxu0 0.0
  %533 = vmatpush1.msra.mxu0 %v467
  %534 = vmatprep.subr.mxu0 0.0
  %535 = vmatpush1.msra.mxu0 %v466
  %536 = vmatprep.subr.mxu0 0.0
  %537 = vmatpush1.msra.mxu0 %v465
  %538 = vmatprep.subr.mxu0 0.0
  %539 = vmatpush1.msra.mxu0 %v464
  %540 = vmatprep.subr.mxu0 0.0
  %541 = vmatpush2.msra.mxu0 0.0
  %542 = vmatprep.subr.mxu0 0.0
  %543 = vmatpush2.msra.mxu0 0.0
  %544 = vmatprep.subr.mxu0 0.0
  %545 = vmatpush2.msra.mxu0 0.0
  %546 = vmatprep.subr.mxu0 0.0
  %547 = vmatpush2.msra.mxu0 0.0
  %548 = vmatprep.subr.mxu0 0.0
  %549 = vmatpush2.msra.mxu0 0.0
  %550 = vmatprep.subr.mxu0 0.0
  %551 = vmatpush2.msra.mxu0 0.0
  %552 = vmatprep.subr.mxu0 0.0
  %553 = vmatpush2.msra.mxu0 0.0
  %554 = vmatprep.subr.mxu0 0.0
  %555 = vmatpush2.msra.mxu0 0.0
  %556 = vmatprep.subr.mxu0 0.0
  %557 = vmatpush2.msra.mxu0 0.0
  %558 = vmatprep.subr.mxu0 0.0
  %559 = vmatpush2.msra.mxu0 0.0
  %560 = vmatprep.subr.mxu0 0.0
  %561 = vmatpush2.msra.mxu0 0.0
  %562 = vmatprep.subr.mxu0 0.0
  %563 = vmatpush2.msra.mxu0 0.0
  %564 = vmatprep.subr.mxu0 0.0
  %565 = vmatpush2.msra.mxu0 0.0
  %566 = vmatprep.subr.mxu0 0.0
  %567 = vmatpush2.msra.mxu0 0.0
  %568 = vmatprep.subr.mxu0 0.0
  %569 = vmatpush2.msra.mxu0 0.0
  %570 = vmatprep.subr.mxu0 0.0
  %571 = vmatpush2.msra.mxu0 0.0
  %572 = vmatprep.mubr.f32.mxu0 0.0
  %573 = vmatmul.mubr.f32.gmra.mxu0 %v503
  %v574 = vpop.f32.mrf.mxu0
  %v575 = vadd.f32 0.0, %v574
  %v576 = vpop.f32.mrf.mxu0
  %577 = vmatprep.mubr.f32.mxu0 0.0
  %578 = vmatmul.mubr.f32.gmra.mxu0 %v506
  %v579 = vpop.f32.mrf.mxu0
  %v580 = vadd.f32 0.0, %v579
  %v581 = vpop.f32.mrf.mxu0
  %582 = vdwg.mxu0
  %584 = vset.pattern.permute.xlu0 0
  %585 = vperm.xlu0 %584, %v59
  %v586 = vpop.permute.xlu0 %585
  %589 = vset.pattern.permute.xlu0 0
  %590 = vperm.xlu0 %589, %v60
  %v591 = vpop.permute.xlu0 %590
  %v593 = vmul.f32 %v575, %v586
  %v594 = vmul.f32 %v580, %v591
  %v595 = vadd.f32 %v38, %v593
  %v596 = vadd.f32 %v39, %v594
  %598 = vset.pattern.permute.xlu0 0
  %599 = vperm.xlu0 %598, %v42
  %v600 = vpop.permute.xlu0 %599
  %603 = vset.pattern.permute.xlu0 0
  %604 = vperm.xlu0 %603, %v43
  %v605 = vpop.permute.xlu0 %604
  %v607 = vlaneseq
  %v608 = vshrl.u32 %v607, 7
  %v609 = vsub.s32 4, %v608
  %v610 = vrot.slane %v63, %v609
  %v611 = vmul.f32 %v600, %v610
  %v612 = vmul.f32 %v605, %v610
  %v613 = vlaneseq
  %v614 = vshrl.u32 %v613, 7
  %v615 = vsub.s32 5, %v614
  %v616 = vrot.slane %v63, %v615
  %v617 = vadd.f32 %v611, %v616
  %v618 = vadd.f32 %v612, %v616
  %v619 = vxor.u32 %v617, 2147483648
  %v620 = vxor.u32 %v618, 2147483648
  %v621 = vmul.f32 %v619, 1.442695
  %v622 = vpow.pop %v621
  %v623 = vmul.f32 %v620, 1.442695
  %v624 = vpow.pop %v623
  %v625 = vadd.f32 %v622, 1.0
  %v626 = vadd.f32 %v624, 1.0
  %v627 = vrcp.pop %v625
  %v628 = vmul.f32 1.0, %v627
  %v629 = vrcp.pop %v626
  %v630 = vmul.f32 1.0, %v629
  %v631 = vmul.f32 %v617, %v628
  %v632 = vmul.f32 %v618, %v630
  %v633 = vlaneseq
  %v634 = vshrl.u32 %v633, 7
  %v635 = vsub.s32 6, %v634
  %v636 = vrot.slane %v63, %v635
  %v637 = vmul.f32 %v631, %v636
  %v638 = vmul.f32 %v632, %v636
  %v639 = vsel %vm443, %v637, 0.0
  %640 = vadd.xlane.f32.xlu0 %v639
  %v641 = vpop.xlane.xlu0 %640
  %vm642 = vcmask 254976
  %v643 = vsel %vm642, %v638, 0.0
  %644 = vadd.xlane.f32.xlu0 %v643
  %v645 = vpop.xlane.xlu0 %644
  %v646 = vlaneseq
  %v647 = vshrl.u32 %v646, 7
  %v648 = vsub.s32 7, %v647
  %v649 = vrot.slane %v63, %v648
  %v650 = vadd.f32 %v641, %v649
  %v651 = vadd.f32 %v645, %v649
  %653 = vset.pattern.permute.xlu0 0
  %654 = vperm.xlu0 %653, %v650
  %v655 = vpop.permute.xlu0 %654
  %658 = vset.pattern.permute.xlu0 0
  %659 = vperm.xlu0 %658, %v651
  %v660 = vpop.permute.xlu0 %659
  %v662 = vmul.f32 %v40, %v655
  %v663 = vmul.f32 %v41, %v660
  %v664 = vadd.f32 %v595, %v662
  %v665 = vadd.f32 %v596, %v663
  %v667 = vsel %vm66, %v61, 0
  %v670 = vsel %vm82, %v665, 0
  %672 = vmatprep.subr.mxu0 0.0
  %673 = vmatpush1.msra.mxu0 0.0
  %674 = vmatprep.subr.mxu0 0.0
  %675 = vmatpush1.msra.mxu0 0.0
  %676 = vmatprep.subr.mxu0 0.0
  %677 = vmatpush1.msra.mxu0 0.0
  %678 = vmatprep.subr.mxu0 0.0
  %679 = vmatpush1.msra.mxu0 0.0
  %680 = vmatprep.subr.mxu0 0.0
  %681 = vmatpush1.msra.mxu0 0.0
  %682 = vmatprep.subr.mxu0 0.0
  %683 = vmatpush1.msra.mxu0 0.0
  %684 = vmatprep.subr.mxu0 0.0
  %685 = vmatpush1.msra.mxu0 0.0
  %686 = vmatprep.subr.mxu0 0.0
  %687 = vmatpush1.msra.mxu0 0.0
  %688 = vmatprep.subr.mxu0 0.0
  %689 = vmatpush1.msra.mxu0 0.0
  %690 = vmatprep.subr.mxu0 0.0
  %691 = vmatpush1.msra.mxu0 0.0
  %692 = vmatprep.subr.mxu0 0.0
  %693 = vmatpush1.msra.mxu0 0.0
  %694 = vmatprep.subr.mxu0 0.0
  %695 = vmatpush1.msra.mxu0 0.0
  %696 = vmatprep.subr.mxu0 0.0
  %697 = vmatpush1.msra.mxu0 0.0
  %698 = vmatprep.subr.mxu0 0.0
  %699 = vmatpush1.msra.mxu0 0.0
  %700 = vmatprep.subr.mxu0 0.0
  %701 = vmatpush1.msra.mxu0 %v670
  %702 = vmatprep.subr.mxu0 0.0
  %703 = vmatpush1.msra.mxu0 %v664
  %704 = vmatprep.subr.mxu0 0.0
  %705 = vmatpush2.msra.mxu0 0.0
  %706 = vmatprep.subr.mxu0 0.0
  %707 = vmatpush2.msra.mxu0 0.0
  %708 = vmatprep.subr.mxu0 0.0
  %709 = vmatpush2.msra.mxu0 0.0
  %710 = vmatprep.subr.mxu0 0.0
  %711 = vmatpush2.msra.mxu0 0.0
  %712 = vmatprep.subr.mxu0 0.0
  %713 = vmatpush2.msra.mxu0 0.0
  %714 = vmatprep.subr.mxu0 0.0
  %715 = vmatpush2.msra.mxu0 0.0
  %716 = vmatprep.subr.mxu0 0.0
  %717 = vmatpush2.msra.mxu0 0.0
  %718 = vmatprep.subr.mxu0 0.0
  %719 = vmatpush2.msra.mxu0 0.0
  %720 = vmatprep.subr.mxu0 0.0
  %721 = vmatpush2.msra.mxu0 0.0
  %722 = vmatprep.subr.mxu0 0.0
  %723 = vmatpush2.msra.mxu0 0.0
  %724 = vmatprep.subr.mxu0 0.0
  %725 = vmatpush2.msra.mxu0 0.0
  %726 = vmatprep.subr.mxu0 0.0
  %727 = vmatpush2.msra.mxu0 0.0
  %728 = vmatprep.subr.mxu0 0.0
  %729 = vmatpush2.msra.mxu0 0.0
  %730 = vmatprep.subr.mxu0 0.0
  %731 = vmatpush2.msra.mxu0 0.0
  %732 = vmatprep.subr.mxu0 0.0
  %733 = vmatpush2.msra.mxu0 0.0
  %734 = vmatprep.subr.mxu0 0.0
  %735 = vmatpush2.msra.mxu0 0.0
  %736 = vmatprep.mubr.f32.mxu0 0.0
  %737 = vmatmul.mubr.f32.gmra.mxu0 %v667
  %v738 = vpop.f32.mrf.mxu0
  %v739 = vadd.f32 0.0, %v738
  %v740 = vpop.f32.mrf.mxu0
  %741 = vdwg.mxu0
  %v742 = vmul.f32 %v739, 0.2
  %743 = vxpose.xlu0.b32.start [1/16] %v61, 128
  %744 = vxpose.xlu0.b32.cont [2/16] 0.0, 128
  %745 = vxpose.xlu0.b32.cont [3/16] 0.0, 128
  %746 = vxpose.xlu0.b32.cont [4/16] 0.0, 128
  %747 = vxpose.xlu0.b32.cont [5/16] 0.0, 128
  %748 = vxpose.xlu0.b32.cont [6/16] 0.0, 128
  %749 = vxpose.xlu0.b32.cont [7/16] 0.0, 128
  %750 = vxpose.xlu0.b32.cont [8/16] 0.0, 128
  %751 = vxpose.xlu0.b32.cont [9/16] 0.0, 128
  %752 = vxpose.xlu0.b32.cont [10/16] 0.0, 128
  %753 = vxpose.xlu0.b32.cont [11/16] 0.0, 128
  %754 = vxpose.xlu0.b32.cont [12/16] 0.0, 128
  %755 = vxpose.xlu0.b32.cont [13/16] 0.0, 128
  %756 = vxpose.xlu0.b32.cont [14/16] 0.0, 128
  %757 = vxpose.xlu0.b32.cont [15/16] 0.0, 128
  %758 = vxpose.xlu0.b32.end [16/16] 0.0, 128
  %v759 = vpop.trf.xlu0
  %v760 = vpop.trf.xlu0
  %v761 = vpop.trf.xlu0
  %v762 = vpop.trf.xlu0
  %v763 = vpop.trf.xlu0
  %v764 = vpop.trf.xlu0
  %v765 = vpop.trf.xlu0
  %v766 = vpop.trf.xlu0
  %v767 = vpop.trf.xlu0
  %v768 = vpop.trf.xlu0
  %v769 = vpop.trf.xlu0
  %v770 = vpop.trf.xlu0
  %v771 = vpop.trf.xlu0
  %v772 = vpop.trf.xlu0
  %v773 = vpop.trf.xlu0
  %v774 = vpop.trf.xlu0
  %vm775 = vcmask 15360
  %v777 = vsel %vm775, %v759, 0
  %v780 = vsel %vm775, %v760, 0
  %v783 = vsel %vm82, %v742, 0
  %785 = vmatprep.subr.mxu0 0.0
  %786 = vmatpush1.msra.mxu0 0.0
  %787 = vmatprep.subr.mxu0 0.0
  %788 = vmatpush1.msra.mxu0 0.0
  %789 = vmatprep.subr.mxu0 0.0
  %790 = vmatpush1.msra.mxu0 0.0
  %791 = vmatprep.subr.mxu0 0.0
  %792 = vmatpush1.msra.mxu0 0.0
  %793 = vmatprep.subr.mxu0 0.0
  %794 = vmatpush1.msra.mxu0 0.0
  %795 = vmatprep.subr.mxu0 0.0
  %796 = vmatpush1.msra.mxu0 0.0
  %797 = vmatprep.subr.mxu0 0.0
  %798 = vmatpush1.msra.mxu0 0.0
  %799 = vmatprep.subr.mxu0 0.0
  %800 = vmatpush1.msra.mxu0 0.0
  %801 = vmatprep.subr.mxu0 0.0
  %802 = vmatpush1.msra.mxu0 0.0
  %803 = vmatprep.subr.mxu0 0.0
  %804 = vmatpush1.msra.mxu0 0.0
  %805 = vmatprep.subr.mxu0 0.0
  %806 = vmatpush1.msra.mxu0 0.0
  %807 = vmatprep.subr.mxu0 0.0
  %808 = vmatpush1.msra.mxu0 0.0
  %809 = vmatprep.subr.mxu0 0.0
  %810 = vmatpush1.msra.mxu0 0.0
  %811 = vmatprep.subr.mxu0 0.0
  %812 = vmatpush1.msra.mxu0 0.0
  %813 = vmatprep.subr.mxu0 0.0
  %814 = vmatpush1.msra.mxu0 0.0
  %815 = vmatprep.subr.mxu0 0.0
  %816 = vmatpush1.msra.mxu0 %v783
  %817 = vmatprep.subr.mxu0 0.0
  %818 = vmatpush2.msra.mxu0 0.0
  %819 = vmatprep.subr.mxu0 0.0
  %820 = vmatpush2.msra.mxu0 0.0
  %821 = vmatprep.subr.mxu0 0.0
  %822 = vmatpush2.msra.mxu0 0.0
  %823 = vmatprep.subr.mxu0 0.0
  %824 = vmatpush2.msra.mxu0 0.0
  %825 = vmatprep.subr.mxu0 0.0
  %826 = vmatpush2.msra.mxu0 0.0
  %827 = vmatprep.subr.mxu0 0.0
  %828 = vmatpush2.msra.mxu0 0.0
  %829 = vmatprep.subr.mxu0 0.0
  %830 = vmatpush2.msra.mxu0 0.0
  %831 = vmatprep.subr.mxu0 0.0
  %832 = vmatpush2.msra.mxu0 0.0
  %833 = vmatprep.subr.mxu0 0.0
  %834 = vmatpush2.msra.mxu0 0.0
  %835 = vmatprep.subr.mxu0 0.0
  %836 = vmatpush2.msra.mxu0 0.0
  %837 = vmatprep.subr.mxu0 0.0
  %838 = vmatpush2.msra.mxu0 0.0
  %839 = vmatprep.subr.mxu0 0.0
  %840 = vmatpush2.msra.mxu0 0.0
  %841 = vmatprep.subr.mxu0 0.0
  %842 = vmatpush2.msra.mxu0 0.0
  %843 = vmatprep.subr.mxu0 0.0
  %844 = vmatpush2.msra.mxu0 0.0
  %845 = vmatprep.subr.mxu0 0.0
  %846 = vmatpush2.msra.mxu0 0.0
  %847 = vmatprep.subr.mxu0 0.0
  %848 = vmatpush2.msra.mxu0 0.0
  %849 = vmatprep.mubr.f32.mxu0 0.0
  %850 = vmatmul.mubr.f32.gmra.mxu0 %v777
  %v851 = vpop.f32.mrf.mxu0
  %v852 = vadd.f32 0.0, %v851
  %v853 = vpop.f32.mrf.mxu0
  %854 = vmatprep.mubr.f32.mxu0 0.0
  %855 = vmatmul.mubr.f32.gmra.mxu0 %v780
  %v856 = vpop.f32.mrf.mxu0
  %v857 = vadd.f32 0.0, %v856
  %v858 = vpop.f32.mrf.mxu0
  %859 = vdwg.mxu0
  %v860 = vsub.f32 %v664, %v852
  %v861 = vsub.f32 %v665, %v857
  %v862 = vmul.f32 %v860, %v860
  %v863 = vmul.f32 %v861, %v861
  %v864 = vsel %vm291, %v862, 0.0
  %865 = vadd.xlane.f32.xlu0 %v864
  %v866 = vpop.xlane.xlu0 %865
  %vm867 = vcmask 17408
  %v868 = vsel %vm867, %v863, 0.0
  %869 = vadd.xlane.f32.xlu0 %v868
  %v870 = vpop.xlane.xlu0 %869
  %v872 = vsel %vm82, %v870, 0
  %874 = vmatprep.subr.mxu0 0.0
  %875 = vmatpush1.msra.mxu0 0.0
  %876 = vmatprep.subr.mxu0 0.0
  %877 = vmatpush1.msra.mxu0 0.0
  %878 = vmatprep.subr.mxu0 0.0
  %879 = vmatpush1.msra.mxu0 0.0
  %880 = vmatprep.subr.mxu0 0.0
  %881 = vmatpush1.msra.mxu0 0.0
  %882 = vmatprep.subr.mxu0 0.0
  %883 = vmatpush1.msra.mxu0 0.0
  %884 = vmatprep.subr.mxu0 0.0
  %885 = vmatpush1.msra.mxu0 0.0
  %886 = vmatprep.subr.mxu0 0.0
  %887 = vmatpush1.msra.mxu0 0.0
  %888 = vmatprep.subr.mxu0 0.0
  %889 = vmatpush1.msra.mxu0 0.0
  %890 = vmatprep.subr.mxu0 0.0
  %891 = vmatpush1.msra.mxu0 0.0
  %892 = vmatprep.subr.mxu0 0.0
  %893 = vmatpush1.msra.mxu0 0.0
  %894 = vmatprep.subr.mxu0 0.0
  %895 = vmatpush1.msra.mxu0 0.0
  %896 = vmatprep.subr.mxu0 0.0
  %897 = vmatpush1.msra.mxu0 0.0
  %898 = vmatprep.subr.mxu0 0.0
  %899 = vmatpush1.msra.mxu0 0.0
  %900 = vmatprep.subr.mxu0 0.0
  %901 = vmatpush1.msra.mxu0 0.0
  %902 = vmatprep.subr.mxu0 0.0
  %903 = vmatpush1.msra.mxu0 %v872
  %904 = vmatprep.subr.mxu0 0.0
  %905 = vmatpush1.msra.mxu0 %v866
  %906 = vmatprep.subr.mxu0 0.0
  %907 = vmatpush2.msra.mxu0 0.0
  %908 = vmatprep.subr.mxu0 0.0
  %909 = vmatpush2.msra.mxu0 0.0
  %910 = vmatprep.subr.mxu0 0.0
  %911 = vmatpush2.msra.mxu0 0.0
  %912 = vmatprep.subr.mxu0 0.0
  %913 = vmatpush2.msra.mxu0 0.0
  %914 = vmatprep.subr.mxu0 0.0
  %915 = vmatpush2.msra.mxu0 0.0
  %916 = vmatprep.subr.mxu0 0.0
  %917 = vmatpush2.msra.mxu0 0.0
  %918 = vmatprep.subr.mxu0 0.0
  %919 = vmatpush2.msra.mxu0 0.0
  %920 = vmatprep.subr.mxu0 0.0
  %921 = vmatpush2.msra.mxu0 0.0
  %922 = vmatprep.subr.mxu0 0.0
  %923 = vmatpush2.msra.mxu0 0.0
  %924 = vmatprep.subr.mxu0 0.0
  %925 = vmatpush2.msra.mxu0 0.0
  %926 = vmatprep.subr.mxu0 0.0
  %927 = vmatpush2.msra.mxu0 0.0
  %928 = vmatprep.subr.mxu0 0.0
  %929 = vmatpush2.msra.mxu0 0.0
  %930 = vmatprep.subr.mxu0 0.0
  %931 = vmatpush2.msra.mxu0 0.0
  %932 = vmatprep.subr.mxu0 0.0
  %933 = vmatpush2.msra.mxu0 0.0
  %934 = vmatprep.subr.mxu0 0.0
  %935 = vmatpush2.msra.mxu0 0.0
  %936 = vmatprep.subr.mxu0 0.0
  %937 = vmatpush2.msra.mxu0 0.0
  %938 = vmatprep.mubr.f32.mxu0 0.0
  %939 = vmatmul.mubr.f32.gmra.mxu0 %v667
  %v940 = vpop.f32.mrf.mxu0
  %v941 = vadd.f32 0.0, %v940
  %v942 = vpop.f32.mrf.mxu0
  %943 = vdwg.mxu0
  %v944 = vrsqrt.pop %v941
  %v945 = vmul.f32 %v941, %v944
  %vm946 = vcmp.eq.f32.partialorder %v941, inf
  %v947 = vsel %vm946, %v941, %v945
  %vm948 = vcmp.eq.f32.partialorder %v941, 0.0
  %v949 = vand.u32 %v941, 2147483648
  %v950 = vsel %vm948, %v949, %v947
  %951 = vxpose.xlu0.b32.start [1/16] %v62, 128
  %952 = vxpose.xlu0.b32.cont [2/16] 0.0, 128
  %953 = vxpose.xlu0.b32.cont [3/16] 0.0, 128
  %954 = vxpose.xlu0.b32.cont [4/16] 0.0, 128
  %955 = vxpose.xlu0.b32.cont [5/16] 0.0, 128
  %956 = vxpose.xlu0.b32.cont [6/16] 0.0, 128
  %957 = vxpose.xlu0.b32.cont [7/16] 0.0, 128
  %958 = vxpose.xlu0.b32.cont [8/16] 0.0, 128
  %959 = vxpose.xlu0.b32.cont [9/16] 0.0, 128
  %960 = vxpose.xlu0.b32.cont [10/16] 0.0, 128
  %961 = vxpose.xlu0.b32.cont [11/16] 0.0, 128
  %962 = vxpose.xlu0.b32.cont [12/16] 0.0, 128
  %963 = vxpose.xlu0.b32.cont [13/16] 0.0, 128
  %964 = vxpose.xlu0.b32.cont [14/16] 0.0, 128
  %965 = vxpose.xlu0.b32.cont [15/16] 0.0, 128
  %966 = vxpose.xlu0.b32.end [16/16] 0.0, 128
  %v967 = vpop.trf.xlu0
  %v968 = vpop.trf.xlu0
  %v969 = vpop.trf.xlu0
  %v970 = vpop.trf.xlu0
  %v971 = vpop.trf.xlu0
  %v972 = vpop.trf.xlu0
  %v973 = vpop.trf.xlu0
  %v974 = vpop.trf.xlu0
  %v975 = vpop.trf.xlu0
  %v976 = vpop.trf.xlu0
  %v977 = vpop.trf.xlu0
  %v978 = vpop.trf.xlu0
  %v979 = vpop.trf.xlu0
  %v980 = vpop.trf.xlu0
  %v981 = vpop.trf.xlu0
  %v982 = vpop.trf.xlu0
  %v984 = vsel %vm775, %v967, 0
  %v987 = vsel %vm775, %v968, 0
  %v990 = vsel %vm82, %v950, 0
  %992 = vmatprep.subr.mxu0 0.0
  %993 = vmatpush1.msra.mxu0 0.0
  %994 = vmatprep.subr.mxu0 0.0
  %995 = vmatpush1.msra.mxu0 0.0
  %996 = vmatprep.subr.mxu0 0.0
  %997 = vmatpush1.msra.mxu0 0.0
  %998 = vmatprep.subr.mxu0 0.0
  %999 = vmatpush1.msra.mxu0 0.0
  %1000 = vmatprep.subr.mxu0 0.0
  %1001 = vmatpush1.msra.mxu0 0.0
  %1002 = vmatprep.subr.mxu0 0.0
  %1003 = vmatpush1.msra.mxu0 0.0
  %1004 = vmatprep.subr.mxu0 0.0
  %1005 = vmatpush1.msra.mxu0 0.0
  %1006 = vmatprep.subr.mxu0 0.0
  %1007 = vmatpush1.msra.mxu0 0.0
  %1008 = vmatprep.subr.mxu0 0.0
  %1009 = vmatpush1.msra.mxu0 0.0
  %1010 = vmatprep.subr.mxu0 0.0
  %1011 = vmatpush1.msra.mxu0 0.0
  %1012 = vmatprep.subr.mxu0 0.0
  %1013 = vmatpush1.msra.mxu0 0.0
  %1014 = vmatprep.subr.mxu0 0.0
  %1015 = vmatpush1.msra.mxu0 0.0
  %1016 = vmatprep.subr.mxu0 0.0
  %1017 = vmatpush1.msra.mxu0 0.0
  %1018 = vmatprep.subr.mxu0 0.0
  %1019 = vmatpush1.msra.mxu0 0.0
  %1020 = vmatprep.subr.mxu0 0.0
  %1021 = vmatpush1.msra.mxu0 0.0
  %1022 = vmatprep.subr.mxu0 0.0
  %1023 = vmatpush1.msra.mxu0 %v990
  %1024 = vmatprep.subr.mxu0 0.0
  %1025 = vmatpush2.msra.mxu0 0.0
  %1026 = vmatprep.subr.mxu0 0.0
  %1027 = vmatpush2.msra.mxu0 0.0
  %1028 = vmatprep.subr.mxu0 0.0
  %1029 = vmatpush2.msra.mxu0 0.0
  %1030 = vmatprep.subr.mxu0 0.0
  %1031 = vmatpush2.msra.mxu0 0.0
  %1032 = vmatprep.subr.mxu0 0.0
  %1033 = vmatpush2.msra.mxu0 0.0
  %1034 = vmatprep.subr.mxu0 0.0
  %1035 = vmatpush2.msra.mxu0 0.0
  %1036 = vmatprep.subr.mxu0 0.0
  %1037 = vmatpush2.msra.mxu0 0.0
  %1038 = vmatprep.subr.mxu0 0.0
  %1039 = vmatpush2.msra.mxu0 0.0
  %1040 = vmatprep.subr.mxu0 0.0
  %1041 = vmatpush2.msra.mxu0 0.0
  %1042 = vmatprep.subr.mxu0 0.0
  %1043 = vmatpush2.msra.mxu0 0.0
  %1044 = vmatprep.subr.mxu0 0.0
  %1045 = vmatpush2.msra.mxu0 0.0
  %1046 = vmatprep.subr.mxu0 0.0
  %1047 = vmatpush2.msra.mxu0 0.0
  %1048 = vmatprep.subr.mxu0 0.0
  %1049 = vmatpush2.msra.mxu0 0.0
  %1050 = vmatprep.subr.mxu0 0.0
  %1051 = vmatpush2.msra.mxu0 0.0
  %1052 = vmatprep.subr.mxu0 0.0
  %1053 = vmatpush2.msra.mxu0 0.0
  %1054 = vmatprep.subr.mxu0 0.0
  %1055 = vmatpush2.msra.mxu0 0.0
  %1056 = vmatprep.mubr.f32.mxu0 0.0
  %1057 = vmatmul.mubr.f32.gmra.mxu0 %v984
  %v1058 = vpop.f32.mrf.mxu0
  %v1059 = vadd.f32 1e-05, %v1058
  %v1060 = vpop.f32.mrf.mxu0
  %1061 = vmatprep.mubr.f32.mxu0 0.0
  %1062 = vmatmul.mubr.f32.gmra.mxu0 %v987
  %v1063 = vpop.f32.mrf.mxu0
  %v1064 = vadd.f32 1e-05, %v1063
  %v1065 = vpop.f32.mrf.mxu0
  %1066 = vdwg.mxu0
  %v1067 = vrcp.pop %v1059
  %v1068 = vrcp.pop %v1064
  %v1069 = vmul.f32 %v1059, %v1067
  %v1070 = vmul.f32 %v1064, %v1068
  %v1071 = vsub.f32 2.0, %v1069
  %v1072 = vsub.f32 2.0, %v1070
  %v1073 = vmul.f32 %v1067, %v1071
  %v1074 = vmul.f32 %v1068, %v1072
  %1076 = vset.pattern.permute.xlu0 0
  %1077 = vperm.xlu0 %1076, %v1073
  %v1078 = vpop.permute.xlu0 %1077
  %1081 = vset.pattern.permute.xlu0 0
  %1082 = vperm.xlu0 %1081, %v1074
  %v1083 = vpop.permute.xlu0 %1082
  %v1085 = vmul.f32 %v860, %v1078
  %v1086 = vmul.f32 %v861, %v1083
  %1088 = vset.pattern.permute.xlu0 0
  %1089 = vperm.xlu0 %1088, %v64
  %v1090 = vpop.permute.xlu0 %1089
  %1093 = vset.pattern.permute.xlu0 0
  %1094 = vperm.xlu0 %1093, %v65
  %v1095 = vpop.permute.xlu0 %1094
  %v1097 = vmul.f32 %v1090, %v1085
  %v1098 = vmul.f32 %v1095, %v1086
  %v1099 = vadd.f32 %v1097, %v852
  %v1100 = vadd.f32 %v1098, %v857
  %s1101 = scalar_lea.vmem %s9, 8
  %v1102 = vld [vmem:[%s1101] sm:$0xff]
  %s1103 = scalar_lea.vmem %s10, 16
  %v1104 = vld [vmem:[%s1103] sm:$0xff]
  %v1105 = vld [vmem:[%s1103 + $0x8] sm:$0x3]
  %v1107 = vsel %vm82, %v1100, 0
  %1109 = vmatprep.subr.mxu0 0.0
  %1110 = vmatpush1.msra.mxu0 0.0
  %1111 = vmatprep.subr.mxu0 0.0
  %1112 = vmatpush1.msra.mxu0 0.0
  %1113 = vmatprep.subr.mxu0 0.0
  %1114 = vmatpush1.msra.mxu0 0.0
  %1115 = vmatprep.subr.mxu0 0.0
  %1116 = vmatpush1.msra.mxu0 0.0
  %1117 = vmatprep.subr.mxu0 0.0
  %1118 = vmatpush1.msra.mxu0 0.0
  %1119 = vmatprep.subr.mxu0 0.0
  %1120 = vmatpush1.msra.mxu0 0.0
  %1121 = vmatprep.subr.mxu0 0.0
  %1122 = vmatpush1.msra.mxu0 0.0
  %1123 = vmatprep.subr.mxu0 0.0
  %1124 = vmatpush1.msra.mxu0 0.0
  %1125 = vmatprep.subr.mxu0 0.0
  %1126 = vmatpush1.msra.mxu0 0.0
  %1127 = vmatprep.subr.mxu0 0.0
  %1128 = vmatpush1.msra.mxu0 0.0
  %1129 = vmatprep.subr.mxu0 0.0
  %1130 = vmatpush1.msra.mxu0 0.0
  %1131 = vmatprep.subr.mxu0 0.0
  %1132 = vmatpush1.msra.mxu0 0.0
  %1133 = vmatprep.subr.mxu0 0.0
  %1134 = vmatpush1.msra.mxu0 0.0
  %1135 = vmatprep.subr.mxu0 0.0
  %1136 = vmatpush1.msra.mxu0 0.0
  %1137 = vmatprep.subr.mxu0 0.0
  %1138 = vmatpush1.msra.mxu0 %v1107
  %1139 = vmatprep.subr.mxu0 0.0
  %1140 = vmatpush1.msra.mxu0 %v1099
  %1141 = vmatprep.subr.mxu0 0.0
  %1142 = vmatpush2.msra.mxu0 0.0
  %1143 = vmatprep.subr.mxu0 0.0
  %1144 = vmatpush2.msra.mxu0 0.0
  %1145 = vmatprep.subr.mxu0 0.0
  %1146 = vmatpush2.msra.mxu0 0.0
  %1147 = vmatprep.subr.mxu0 0.0
  %1148 = vmatpush2.msra.mxu0 0.0
  %1149 = vmatprep.subr.mxu0 0.0
  %1150 = vmatpush2.msra.mxu0 0.0
  %1151 = vmatprep.subr.mxu0 0.0
  %1152 = vmatpush2.msra.mxu0 0.0
  %1153 = vmatprep.subr.mxu0 0.0
  %1154 = vmatpush2.msra.mxu0 0.0
  %1155 = vmatprep.subr.mxu0 0.0
  %1156 = vmatpush2.msra.mxu0 0.0
  %1157 = vmatprep.subr.mxu0 0.0
  %1158 = vmatpush2.msra.mxu0 0.0
  %1159 = vmatprep.subr.mxu0 0.0
  %1160 = vmatpush2.msra.mxu0 0.0
  %1161 = vmatprep.subr.mxu0 0.0
  %1162 = vmatpush2.msra.mxu0 0.0
  %1163 = vmatprep.subr.mxu0 0.0
  %1164 = vmatpush2.msra.mxu0 0.0
  %1165 = vmatprep.subr.mxu0 0.0
  %1166 = vmatpush2.msra.mxu0 0.0
  %1167 = vmatprep.subr.mxu0 0.0
  %1168 = vmatpush2.msra.mxu0 0.0
  %1169 = vmatprep.subr.mxu0 0.0
  %1170 = vmatpush2.msra.mxu0 0.0
  %1171 = vmatprep.subr.mxu0 0.0
  %1172 = vmatpush2.msra.mxu0 0.0
  %1173 = vmatprep.mubr.f32.mxu0 0.0
  %1174 = vmatmul.mubr.f32.gmra.mxu0 %v68
  %v1175 = vpop.f32.mrf.mxu0
  %v1176 = vadd.f32 0.0, %v1175
  %v1177 = vpop.f32.mrf.mxu0
  %1178 = vmatprep.mubr.f32.mxu0 0.0
  %1179 = vmatmul.mubr.f32.gmra.mxu0 %v71
  %v1180 = vpop.f32.mrf.mxu0
  %v1181 = vadd.f32 0.0, %v1180
  %v1182 = vpop.f32.mrf.mxu0
  %1183 = vmatprep.mubr.f32.mxu0 0.0
  %1184 = vmatmul.mubr.f32.gmra.mxu0 %v74
  %v1185 = vpop.f32.mrf.mxu0
  %v1186 = vadd.f32 0.0, %v1185
  %v1187 = vpop.f32.mrf.mxu0
  %1188 = vmatprep.mubr.f32.mxu0 0.0
  %1189 = vmatmul.mubr.f32.gmra.mxu0 %v77
  %v1190 = vpop.f32.mrf.mxu0
  %v1191 = vadd.f32 0.0, %v1190
  %v1192 = vpop.f32.mrf.mxu0
  %1193 = vmatprep.mubr.f32.mxu0 0.0
  %1194 = vmatmul.mubr.f32.gmra.mxu0 %v80
  %v1195 = vpop.f32.mrf.mxu0
  %v1196 = vadd.f32 0.0, %v1195
  %v1197 = vpop.f32.mrf.mxu0
  %1198 = vdwg.mxu0
  %1199 = vmatprep.subr.mxu0 0.0
  %1200 = vmatpush1.msra.mxu0 0.0
  %1201 = vmatprep.subr.mxu0 0.0
  %1202 = vmatpush1.msra.mxu0 0.0
  %1203 = vmatprep.subr.mxu0 0.0
  %1204 = vmatpush1.msra.mxu0 0.0
  %1205 = vmatprep.subr.mxu0 0.0
  %1206 = vmatpush1.msra.mxu0 0.0
  %1207 = vmatprep.subr.mxu0 0.0
  %1208 = vmatpush1.msra.mxu0 0.0
  %1209 = vmatprep.subr.mxu0 0.0
  %1210 = vmatpush1.msra.mxu0 0.0
  %1211 = vmatprep.subr.mxu0 0.0
  %1212 = vmatpush1.msra.mxu0 0.0
  %1213 = vmatprep.subr.mxu0 0.0
  %1214 = vmatpush1.msra.mxu0 0.0
  %1215 = vmatprep.subr.mxu0 0.0
  %1216 = vmatpush1.msra.mxu0 0.0
  %1217 = vmatprep.subr.mxu0 0.0
  %1218 = vmatpush1.msra.mxu0 0.0
  %1219 = vmatprep.subr.mxu0 0.0
  %1220 = vmatpush1.msra.mxu0 0.0
  %1221 = vmatprep.subr.mxu0 0.0
  %1222 = vmatpush1.msra.mxu0 0.0
  %1223 = vmatprep.subr.mxu0 0.0
  %1224 = vmatpush1.msra.mxu0 0.0
  %1225 = vmatprep.subr.mxu0 0.0
  %1226 = vmatpush1.msra.mxu0 0.0
  %1227 = vmatprep.subr.mxu0 0.0
  %1228 = vmatpush1.msra.mxu0 %v1107
  %1229 = vmatprep.subr.mxu0 0.0
  %1230 = vmatpush1.msra.mxu0 %v1099
  %1231 = vmatprep.subr.mxu0 0.0
  %1232 = vmatpush2.msra.mxu0 0.0
  %1233 = vmatprep.subr.mxu0 0.0
  %1234 = vmatpush2.msra.mxu0 0.0
  %1235 = vmatprep.subr.mxu0 0.0
  %1236 = vmatpush2.msra.mxu0 0.0
  %1237 = vmatprep.subr.mxu0 0.0
  %1238 = vmatpush2.msra.mxu0 0.0
  %1239 = vmatprep.subr.mxu0 0.0
  %1240 = vmatpush2.msra.mxu0 0.0
  %1241 = vmatprep.subr.mxu0 0.0
  %1242 = vmatpush2.msra.mxu0 0.0
  %1243 = vmatprep.subr.mxu0 0.0
  %1244 = vmatpush2.msra.mxu0 0.0
  %1245 = vmatprep.subr.mxu0 0.0
  %1246 = vmatpush2.msra.mxu0 0.0
  %1247 = vmatprep.subr.mxu0 0.0
  %1248 = vmatpush2.msra.mxu0 0.0
  %1249 = vmatprep.subr.mxu0 0.0
  %1250 = vmatpush2.msra.mxu0 0.0
  %1251 = vmatprep.subr.mxu0 0.0
  %1252 = vmatpush2.msra.mxu0 0.0
  %1253 = vmatprep.subr.mxu0 0.0
  %1254 = vmatpush2.msra.mxu0 0.0
  %1255 = vmatprep.subr.mxu0 0.0
  %1256 = vmatpush2.msra.mxu0 0.0
  %1257 = vmatprep.subr.mxu0 0.0
  %1258 = vmatpush2.msra.mxu0 0.0
  %1259 = vmatprep.subr.mxu0 0.0
  %1260 = vmatpush2.msra.mxu0 0.0
  %1261 = vmatprep.subr.mxu0 0.0
  %1262 = vmatpush2.msra.mxu0 0.0
  %1263 = vmatprep.mubr.f32.mxu0 0.0
  %1264 = vmatmul.mubr.f32.gmra.mxu0 %v177
  %v1265 = vpop.f32.mrf.mxu0
  %v1266 = vadd.f32 0.0, %v1265
  %v1267 = vpop.f32.mrf.mxu0
  %1268 = vmatprep.mubr.f32.mxu0 0.0
  %1269 = vmatmul.mubr.f32.gmra.mxu0 %v180
  %v1270 = vpop.f32.mrf.mxu0
  %v1271 = vadd.f32 0.0, %v1270
  %v1272 = vpop.f32.mrf.mxu0
  %1273 = vmatprep.mubr.f32.mxu0 0.0
  %1274 = vmatmul.mubr.f32.gmra.mxu0 %v183
  %v1275 = vpop.f32.mrf.mxu0
  %v1276 = vadd.f32 0.0, %v1275
  %v1277 = vpop.f32.mrf.mxu0
  %1278 = vmatprep.mubr.f32.mxu0 0.0
  %1279 = vmatmul.mubr.f32.gmra.mxu0 %v186
  %v1280 = vpop.f32.mrf.mxu0
  %v1281 = vadd.f32 0.0, %v1280
  %v1282 = vpop.f32.mrf.mxu0
  %1283 = vmatprep.mubr.f32.mxu0 0.0
  %1284 = vmatmul.mubr.f32.gmra.mxu0 %v189
  %v1285 = vpop.f32.mrf.mxu0
  %v1286 = vadd.f32 0.0, %v1285
  %v1287 = vpop.f32.mrf.mxu0
  %1288 = vdwg.mxu0
  %v1289 = vsub.f32 %v1176, %v1266
  %v1290 = vsub.f32 %v1181, %v1271
  %v1291 = vsub.f32 %v1186, %v1276
  %v1292 = vsub.f32 %v1191, %v1281
  %v1293 = vsub.f32 %v1196, %v1286
  %v1294 = vmul.f32 %v1289, %v1289
  %v1295 = vmul.f32 %v1290, %v1290
  %v1296 = vmul.f32 %v1291, %v1291
  %v1297 = vmul.f32 %v1292, %v1292
  %v1298 = vmul.f32 %v1293, %v1293
  %v1299 = vsel %vm291, %v1294, 0.0
  %1300 = vadd.xlane.f32.xlu0 %v1299
  %v1301 = vpop.xlane.xlu0 %1300
  %v1302 = vsel %vm291, %v1295, 0.0
  %1303 = vadd.xlane.f32.xlu0 %v1302
  %v1304 = vpop.xlane.xlu0 %1303
  %v1305 = vsel %vm291, %v1296, 0.0
  %1306 = vadd.xlane.f32.xlu0 %v1305
  %v1307 = vpop.xlane.xlu0 %1306
  %v1308 = vsel %vm291, %v1297, 0.0
  %1309 = vadd.xlane.f32.xlu0 %v1308
  %v1310 = vpop.xlane.xlu0 %1309
  %v1311 = vsel %vm291, %v1298, 0.0
  %1312 = vadd.xlane.f32.xlu0 %v1311
  %v1313 = vpop.xlane.xlu0 %1312
  %v1314 = vrsqrt.pop %v1301
  %v1315 = vmul.f32 %v1301, %v1314
  %vm1316 = vcmp.eq.f32.partialorder %v1301, inf
  %v1317 = vsel %vm1316, %v1301, %v1315
  %vm1318 = vcmp.eq.f32.partialorder %v1301, 0.0
  %v1319 = vand.u32 %v1301, 2147483648
  %v1320 = vsel %vm1318, %v1319, %v1317
  %v1321 = vrsqrt.pop %v1304
  %v1322 = vmul.f32 %v1304, %v1321
  %vm1323 = vcmp.eq.f32.partialorder %v1304, inf
  %v1324 = vsel %vm1323, %v1304, %v1322
  %vm1325 = vcmp.eq.f32.partialorder %v1304, 0.0
  %v1326 = vand.u32 %v1304, 2147483648
  %v1327 = vsel %vm1325, %v1326, %v1324
  %v1328 = vrsqrt.pop %v1307
  %v1329 = vmul.f32 %v1307, %v1328
  %vm1330 = vcmp.eq.f32.partialorder %v1307, inf
  %v1331 = vsel %vm1330, %v1307, %v1329
  %vm1332 = vcmp.eq.f32.partialorder %v1307, 0.0
  %v1333 = vand.u32 %v1307, 2147483648
  %v1334 = vsel %vm1332, %v1333, %v1331
  %v1335 = vrsqrt.pop %v1310
  %v1336 = vmul.f32 %v1310, %v1335
  %vm1337 = vcmp.eq.f32.partialorder %v1310, inf
  %v1338 = vsel %vm1337, %v1310, %v1336
  %vm1339 = vcmp.eq.f32.partialorder %v1310, 0.0
  %v1340 = vand.u32 %v1310, 2147483648
  %v1341 = vsel %vm1339, %v1340, %v1338
  %v1342 = vrsqrt.pop %v1313
  %v1343 = vmul.f32 %v1313, %v1342
  %vm1344 = vcmp.eq.f32.partialorder %v1313, inf
  %v1345 = vsel %vm1344, %v1313, %v1343
  %vm1346 = vcmp.eq.f32.partialorder %v1313, 0.0
  %v1347 = vand.u32 %v1313, 2147483648
  %v1348 = vsel %vm1346, %v1347, %v1345
  %v1349 = vlaneseq
  %v1350 = vshrl.u32 %v1349, 7
  %v1351 = vsub.s32 0, %v1350
  %v1352 = vrot.slane %v1102, %v1351
  %v1353 = vmul.f32 %v1320, %v1352
  %v1354 = vmul.f32 %v1327, %v1352
  %v1355 = vmul.f32 %v1334, %v1352
  %v1356 = vmul.f32 %v1341, %v1352
  %v1357 = vmul.f32 %v1348, %v1352
  %v1358 = vlaneseq
  %v1359 = vshrl.u32 %v1358, 7
  %v1360 = vsub.s32 1, %v1359
  %v1361 = vrot.slane %v1102, %v1360
  %v1362 = vmul.f32 %v354, %v1361
  %v1363 = vmul.f32 %v359, %v1361
  %v1364 = vmul.f32 %v364, %v1361
  %v1365 = vmul.f32 %v369, %v1361
  %v1366 = vmul.f32 %v374, %v1361
  %v1367 = vadd.f32 %v1353, %v1362
  %v1368 = vadd.f32 %v1354, %v1363
  %v1369 = vadd.f32 %v1355, %v1364
  %v1370 = vadd.f32 %v1356, %v1365
  %v1371 = vadd.f32 %v1357, %v1366
  %v1372 = vlaneseq
  %v1373 = vshrl.u32 %v1372, 7
  %v1374 = vsub.s32 2, %v1373
  %v1375 = vrot.slane %v1102, %v1374
  %v1376 = vadd.f32 %v1367, %v1375
  %v1377 = vadd.f32 %v1368, %v1375
  %v1378 = vadd.f32 %v1369, %v1375
  %v1379 = vadd.f32 %v1370, %v1375
  %v1380 = vadd.f32 %v1371, %v1375
  %v1381 = vxor.u32 %v1376, 2147483648
  %v1382 = vxor.u32 %v1377, 2147483648
  %v1383 = vxor.u32 %v1378, 2147483648
  %v1384 = vxor.u32 %v1379, 2147483648
  %v1385 = vxor.u32 %v1380, 2147483648
  %v1386 = vmul.f32 %v1381, 1.442695
  %v1387 = vpow.pop %v1386
  %v1388 = vmul.f32 %v1382, 1.442695
  %v1389 = vpow.pop %v1388
  %v1390 = vmul.f32 %v1383, 1.442695
  %v1391 = vpow.pop %v1390
  %v1392 = vmul.f32 %v1384, 1.442695
  %v1393 = vpow.pop %v1392
  %v1394 = vmul.f32 %v1385, 1.442695
  %v1395 = vpow.pop %v1394
  %v1396 = vadd.f32 %v1387, 1.0
  %v1397 = vadd.f32 %v1389, 1.0
  %v1398 = vadd.f32 %v1391, 1.0
  %v1399 = vadd.f32 %v1393, 1.0
  %v1400 = vadd.f32 %v1395, 1.0
  %v1401 = vrcp.pop %v1396
  %v1402 = vmul.f32 1.0, %v1401
  %v1403 = vrcp.pop %v1397
  %v1404 = vmul.f32 1.0, %v1403
  %v1405 = vrcp.pop %v1398
  %v1406 = vmul.f32 1.0, %v1405
  %v1407 = vrcp.pop %v1399
  %v1408 = vmul.f32 1.0, %v1407
  %v1409 = vrcp.pop %v1400
  %v1410 = vmul.f32 1.0, %v1409
  %v1411 = vmul.f32 %v1376, %v1402
  %v1412 = vmul.f32 %v1377, %v1404
  %v1413 = vmul.f32 %v1378, %v1406
  %v1414 = vmul.f32 %v1379, %v1408
  %v1415 = vmul.f32 %v1380, %v1410
  %v1416 = vlaneseq
  %v1417 = vshrl.u32 %v1416, 7
  %v1418 = vsub.s32 3, %v1417
  %v1419 = vrot.slane %v1102, %v1418
  %v1420 = vmul.f32 %v1411, %v1419
  %v1421 = vmul.f32 %v1412, %v1419
  %v1422 = vmul.f32 %v1413, %v1419
  %v1423 = vmul.f32 %v1414, %v1419
  %v1424 = vmul.f32 %v1415, %v1419
  %v1425 = vsel %vm443, %v1420, 0.0
  %1426 = vadd.xlane.f32.xlu0 %v1425
  %v1427 = vpop.xlane.xlu0 %1426
  %v1428 = vsel %vm443, %v1421, 0.0
  %1429 = vadd.xlane.f32.xlu0 %v1428
  %v1430 = vpop.xlane.xlu0 %1429
  %v1431 = vsel %vm443, %v1422, 0.0
  %1432 = vadd.xlane.f32.xlu0 %v1431
  %v1433 = vpop.xlane.xlu0 %1432
  %v1434 = vsel %vm443, %v1423, 0.0
  %1435 = vadd.xlane.f32.xlu0 %v1434
  %v1436 = vpop.xlane.xlu0 %1435
  %v1437 = vsel %vm443, %v1424, 0.0
  %1438 = vadd.xlane.f32.xlu0 %v1437
  %v1439 = vpop.xlane.xlu0 %1438
  %v1440 = vtanh.pop %v1427
  %v1441 = vtanh.pop %v1430
  %v1442 = vtanh.pop %v1433
  %v1443 = vtanh.pop %v1436
  %v1444 = vtanh.pop %v1439
  %v1445 = vmul.f32 %v1289, %v1440
  %v1446 = vmul.f32 %v1290, %v1441
  %v1447 = vmul.f32 %v1291, %v1442
  %v1448 = vmul.f32 %v1292, %v1443
  %v1449 = vmul.f32 %v1293, %v1444
  %1450 = vmatprep.subr.mxu0 0.0
  %1451 = vmatpush1.msra.mxu0 0.0
  %1452 = vmatprep.subr.mxu0 0.0
  %1453 = vmatpush1.msra.mxu0 0.0
  %1454 = vmatprep.subr.mxu0 0.0
  %1455 = vmatpush1.msra.mxu0 0.0
  %1456 = vmatprep.subr.mxu0 0.0
  %1457 = vmatpush1.msra.mxu0 0.0
  %1458 = vmatprep.subr.mxu0 0.0
  %1459 = vmatpush1.msra.mxu0 0.0
  %1460 = vmatprep.subr.mxu0 0.0
  %1461 = vmatpush1.msra.mxu0 0.0
  %1462 = vmatprep.subr.mxu0 0.0
  %1463 = vmatpush1.msra.mxu0 0.0
  %1464 = vmatprep.subr.mxu0 0.0
  %1465 = vmatpush1.msra.mxu0 0.0
  %1466 = vmatprep.subr.mxu0 0.0
  %1467 = vmatpush1.msra.mxu0 0.0
  %1468 = vmatprep.subr.mxu0 0.0
  %1469 = vmatpush1.msra.mxu0 0.0
  %1470 = vmatprep.subr.mxu0 0.0
  %1471 = vmatpush1.msra.mxu0 0.0
  %1472 = vmatprep.subr.mxu0 0.0
  %1473 = vmatpush1.msra.mxu0 %v1449
  %1474 = vmatprep.subr.mxu0 0.0
  %1475 = vmatpush1.msra.mxu0 %v1448
  %1476 = vmatprep.subr.mxu0 0.0
  %1477 = vmatpush1.msra.mxu0 %v1447
  %1478 = vmatprep.subr.mxu0 0.0
  %1479 = vmatpush1.msra.mxu0 %v1446
  %1480 = vmatprep.subr.mxu0 0.0
  %1481 = vmatpush1.msra.mxu0 %v1445
  %1482 = vmatprep.subr.mxu0 0.0
  %1483 = vmatpush2.msra.mxu0 0.0
  %1484 = vmatprep.subr.mxu0 0.0
  %1485 = vmatpush2.msra.mxu0 0.0
  %1486 = vmatprep.subr.mxu0 0.0
  %1487 = vmatpush2.msra.mxu0 0.0
  %1488 = vmatprep.subr.mxu0 0.0
  %1489 = vmatpush2.msra.mxu0 0.0
  %1490 = vmatprep.subr.mxu0 0.0
  %1491 = vmatpush2.msra.mxu0 0.0
  %1492 = vmatprep.subr.mxu0 0.0
  %1493 = vmatpush2.msra.mxu0 0.0
  %1494 = vmatprep.subr.mxu0 0.0
  %1495 = vmatpush2.msra.mxu0 0.0
  %1496 = vmatprep.subr.mxu0 0.0
  %1497 = vmatpush2.msra.mxu0 0.0
  %1498 = vmatprep.subr.mxu0 0.0
  %1499 = vmatpush2.msra.mxu0 0.0
  %1500 = vmatprep.subr.mxu0 0.0
  %1501 = vmatpush2.msra.mxu0 0.0
  %1502 = vmatprep.subr.mxu0 0.0
  %1503 = vmatpush2.msra.mxu0 0.0
  %1504 = vmatprep.subr.mxu0 0.0
  %1505 = vmatpush2.msra.mxu0 0.0
  %1506 = vmatprep.subr.mxu0 0.0
  %1507 = vmatpush2.msra.mxu0 0.0
  %1508 = vmatprep.subr.mxu0 0.0
  %1509 = vmatpush2.msra.mxu0 0.0
  %1510 = vmatprep.subr.mxu0 0.0
  %1511 = vmatpush2.msra.mxu0 0.0
  %1512 = vmatprep.subr.mxu0 0.0
  %1513 = vmatpush2.msra.mxu0 0.0
  %1514 = vmatprep.mubr.f32.mxu0 0.0
  %1515 = vmatmul.mubr.f32.gmra.mxu0 %v503
  %v1516 = vpop.f32.mrf.mxu0
  %v1517 = vadd.f32 0.0, %v1516
  %v1518 = vpop.f32.mrf.mxu0
  %1519 = vmatprep.mubr.f32.mxu0 0.0
  %1520 = vmatmul.mubr.f32.gmra.mxu0 %v506
  %v1521 = vpop.f32.mrf.mxu0
  %v1522 = vadd.f32 0.0, %v1521
  %v1523 = vpop.f32.mrf.mxu0
  %1524 = vdwg.mxu0
  %v1525 = vmul.f32 %v1517, %v586
  %v1526 = vmul.f32 %v1522, %v591
  %v1527 = vadd.f32 %v1099, %v1525
  %v1528 = vadd.f32 %v1100, %v1526
  %v1529 = vlaneseq
  %v1530 = vshrl.u32 %v1529, 7
  %v1531 = vsub.s32 4, %v1530
  %v1532 = vrot.slane %v1102, %v1531
  %v1533 = vmul.f32 %v600, %v1532
  %v1534 = vmul.f32 %v605, %v1532
  %v1535 = vlaneseq
  %v1536 = vshrl.u32 %v1535, 7
  %v1537 = vsub.s32 5, %v1536
  %v1538 = vrot.slane %v1102, %v1537
  %v1539 = vadd.f32 %v1533, %v1538
  %v1540 = vadd.f32 %v1534, %v1538
  %v1541 = vxor.u32 %v1539, 2147483648
  %v1542 = vxor.u32 %v1540, 2147483648
  %v1543 = vmul.f32 %v1541, 1.442695
  %v1544 = vpow.pop %v1543
  %v1545 = vmul.f32 %v1542, 1.442695
  %v1546 = vpow.pop %v1545
  %v1547 = vadd.f32 %v1544, 1.0
  %v1548 = vadd.f32 %v1546, 1.0
  %v1549 = vrcp.pop %v1547
  %v1550 = vmul.f32 1.0, %v1549
  %v1551 = vrcp.pop %v1548
  %v1552 = vmul.f32 1.0, %v1551
  %v1553 = vmul.f32 %v1539, %v1550
  %v1554 = vmul.f32 %v1540, %v1552
  %v1555 = vlaneseq
  %v1556 = vshrl.u32 %v1555, 7
  %v1557 = vsub.s32 6, %v1556
  %v1558 = vrot.slane %v1102, %v1557
  %v1559 = vmul.f32 %v1553, %v1558
  %v1560 = vmul.f32 %v1554, %v1558
  %v1561 = vsel %vm443, %v1559, 0.0
  %1562 = vadd.xlane.f32.xlu0 %v1561
  %v1563 = vpop.xlane.xlu0 %1562
  %v1564 = vsel %vm642, %v1560, 0.0
  %1565 = vadd.xlane.f32.xlu0 %v1564
  %v1566 = vpop.xlane.xlu0 %1565
  %v1567 = vlaneseq
  %v1568 = vshrl.u32 %v1567, 7
  %v1569 = vsub.s32 7, %v1568
  %v1570 = vrot.slane %v1102, %v1569
  %v1571 = vadd.f32 %v1563, %v1570
  %v1572 = vadd.f32 %v1566, %v1570
  %1574 = vset.pattern.permute.xlu0 0
  %1575 = vperm.xlu0 %1574, %v1571
  %v1576 = vpop.permute.xlu0 %1575
  %1579 = vset.pattern.permute.xlu0 0
  %1580 = vperm.xlu0 %1579, %v1572
  %v1581 = vpop.permute.xlu0 %1580
  %v1583 = vmul.f32 %v40, %v1576
  %v1584 = vmul.f32 %v41, %v1581
  %v1585 = vadd.f32 %v1527, %v1583
  %v1586 = vadd.f32 %v1528, %v1584
  %v1588 = vsel %vm82, %v1586, 0
  %1590 = vmatprep.subr.mxu0 0.0
  %1591 = vmatpush1.msra.mxu0 0.0
  %1592 = vmatprep.subr.mxu0 0.0
  %1593 = vmatpush1.msra.mxu0 0.0
  %1594 = vmatprep.subr.mxu0 0.0
  %1595 = vmatpush1.msra.mxu0 0.0
  %1596 = vmatprep.subr.mxu0 0.0
  %1597 = vmatpush1.msra.mxu0 0.0
  %1598 = vmatprep.subr.mxu0 0.0
  %1599 = vmatpush1.msra.mxu0 0.0
  %1600 = vmatprep.subr.mxu0 0.0
  %1601 = vmatpush1.msra.mxu0 0.0
  %1602 = vmatprep.subr.mxu0 0.0
  %1603 = vmatpush1.msra.mxu0 0.0
  %1604 = vmatprep.subr.mxu0 0.0
  %1605 = vmatpush1.msra.mxu0 0.0
  %1606 = vmatprep.subr.mxu0 0.0
  %1607 = vmatpush1.msra.mxu0 0.0
  %1608 = vmatprep.subr.mxu0 0.0
  %1609 = vmatpush1.msra.mxu0 0.0
  %1610 = vmatprep.subr.mxu0 0.0
  %1611 = vmatpush1.msra.mxu0 0.0
  %1612 = vmatprep.subr.mxu0 0.0
  %1613 = vmatpush1.msra.mxu0 0.0
  %1614 = vmatprep.subr.mxu0 0.0
  %1615 = vmatpush1.msra.mxu0 0.0
  %1616 = vmatprep.subr.mxu0 0.0
  %1617 = vmatpush1.msra.mxu0 0.0
  %1618 = vmatprep.subr.mxu0 0.0
  %1619 = vmatpush1.msra.mxu0 %v1588
  %1620 = vmatprep.subr.mxu0 0.0
  %1621 = vmatpush1.msra.mxu0 %v1585
  %1622 = vmatprep.subr.mxu0 0.0
  %1623 = vmatpush2.msra.mxu0 0.0
  %1624 = vmatprep.subr.mxu0 0.0
  %1625 = vmatpush2.msra.mxu0 0.0
  %1626 = vmatprep.subr.mxu0 0.0
  %1627 = vmatpush2.msra.mxu0 0.0
  %1628 = vmatprep.subr.mxu0 0.0
  %1629 = vmatpush2.msra.mxu0 0.0
  %1630 = vmatprep.subr.mxu0 0.0
  %1631 = vmatpush2.msra.mxu0 0.0
  %1632 = vmatprep.subr.mxu0 0.0
  %1633 = vmatpush2.msra.mxu0 0.0
  %1634 = vmatprep.subr.mxu0 0.0
  %1635 = vmatpush2.msra.mxu0 0.0
  %1636 = vmatprep.subr.mxu0 0.0
  %1637 = vmatpush2.msra.mxu0 0.0
  %1638 = vmatprep.subr.mxu0 0.0
  %1639 = vmatpush2.msra.mxu0 0.0
  %1640 = vmatprep.subr.mxu0 0.0
  %1641 = vmatpush2.msra.mxu0 0.0
  %1642 = vmatprep.subr.mxu0 0.0
  %1643 = vmatpush2.msra.mxu0 0.0
  %1644 = vmatprep.subr.mxu0 0.0
  %1645 = vmatpush2.msra.mxu0 0.0
  %1646 = vmatprep.subr.mxu0 0.0
  %1647 = vmatpush2.msra.mxu0 0.0
  %1648 = vmatprep.subr.mxu0 0.0
  %1649 = vmatpush2.msra.mxu0 0.0
  %1650 = vmatprep.subr.mxu0 0.0
  %1651 = vmatpush2.msra.mxu0 0.0
  %1652 = vmatprep.subr.mxu0 0.0
  %1653 = vmatpush2.msra.mxu0 0.0
  %1654 = vmatprep.mubr.f32.mxu0 0.0
  %1655 = vmatmul.mubr.f32.gmra.mxu0 %v667
  %v1656 = vpop.f32.mrf.mxu0
  %v1657 = vadd.f32 0.0, %v1656
  %v1658 = vpop.f32.mrf.mxu0
  %1659 = vdwg.mxu0
  %v1660 = vmul.f32 %v1657, 0.2
  %v1662 = vsel %vm82, %v1660, 0
  %1664 = vmatprep.subr.mxu0 0.0
  %1665 = vmatpush1.msra.mxu0 0.0
  %1666 = vmatprep.subr.mxu0 0.0
  %1667 = vmatpush1.msra.mxu0 0.0
  %1668 = vmatprep.subr.mxu0 0.0
  %1669 = vmatpush1.msra.mxu0 0.0
  %1670 = vmatprep.subr.mxu0 0.0
  %1671 = vmatpush1.msra.mxu0 0.0
  %1672 = vmatprep.subr.mxu0 0.0
  %1673 = vmatpush1.msra.mxu0 0.0
  %1674 = vmatprep.subr.mxu0 0.0
  %1675 = vmatpush1.msra.mxu0 0.0
  %1676 = vmatprep.subr.mxu0 0.0
  %1677 = vmatpush1.msra.mxu0 0.0
  %1678 = vmatprep.subr.mxu0 0.0
  %1679 = vmatpush1.msra.mxu0 0.0
  %1680 = vmatprep.subr.mxu0 0.0
  %1681 = vmatpush1.msra.mxu0 0.0
  %1682 = vmatprep.subr.mxu0 0.0
  %1683 = vmatpush1.msra.mxu0 0.0
  %1684 = vmatprep.subr.mxu0 0.0
  %1685 = vmatpush1.msra.mxu0 0.0
  %1686 = vmatprep.subr.mxu0 0.0
  %1687 = vmatpush1.msra.mxu0 0.0
  %1688 = vmatprep.subr.mxu0 0.0
  %1689 = vmatpush1.msra.mxu0 0.0
  %1690 = vmatprep.subr.mxu0 0.0
  %1691 = vmatpush1.msra.mxu0 0.0
  %1692 = vmatprep.subr.mxu0 0.0
  %1693 = vmatpush1.msra.mxu0 0.0
  %1694 = vmatprep.subr.mxu0 0.0
  %1695 = vmatpush1.msra.mxu0 %v1662
  %1696 = vmatprep.subr.mxu0 0.0
  %1697 = vmatpush2.msra.mxu0 0.0
  %1698 = vmatprep.subr.mxu0 0.0
  %1699 = vmatpush2.msra.mxu0 0.0
  %1700 = vmatprep.subr.mxu0 0.0
  %1701 = vmatpush2.msra.mxu0 0.0
  %1702 = vmatprep.subr.mxu0 0.0
  %1703 = vmatpush2.msra.mxu0 0.0
  %1704 = vmatprep.subr.mxu0 0.0
  %1705 = vmatpush2.msra.mxu0 0.0
  %1706 = vmatprep.subr.mxu0 0.0
  %1707 = vmatpush2.msra.mxu0 0.0
  %1708 = vmatprep.subr.mxu0 0.0
  %1709 = vmatpush2.msra.mxu0 0.0
  %1710 = vmatprep.subr.mxu0 0.0
  %1711 = vmatpush2.msra.mxu0 0.0
  %1712 = vmatprep.subr.mxu0 0.0
  %1713 = vmatpush2.msra.mxu0 0.0
  %1714 = vmatprep.subr.mxu0 0.0
  %1715 = vmatpush2.msra.mxu0 0.0
  %1716 = vmatprep.subr.mxu0 0.0
  %1717 = vmatpush2.msra.mxu0 0.0
  %1718 = vmatprep.subr.mxu0 0.0
  %1719 = vmatpush2.msra.mxu0 0.0
  %1720 = vmatprep.subr.mxu0 0.0
  %1721 = vmatpush2.msra.mxu0 0.0
  %1722 = vmatprep.subr.mxu0 0.0
  %1723 = vmatpush2.msra.mxu0 0.0
  %1724 = vmatprep.subr.mxu0 0.0
  %1725 = vmatpush2.msra.mxu0 0.0
  %1726 = vmatprep.subr.mxu0 0.0
  %1727 = vmatpush2.msra.mxu0 0.0
  %1728 = vmatprep.mubr.f32.mxu0 0.0
  %1729 = vmatmul.mubr.f32.gmra.mxu0 %v777
  %v1730 = vpop.f32.mrf.mxu0
  %v1731 = vadd.f32 0.0, %v1730
  %v1732 = vpop.f32.mrf.mxu0
  %1733 = vmatprep.mubr.f32.mxu0 0.0
  %1734 = vmatmul.mubr.f32.gmra.mxu0 %v780
  %v1735 = vpop.f32.mrf.mxu0
  %v1736 = vadd.f32 0.0, %v1735
  %v1737 = vpop.f32.mrf.mxu0
  %1738 = vdwg.mxu0
  %v1739 = vsub.f32 %v1585, %v1731
  %v1740 = vsub.f32 %v1586, %v1736
  %v1741 = vmul.f32 %v1739, %v1739
  %v1742 = vmul.f32 %v1740, %v1740
  %v1743 = vsel %vm291, %v1741, 0.0
  %1744 = vadd.xlane.f32.xlu0 %v1743
  %v1745 = vpop.xlane.xlu0 %1744
  %v1746 = vsel %vm867, %v1742, 0.0
  %1747 = vadd.xlane.f32.xlu0 %v1746
  %v1748 = vpop.xlane.xlu0 %1747
  %v1750 = vsel %vm82, %v1748, 0
  %1752 = vmatprep.subr.mxu0 0.0
  %1753 = vmatpush1.msra.mxu0 0.0
  %1754 = vmatprep.subr.mxu0 0.0
  %1755 = vmatpush1.msra.mxu0 0.0
  %1756 = vmatprep.subr.mxu0 0.0
  %1757 = vmatpush1.msra.mxu0 0.0
  %1758 = vmatprep.subr.mxu0 0.0
  %1759 = vmatpush1.msra.mxu0 0.0
  %1760 = vmatprep.subr.mxu0 0.0
  %1761 = vmatpush1.msra.mxu0 0.0
  %1762 = vmatprep.subr.mxu0 0.0
  %1763 = vmatpush1.msra.mxu0 0.0
  %1764 = vmatprep.subr.mxu0 0.0
  %1765 = vmatpush1.msra.mxu0 0.0
  %1766 = vmatprep.subr.mxu0 0.0
  %1767 = vmatpush1.msra.mxu0 0.0
  %1768 = vmatprep.subr.mxu0 0.0
  %1769 = vmatpush1.msra.mxu0 0.0
  %1770 = vmatprep.subr.mxu0 0.0
  %1771 = vmatpush1.msra.mxu0 0.0
  %1772 = vmatprep.subr.mxu0 0.0
  %1773 = vmatpush1.msra.mxu0 0.0
  %1774 = vmatprep.subr.mxu0 0.0
  %1775 = vmatpush1.msra.mxu0 0.0
  %1776 = vmatprep.subr.mxu0 0.0
  %1777 = vmatpush1.msra.mxu0 0.0
  %1778 = vmatprep.subr.mxu0 0.0
  %1779 = vmatpush1.msra.mxu0 0.0
  %1780 = vmatprep.subr.mxu0 0.0
  %1781 = vmatpush1.msra.mxu0 %v1750
  %1782 = vmatprep.subr.mxu0 0.0
  %1783 = vmatpush1.msra.mxu0 %v1745
  %1784 = vmatprep.subr.mxu0 0.0
  %1785 = vmatpush2.msra.mxu0 0.0
  %1786 = vmatprep.subr.mxu0 0.0
  %1787 = vmatpush2.msra.mxu0 0.0
  %1788 = vmatprep.subr.mxu0 0.0
  %1789 = vmatpush2.msra.mxu0 0.0
  %1790 = vmatprep.subr.mxu0 0.0
  %1791 = vmatpush2.msra.mxu0 0.0
  %1792 = vmatprep.subr.mxu0 0.0
  %1793 = vmatpush2.msra.mxu0 0.0
  %1794 = vmatprep.subr.mxu0 0.0
  %1795 = vmatpush2.msra.mxu0 0.0
  %1796 = vmatprep.subr.mxu0 0.0
  %1797 = vmatpush2.msra.mxu0 0.0
  %1798 = vmatprep.subr.mxu0 0.0
  %1799 = vmatpush2.msra.mxu0 0.0
  %1800 = vmatprep.subr.mxu0 0.0
  %1801 = vmatpush2.msra.mxu0 0.0
  %1802 = vmatprep.subr.mxu0 0.0
  %1803 = vmatpush2.msra.mxu0 0.0
  %1804 = vmatprep.subr.mxu0 0.0
  %1805 = vmatpush2.msra.mxu0 0.0
  %1806 = vmatprep.subr.mxu0 0.0
  %1807 = vmatpush2.msra.mxu0 0.0
  %1808 = vmatprep.subr.mxu0 0.0
  %1809 = vmatpush2.msra.mxu0 0.0
  %1810 = vmatprep.subr.mxu0 0.0
  %1811 = vmatpush2.msra.mxu0 0.0
  %1812 = vmatprep.subr.mxu0 0.0
  %1813 = vmatpush2.msra.mxu0 0.0
  %1814 = vmatprep.subr.mxu0 0.0
  %1815 = vmatpush2.msra.mxu0 0.0
  %1816 = vmatprep.mubr.f32.mxu0 0.0
  %1817 = vmatmul.mubr.f32.gmra.mxu0 %v667
  %v1818 = vpop.f32.mrf.mxu0
  %v1819 = vadd.f32 0.0, %v1818
  %v1820 = vpop.f32.mrf.mxu0
  %1821 = vdwg.mxu0
  %v1822 = vrsqrt.pop %v1819
  %v1823 = vmul.f32 %v1819, %v1822
  %vm1824 = vcmp.eq.f32.partialorder %v1819, inf
  %v1825 = vsel %vm1824, %v1819, %v1823
  %vm1826 = vcmp.eq.f32.partialorder %v1819, 0.0
  %v1827 = vand.u32 %v1819, 2147483648
  %v1828 = vsel %vm1826, %v1827, %v1825
  %v1830 = vsel %vm82, %v1828, 0
  %1832 = vmatprep.subr.mxu0 0.0
  %1833 = vmatpush1.msra.mxu0 0.0
  %1834 = vmatprep.subr.mxu0 0.0
  %1835 = vmatpush1.msra.mxu0 0.0
  %1836 = vmatprep.subr.mxu0 0.0
  %1837 = vmatpush1.msra.mxu0 0.0
  %1838 = vmatprep.subr.mxu0 0.0
  %1839 = vmatpush1.msra.mxu0 0.0
  %1840 = vmatprep.subr.mxu0 0.0
  %1841 = vmatpush1.msra.mxu0 0.0
  %1842 = vmatprep.subr.mxu0 0.0
  %1843 = vmatpush1.msra.mxu0 0.0
  %1844 = vmatprep.subr.mxu0 0.0
  %1845 = vmatpush1.msra.mxu0 0.0
  %1846 = vmatprep.subr.mxu0 0.0
  %1847 = vmatpush1.msra.mxu0 0.0
  %1848 = vmatprep.subr.mxu0 0.0
  %1849 = vmatpush1.msra.mxu0 0.0
  %1850 = vmatprep.subr.mxu0 0.0
  %1851 = vmatpush1.msra.mxu0 0.0
  %1852 = vmatprep.subr.mxu0 0.0
  %1853 = vmatpush1.msra.mxu0 0.0
  %1854 = vmatprep.subr.mxu0 0.0
  %1855 = vmatpush1.msra.mxu0 0.0
  %1856 = vmatprep.subr.mxu0 0.0
  %1857 = vmatpush1.msra.mxu0 0.0
  %1858 = vmatprep.subr.mxu0 0.0
  %1859 = vmatpush1.msra.mxu0 0.0
  %1860 = vmatprep.subr.mxu0 0.0
  %1861 = vmatpush1.msra.mxu0 0.0
  %1862 = vmatprep.subr.mxu0 0.0
  %1863 = vmatpush1.msra.mxu0 %v1830
  %1864 = vmatprep.subr.mxu0 0.0
  %1865 = vmatpush2.msra.mxu0 0.0
  %1866 = vmatprep.subr.mxu0 0.0
  %1867 = vmatpush2.msra.mxu0 0.0
  %1868 = vmatprep.subr.mxu0 0.0
  %1869 = vmatpush2.msra.mxu0 0.0
  %1870 = vmatprep.subr.mxu0 0.0
  %1871 = vmatpush2.msra.mxu0 0.0
  %1872 = vmatprep.subr.mxu0 0.0
  %1873 = vmatpush2.msra.mxu0 0.0
  %1874 = vmatprep.subr.mxu0 0.0
  %1875 = vmatpush2.msra.mxu0 0.0
  %1876 = vmatprep.subr.mxu0 0.0
  %1877 = vmatpush2.msra.mxu0 0.0
  %1878 = vmatprep.subr.mxu0 0.0
  %1879 = vmatpush2.msra.mxu0 0.0
  %1880 = vmatprep.subr.mxu0 0.0
  %1881 = vmatpush2.msra.mxu0 0.0
  %1882 = vmatprep.subr.mxu0 0.0
  %1883 = vmatpush2.msra.mxu0 0.0
  %1884 = vmatprep.subr.mxu0 0.0
  %1885 = vmatpush2.msra.mxu0 0.0
  %1886 = vmatprep.subr.mxu0 0.0
  %1887 = vmatpush2.msra.mxu0 0.0
  %1888 = vmatprep.subr.mxu0 0.0
  %1889 = vmatpush2.msra.mxu0 0.0
  %1890 = vmatprep.subr.mxu0 0.0
  %1891 = vmatpush2.msra.mxu0 0.0
  %1892 = vmatprep.subr.mxu0 0.0
  %1893 = vmatpush2.msra.mxu0 0.0
  %1894 = vmatprep.subr.mxu0 0.0
  %1895 = vmatpush2.msra.mxu0 0.0
  %1896 = vmatprep.mubr.f32.mxu0 0.0
  %1897 = vmatmul.mubr.f32.gmra.mxu0 %v984
  %v1898 = vpop.f32.mrf.mxu0
  %v1899 = vadd.f32 1e-05, %v1898
  %v1900 = vpop.f32.mrf.mxu0
  %1901 = vmatprep.mubr.f32.mxu0 0.0
  %1902 = vmatmul.mubr.f32.gmra.mxu0 %v987
  %v1903 = vpop.f32.mrf.mxu0
  %v1904 = vadd.f32 1e-05, %v1903
  %v1905 = vpop.f32.mrf.mxu0
  %1906 = vdwg.mxu0
  %v1907 = vrcp.pop %v1899
  %v1908 = vrcp.pop %v1904
  %v1909 = vmul.f32 %v1899, %v1907
  %v1910 = vmul.f32 %v1904, %v1908
  %v1911 = vsub.f32 2.0, %v1909
  %v1912 = vsub.f32 2.0, %v1910
  %v1913 = vmul.f32 %v1907, %v1911
  %v1914 = vmul.f32 %v1908, %v1912
  %1916 = vset.pattern.permute.xlu0 0
  %1917 = vperm.xlu0 %1916, %v1913
  %v1918 = vpop.permute.xlu0 %1917
  %1921 = vset.pattern.permute.xlu0 0
  %1922 = vperm.xlu0 %1921, %v1914
  %v1923 = vpop.permute.xlu0 %1922
  %v1925 = vmul.f32 %v1739, %v1918
  %v1926 = vmul.f32 %v1740, %v1923
  %1928 = vset.pattern.permute.xlu0 0
  %1929 = vperm.xlu0 %1928, %v1104
  %v1930 = vpop.permute.xlu0 %1929
  %1933 = vset.pattern.permute.xlu0 0
  %1934 = vperm.xlu0 %1933, %v1105
  %v1935 = vpop.permute.xlu0 %1934
  %v1937 = vmul.f32 %v1930, %v1925
  %v1938 = vmul.f32 %v1935, %v1926
  %v1939 = vadd.f32 %v1937, %v1731
  %v1940 = vadd.f32 %v1938, %v1736
  %s1941 = scalar_lea.vmem %s9, 16
  %v1942 = vld [vmem:[%s1941] sm:$0xff]
  %s1943 = scalar_lea.vmem %s10, 32
  %v1944 = vld [vmem:[%s1943] sm:$0xff]
  %v1945 = vld [vmem:[%s1943 + $0x8] sm:$0x3]
  %v1947 = vsel %vm82, %v1940, 0
  %1949 = vmatprep.subr.mxu0 0.0
  %1950 = vmatpush1.msra.mxu0 0.0
  %1951 = vmatprep.subr.mxu0 0.0
  %1952 = vmatpush1.msra.mxu0 0.0
  %1953 = vmatprep.subr.mxu0 0.0
  %1954 = vmatpush1.msra.mxu0 0.0
  %1955 = vmatprep.subr.mxu0 0.0
  %1956 = vmatpush1.msra.mxu0 0.0
  %1957 = vmatprep.subr.mxu0 0.0
  %1958 = vmatpush1.msra.mxu0 0.0
  %1959 = vmatprep.subr.mxu0 0.0
  %1960 = vmatpush1.msra.mxu0 0.0
  %1961 = vmatprep.subr.mxu0 0.0
  %1962 = vmatpush1.msra.mxu0 0.0
  %1963 = vmatprep.subr.mxu0 0.0
  %1964 = vmatpush1.msra.mxu0 0.0
  %1965 = vmatprep.subr.mxu0 0.0
  %1966 = vmatpush1.msra.mxu0 0.0
  %1967 = vmatprep.subr.mxu0 0.0
  %1968 = vmatpush1.msra.mxu0 0.0
  %1969 = vmatprep.subr.mxu0 0.0
  %1970 = vmatpush1.msra.mxu0 0.0
  %1971 = vmatprep.subr.mxu0 0.0
  %1972 = vmatpush1.msra.mxu0 0.0
  %1973 = vmatprep.subr.mxu0 0.0
  %1974 = vmatpush1.msra.mxu0 0.0
  %1975 = vmatprep.subr.mxu0 0.0
  %1976 = vmatpush1.msra.mxu0 0.0
  %1977 = vmatprep.subr.mxu0 0.0
  %1978 = vmatpush1.msra.mxu0 %v1947
  %1979 = vmatprep.subr.mxu0 0.0
  %1980 = vmatpush1.msra.mxu0 %v1939
  %1981 = vmatprep.subr.mxu0 0.0
  %1982 = vmatpush2.msra.mxu0 0.0
  %1983 = vmatprep.subr.mxu0 0.0
  %1984 = vmatpush2.msra.mxu0 0.0
  %1985 = vmatprep.subr.mxu0 0.0
  %1986 = vmatpush2.msra.mxu0 0.0
  %1987 = vmatprep.subr.mxu0 0.0
  %1988 = vmatpush2.msra.mxu0 0.0
  %1989 = vmatprep.subr.mxu0 0.0
  %1990 = vmatpush2.msra.mxu0 0.0
  %1991 = vmatprep.subr.mxu0 0.0
  %1992 = vmatpush2.msra.mxu0 0.0
  %1993 = vmatprep.subr.mxu0 0.0
  %1994 = vmatpush2.msra.mxu0 0.0
  %1995 = vmatprep.subr.mxu0 0.0
  %1996 = vmatpush2.msra.mxu0 0.0
  %1997 = vmatprep.subr.mxu0 0.0
  %1998 = vmatpush2.msra.mxu0 0.0
  %1999 = vmatprep.subr.mxu0 0.0
  %2000 = vmatpush2.msra.mxu0 0.0
  %2001 = vmatprep.subr.mxu0 0.0
  %2002 = vmatpush2.msra.mxu0 0.0
  %2003 = vmatprep.subr.mxu0 0.0
  %2004 = vmatpush2.msra.mxu0 0.0
  %2005 = vmatprep.subr.mxu0 0.0
  %2006 = vmatpush2.msra.mxu0 0.0
  %2007 = vmatprep.subr.mxu0 0.0
  %2008 = vmatpush2.msra.mxu0 0.0
  %2009 = vmatprep.subr.mxu0 0.0
  %2010 = vmatpush2.msra.mxu0 0.0
  %2011 = vmatprep.subr.mxu0 0.0
  %2012 = vmatpush2.msra.mxu0 0.0
  %2013 = vmatprep.mubr.f32.mxu0 0.0
  %2014 = vmatmul.mubr.f32.gmra.mxu0 %v68
  %v2015 = vpop.f32.mrf.mxu0
  %v2016 = vadd.f32 0.0, %v2015
  %v2017 = vpop.f32.mrf.mxu0
  %2018 = vmatprep.mubr.f32.mxu0 0.0
  %2019 = vmatmul.mubr.f32.gmra.mxu0 %v71
  %v2020 = vpop.f32.mrf.mxu0
  %v2021 = vadd.f32 0.0, %v2020
  %v2022 = vpop.f32.mrf.mxu0
  %2023 = vmatprep.mubr.f32.mxu0 0.0
  %2024 = vmatmul.mubr.f32.gmra.mxu0 %v74
  %v2025 = vpop.f32.mrf.mxu0
  %v2026 = vadd.f32 0.0, %v2025
  %v2027 = vpop.f32.mrf.mxu0
  %2028 = vmatprep.mubr.f32.mxu0 0.0
  %2029 = vmatmul.mubr.f32.gmra.mxu0 %v77
  %v2030 = vpop.f32.mrf.mxu0
  %v2031 = vadd.f32 0.0, %v2030
  %v2032 = vpop.f32.mrf.mxu0
  %2033 = vmatprep.mubr.f32.mxu0 0.0
  %2034 = vmatmul.mubr.f32.gmra.mxu0 %v80
  %v2035 = vpop.f32.mrf.mxu0
  %v2036 = vadd.f32 0.0, %v2035
  %v2037 = vpop.f32.mrf.mxu0
  %2038 = vdwg.mxu0
  %2039 = vmatprep.subr.mxu0 0.0
  %2040 = vmatpush1.msra.mxu0 0.0
  %2041 = vmatprep.subr.mxu0 0.0
  %2042 = vmatpush1.msra.mxu0 0.0
  %2043 = vmatprep.subr.mxu0 0.0
  %2044 = vmatpush1.msra.mxu0 0.0
  %2045 = vmatprep.subr.mxu0 0.0
  %2046 = vmatpush1.msra.mxu0 0.0
  %2047 = vmatprep.subr.mxu0 0.0
  %2048 = vmatpush1.msra.mxu0 0.0
  %2049 = vmatprep.subr.mxu0 0.0
  %2050 = vmatpush1.msra.mxu0 0.0
  %2051 = vmatprep.subr.mxu0 0.0
  %2052 = vmatpush1.msra.mxu0 0.0
  %2053 = vmatprep.subr.mxu0 0.0
  %2054 = vmatpush1.msra.mxu0 0.0
  %2055 = vmatprep.subr.mxu0 0.0
  %2056 = vmatpush1.msra.mxu0 0.0
  %2057 = vmatprep.subr.mxu0 0.0
  %2058 = vmatpush1.msra.mxu0 0.0
  %2059 = vmatprep.subr.mxu0 0.0
  %2060 = vmatpush1.msra.mxu0 0.0
  %2061 = vmatprep.subr.mxu0 0.0
  %2062 = vmatpush1.msra.mxu0 0.0
  %2063 = vmatprep.subr.mxu0 0.0
  %2064 = vmatpush1.msra.mxu0 0.0
  %2065 = vmatprep.subr.mxu0 0.0
  %2066 = vmatpush1.msra.mxu0 0.0
  %2067 = vmatprep.subr.mxu0 0.0
  %2068 = vmatpush1.msra.mxu0 %v1947
  %2069 = vmatprep.subr.mxu0 0.0
  %2070 = vmatpush1.msra.mxu0 %v1939
  %2071 = vmatprep.subr.mxu0 0.0
  %2072 = vmatpush2.msra.mxu0 0.0
  %2073 = vmatprep.subr.mxu0 0.0
  %2074 = vmatpush2.msra.mxu0 0.0
  %2075 = vmatprep.subr.mxu0 0.0
  %2076 = vmatpush2.msra.mxu0 0.0
  %2077 = vmatprep.subr.mxu0 0.0
  %2078 = vmatpush2.msra.mxu0 0.0
  %2079 = vmatprep.subr.mxu0 0.0
  %2080 = vmatpush2.msra.mxu0 0.0
  %2081 = vmatprep.subr.mxu0 0.0
  %2082 = vmatpush2.msra.mxu0 0.0
  %2083 = vmatprep.subr.mxu0 0.0
  %2084 = vmatpush2.msra.mxu0 0.0
  %2085 = vmatprep.subr.mxu0 0.0
  %2086 = vmatpush2.msra.mxu0 0.0
  %2087 = vmatprep.subr.mxu0 0.0
  %2088 = vmatpush2.msra.mxu0 0.0
  %2089 = vmatprep.subr.mxu0 0.0
  %2090 = vmatpush2.msra.mxu0 0.0
  %2091 = vmatprep.subr.mxu0 0.0
  %2092 = vmatpush2.msra.mxu0 0.0
  %2093 = vmatprep.subr.mxu0 0.0
  %2094 = vmatpush2.msra.mxu0 0.0
  %2095 = vmatprep.subr.mxu0 0.0
  %2096 = vmatpush2.msra.mxu0 0.0
  %2097 = vmatprep.subr.mxu0 0.0
  %2098 = vmatpush2.msra.mxu0 0.0
  %2099 = vmatprep.subr.mxu0 0.0
  %2100 = vmatpush2.msra.mxu0 0.0
  %2101 = vmatprep.subr.mxu0 0.0
  %2102 = vmatpush2.msra.mxu0 0.0
  %2103 = vmatprep.mubr.f32.mxu0 0.0
  %2104 = vmatmul.mubr.f32.gmra.mxu0 %v177
  %v2105 = vpop.f32.mrf.mxu0
  %v2106 = vadd.f32 0.0, %v2105
  %v2107 = vpop.f32.mrf.mxu0
  %2108 = vmatprep.mubr.f32.mxu0 0.0
  %2109 = vmatmul.mubr.f32.gmra.mxu0 %v180
  %v2110 = vpop.f32.mrf.mxu0
  %v2111 = vadd.f32 0.0, %v2110
  %v2112 = vpop.f32.mrf.mxu0
  %2113 = vmatprep.mubr.f32.mxu0 0.0
  %2114 = vmatmul.mubr.f32.gmra.mxu0 %v183
  %v2115 = vpop.f32.mrf.mxu0
  %v2116 = vadd.f32 0.0, %v2115
  %v2117 = vpop.f32.mrf.mxu0
  %2118 = vmatprep.mubr.f32.mxu0 0.0
  %2119 = vmatmul.mubr.f32.gmra.mxu0 %v186
  %v2120 = vpop.f32.mrf.mxu0
  %v2121 = vadd.f32 0.0, %v2120
  %v2122 = vpop.f32.mrf.mxu0
  %2123 = vmatprep.mubr.f32.mxu0 0.0
  %2124 = vmatmul.mubr.f32.gmra.mxu0 %v189
  %v2125 = vpop.f32.mrf.mxu0
  %v2126 = vadd.f32 0.0, %v2125
  %v2127 = vpop.f32.mrf.mxu0
  %2128 = vdwg.mxu0
  %v2129 = vsub.f32 %v2016, %v2106
  %v2130 = vsub.f32 %v2021, %v2111
  %v2131 = vsub.f32 %v2026, %v2116
  %v2132 = vsub.f32 %v2031, %v2121
  %v2133 = vsub.f32 %v2036, %v2126
  %v2134 = vmul.f32 %v2129, %v2129
  %v2135 = vmul.f32 %v2130, %v2130
  %v2136 = vmul.f32 %v2131, %v2131
  %v2137 = vmul.f32 %v2132, %v2132
  %v2138 = vmul.f32 %v2133, %v2133
  %v2139 = vsel %vm291, %v2134, 0.0
  %2140 = vadd.xlane.f32.xlu0 %v2139
  %v2141 = vpop.xlane.xlu0 %2140
  %v2142 = vsel %vm291, %v2135, 0.0
  %2143 = vadd.xlane.f32.xlu0 %v2142
  %v2144 = vpop.xlane.xlu0 %2143
  %v2145 = vsel %vm291, %v2136, 0.0
  %2146 = vadd.xlane.f32.xlu0 %v2145
  %v2147 = vpop.xlane.xlu0 %2146
  %v2148 = vsel %vm291, %v2137, 0.0
  %2149 = vadd.xlane.f32.xlu0 %v2148
  %v2150 = vpop.xlane.xlu0 %2149
  %v2151 = vsel %vm291, %v2138, 0.0
  %2152 = vadd.xlane.f32.xlu0 %v2151
  %v2153 = vpop.xlane.xlu0 %2152
  %v2154 = vrsqrt.pop %v2141
  %v2155 = vmul.f32 %v2141, %v2154
  %vm2156 = vcmp.eq.f32.partialorder %v2141, inf
  %v2157 = vsel %vm2156, %v2141, %v2155
  %vm2158 = vcmp.eq.f32.partialorder %v2141, 0.0
  %v2159 = vand.u32 %v2141, 2147483648
  %v2160 = vsel %vm2158, %v2159, %v2157
  %v2161 = vrsqrt.pop %v2144
  %v2162 = vmul.f32 %v2144, %v2161
  %vm2163 = vcmp.eq.f32.partialorder %v2144, inf
  %v2164 = vsel %vm2163, %v2144, %v2162
  %vm2165 = vcmp.eq.f32.partialorder %v2144, 0.0
  %v2166 = vand.u32 %v2144, 2147483648
  %v2167 = vsel %vm2165, %v2166, %v2164
  %v2168 = vrsqrt.pop %v2147
  %v2169 = vmul.f32 %v2147, %v2168
  %vm2170 = vcmp.eq.f32.partialorder %v2147, inf
  %v2171 = vsel %vm2170, %v2147, %v2169
  %vm2172 = vcmp.eq.f32.partialorder %v2147, 0.0
  %v2173 = vand.u32 %v2147, 2147483648
  %v2174 = vsel %vm2172, %v2173, %v2171
  %v2175 = vrsqrt.pop %v2150
  %v2176 = vmul.f32 %v2150, %v2175
  %vm2177 = vcmp.eq.f32.partialorder %v2150, inf
  %v2178 = vsel %vm2177, %v2150, %v2176
  %vm2179 = vcmp.eq.f32.partialorder %v2150, 0.0
  %v2180 = vand.u32 %v2150, 2147483648
  %v2181 = vsel %vm2179, %v2180, %v2178
  %v2182 = vrsqrt.pop %v2153
  %v2183 = vmul.f32 %v2153, %v2182
  %vm2184 = vcmp.eq.f32.partialorder %v2153, inf
  %v2185 = vsel %vm2184, %v2153, %v2183
  %vm2186 = vcmp.eq.f32.partialorder %v2153, 0.0
  %v2187 = vand.u32 %v2153, 2147483648
  %v2188 = vsel %vm2186, %v2187, %v2185
  %v2189 = vlaneseq
  %v2190 = vshrl.u32 %v2189, 7
  %v2191 = vsub.s32 0, %v2190
  %v2192 = vrot.slane %v1942, %v2191
  %v2193 = vmul.f32 %v2160, %v2192
  %v2194 = vmul.f32 %v2167, %v2192
  %v2195 = vmul.f32 %v2174, %v2192
  %v2196 = vmul.f32 %v2181, %v2192
  %v2197 = vmul.f32 %v2188, %v2192
  %v2198 = vlaneseq
  %v2199 = vshrl.u32 %v2198, 7
  %v2200 = vsub.s32 1, %v2199
  %v2201 = vrot.slane %v1942, %v2200
  %v2202 = vmul.f32 %v354, %v2201
  %v2203 = vmul.f32 %v359, %v2201
  %v2204 = vmul.f32 %v364, %v2201
  %v2205 = vmul.f32 %v369, %v2201
  %v2206 = vmul.f32 %v374, %v2201
  %v2207 = vadd.f32 %v2193, %v2202
  %v2208 = vadd.f32 %v2194, %v2203
  %v2209 = vadd.f32 %v2195, %v2204
  %v2210 = vadd.f32 %v2196, %v2205
  %v2211 = vadd.f32 %v2197, %v2206
  %v2212 = vlaneseq
  %v2213 = vshrl.u32 %v2212, 7
  %v2214 = vsub.s32 2, %v2213
  %v2215 = vrot.slane %v1942, %v2214
  %v2216 = vadd.f32 %v2207, %v2215
  %v2217 = vadd.f32 %v2208, %v2215
  %v2218 = vadd.f32 %v2209, %v2215
  %v2219 = vadd.f32 %v2210, %v2215
  %v2220 = vadd.f32 %v2211, %v2215
  %v2221 = vxor.u32 %v2216, 2147483648
  %v2222 = vxor.u32 %v2217, 2147483648
  %v2223 = vxor.u32 %v2218, 2147483648
  %v2224 = vxor.u32 %v2219, 2147483648
  %v2225 = vxor.u32 %v2220, 2147483648
  %v2226 = vmul.f32 %v2221, 1.442695
  %v2227 = vpow.pop %v2226
  %v2228 = vmul.f32 %v2222, 1.442695
  %v2229 = vpow.pop %v2228
  %v2230 = vmul.f32 %v2223, 1.442695
  %v2231 = vpow.pop %v2230
  %v2232 = vmul.f32 %v2224, 1.442695
  %v2233 = vpow.pop %v2232
  %v2234 = vmul.f32 %v2225, 1.442695
  %v2235 = vpow.pop %v2234
  %v2236 = vadd.f32 %v2227, 1.0
  %v2237 = vadd.f32 %v2229, 1.0
  %v2238 = vadd.f32 %v2231, 1.0
  %v2239 = vadd.f32 %v2233, 1.0
  %v2240 = vadd.f32 %v2235, 1.0
  %v2241 = vrcp.pop %v2236
  %v2242 = vmul.f32 1.0, %v2241
  %v2243 = vrcp.pop %v2237
  %v2244 = vmul.f32 1.0, %v2243
  %v2245 = vrcp.pop %v2238
  %v2246 = vmul.f32 1.0, %v2245
  %v2247 = vrcp.pop %v2239
  %v2248 = vmul.f32 1.0, %v2247
  %v2249 = vrcp.pop %v2240
  %v2250 = vmul.f32 1.0, %v2249
  %v2251 = vmul.f32 %v2216, %v2242
  %v2252 = vmul.f32 %v2217, %v2244
  %v2253 = vmul.f32 %v2218, %v2246
  %v2254 = vmul.f32 %v2219, %v2248
  %v2255 = vmul.f32 %v2220, %v2250
  %v2256 = vlaneseq
  %v2257 = vshrl.u32 %v2256, 7
  %v2258 = vsub.s32 3, %v2257
  %v2259 = vrot.slane %v1942, %v2258
  %v2260 = vmul.f32 %v2251, %v2259
  %v2261 = vmul.f32 %v2252, %v2259
  %v2262 = vmul.f32 %v2253, %v2259
  %v2263 = vmul.f32 %v2254, %v2259
  %v2264 = vmul.f32 %v2255, %v2259
  %v2265 = vsel %vm443, %v2260, 0.0
  %2266 = vadd.xlane.f32.xlu0 %v2265
  %v2267 = vpop.xlane.xlu0 %2266
  %v2268 = vsel %vm443, %v2261, 0.0
  %2269 = vadd.xlane.f32.xlu0 %v2268
  %v2270 = vpop.xlane.xlu0 %2269
  %v2271 = vsel %vm443, %v2262, 0.0
  %2272 = vadd.xlane.f32.xlu0 %v2271
  %v2273 = vpop.xlane.xlu0 %2272
  %v2274 = vsel %vm443, %v2263, 0.0
  %2275 = vadd.xlane.f32.xlu0 %v2274
  %v2276 = vpop.xlane.xlu0 %2275
  %v2277 = vsel %vm443, %v2264, 0.0
  %2278 = vadd.xlane.f32.xlu0 %v2277
  %v2279 = vpop.xlane.xlu0 %2278
  %v2280 = vtanh.pop %v2267
  %v2281 = vtanh.pop %v2270
  %v2282 = vtanh.pop %v2273
  %v2283 = vtanh.pop %v2276
  %v2284 = vtanh.pop %v2279
  %v2285 = vmul.f32 %v2129, %v2280
  %v2286 = vmul.f32 %v2130, %v2281
  %v2287 = vmul.f32 %v2131, %v2282
  %v2288 = vmul.f32 %v2132, %v2283
  %v2289 = vmul.f32 %v2133, %v2284
  %2290 = vmatprep.subr.mxu0 0.0
  %2291 = vmatpush1.msra.mxu0 0.0
  %2292 = vmatprep.subr.mxu0 0.0
  %2293 = vmatpush1.msra.mxu0 0.0
  %2294 = vmatprep.subr.mxu0 0.0
  %2295 = vmatpush1.msra.mxu0 0.0
  %2296 = vmatprep.subr.mxu0 0.0
  %2297 = vmatpush1.msra.mxu0 0.0
  %2298 = vmatprep.subr.mxu0 0.0
  %2299 = vmatpush1.msra.mxu0 0.0
  %2300 = vmatprep.subr.mxu0 0.0
  %2301 = vmatpush1.msra.mxu0 0.0
  %2302 = vmatprep.subr.mxu0 0.0
  %2303 = vmatpush1.msra.mxu0 0.0
  %2304 = vmatprep.subr.mxu0 0.0
  %2305 = vmatpush1.msra.mxu0 0.0
  %2306 = vmatprep.subr.mxu0 0.0
  %2307 = vmatpush1.msra.mxu0 0.0
  %2308 = vmatprep.subr.mxu0 0.0
  %2309 = vmatpush1.msra.mxu0 0.0
  %2310 = vmatprep.subr.mxu0 0.0
  %2311 = vmatpush1.msra.mxu0 0.0
  %2312 = vmatprep.subr.mxu0 0.0
  %2313 = vmatpush1.msra.mxu0 %v2289
  %2314 = vmatprep.subr.mxu0 0.0
  %2315 = vmatpush1.msra.mxu0 %v2288
  %2316 = vmatprep.subr.mxu0 0.0
  %2317 = vmatpush1.msra.mxu0 %v2287
  %2318 = vmatprep.subr.mxu0 0.0
  %2319 = vmatpush1.msra.mxu0 %v2286
  %2320 = vmatprep.subr.mxu0 0.0
  %2321 = vmatpush1.msra.mxu0 %v2285
  %2322 = vmatprep.subr.mxu0 0.0
  %2323 = vmatpush2.msra.mxu0 0.0
  %2324 = vmatprep.subr.mxu0 0.0
  %2325 = vmatpush2.msra.mxu0 0.0
  %2326 = vmatprep.subr.mxu0 0.0
  %2327 = vmatpush2.msra.mxu0 0.0
  %2328 = vmatprep.subr.mxu0 0.0
  %2329 = vmatpush2.msra.mxu0 0.0
  %2330 = vmatprep.subr.mxu0 0.0
  %2331 = vmatpush2.msra.mxu0 0.0
  %2332 = vmatprep.subr.mxu0 0.0
  %2333 = vmatpush2.msra.mxu0 0.0
  %2334 = vmatprep.subr.mxu0 0.0
  %2335 = vmatpush2.msra.mxu0 0.0
  %2336 = vmatprep.subr.mxu0 0.0
  %2337 = vmatpush2.msra.mxu0 0.0
  %2338 = vmatprep.subr.mxu0 0.0
  %2339 = vmatpush2.msra.mxu0 0.0
  %2340 = vmatprep.subr.mxu0 0.0
  %2341 = vmatpush2.msra.mxu0 0.0
  %2342 = vmatprep.subr.mxu0 0.0
  %2343 = vmatpush2.msra.mxu0 0.0
  %2344 = vmatprep.subr.mxu0 0.0
  %2345 = vmatpush2.msra.mxu0 0.0
  %2346 = vmatprep.subr.mxu0 0.0
  %2347 = vmatpush2.msra.mxu0 0.0
  %2348 = vmatprep.subr.mxu0 0.0
  %2349 = vmatpush2.msra.mxu0 0.0
  %2350 = vmatprep.subr.mxu0 0.0
  %2351 = vmatpush2.msra.mxu0 0.0
  %2352 = vmatprep.subr.mxu0 0.0
  %2353 = vmatpush2.msra.mxu0 0.0
  %2354 = vmatprep.mubr.f32.mxu0 0.0
  %2355 = vmatmul.mubr.f32.gmra.mxu0 %v503
  %v2356 = vpop.f32.mrf.mxu0
  %v2357 = vadd.f32 0.0, %v2356
  %v2358 = vpop.f32.mrf.mxu0
  %2359 = vmatprep.mubr.f32.mxu0 0.0
  %2360 = vmatmul.mubr.f32.gmra.mxu0 %v506
  %v2361 = vpop.f32.mrf.mxu0
  %v2362 = vadd.f32 0.0, %v2361
  %v2363 = vpop.f32.mrf.mxu0
  %2364 = vdwg.mxu0
  %v2365 = vmul.f32 %v2357, %v586
  %v2366 = vmul.f32 %v2362, %v591
  %v2367 = vadd.f32 %v1939, %v2365
  %v2368 = vadd.f32 %v1940, %v2366
  %v2369 = vlaneseq
  %v2370 = vshrl.u32 %v2369, 7
  %v2371 = vsub.s32 4, %v2370
  %v2372 = vrot.slane %v1942, %v2371
  %v2373 = vmul.f32 %v600, %v2372
  %v2374 = vmul.f32 %v605, %v2372
  %v2375 = vlaneseq
  %v2376 = vshrl.u32 %v2375, 7
  %v2377 = vsub.s32 5, %v2376
  %v2378 = vrot.slane %v1942, %v2377
  %v2379 = vadd.f32 %v2373, %v2378
  %v2380 = vadd.f32 %v2374, %v2378
  %v2381 = vxor.u32 %v2379, 2147483648
  %v2382 = vxor.u32 %v2380, 2147483648
  %v2383 = vmul.f32 %v2381, 1.442695
  %v2384 = vpow.pop %v2383
  %v2385 = vmul.f32 %v2382, 1.442695
  %v2386 = vpow.pop %v2385
  %v2387 = vadd.f32 %v2384, 1.0
  %v2388 = vadd.f32 %v2386, 1.0
  %v2389 = vrcp.pop %v2387
  %v2390 = vmul.f32 1.0, %v2389
  %v2391 = vrcp.pop %v2388
  %v2392 = vmul.f32 1.0, %v2391
  %v2393 = vmul.f32 %v2379, %v2390
  %v2394 = vmul.f32 %v2380, %v2392
  %v2395 = vlaneseq
  %v2396 = vshrl.u32 %v2395, 7
  %v2397 = vsub.s32 6, %v2396
  %v2398 = vrot.slane %v1942, %v2397
  %v2399 = vmul.f32 %v2393, %v2398
  %v2400 = vmul.f32 %v2394, %v2398
  %v2401 = vsel %vm443, %v2399, 0.0
  %2402 = vadd.xlane.f32.xlu0 %v2401
  %v2403 = vpop.xlane.xlu0 %2402
  %v2404 = vsel %vm642, %v2400, 0.0
  %2405 = vadd.xlane.f32.xlu0 %v2404
  %v2406 = vpop.xlane.xlu0 %2405
  %v2407 = vlaneseq
  %v2408 = vshrl.u32 %v2407, 7
  %v2409 = vsub.s32 7, %v2408
  %v2410 = vrot.slane %v1942, %v2409
  %v2411 = vadd.f32 %v2403, %v2410
  %v2412 = vadd.f32 %v2406, %v2410
  %2414 = vset.pattern.permute.xlu0 0
  %2415 = vperm.xlu0 %2414, %v2411
  %v2416 = vpop.permute.xlu0 %2415
  %2419 = vset.pattern.permute.xlu0 0
  %2420 = vperm.xlu0 %2419, %v2412
  %v2421 = vpop.permute.xlu0 %2420
  %v2423 = vmul.f32 %v40, %v2416
  %v2424 = vmul.f32 %v41, %v2421
  %v2425 = vadd.f32 %v2367, %v2423
  %v2426 = vadd.f32 %v2368, %v2424
  %v2428 = vsel %vm82, %v2426, 0
  %2430 = vmatprep.subr.mxu0 0.0
  %2431 = vmatpush1.msra.mxu0 0.0
  %2432 = vmatprep.subr.mxu0 0.0
  %2433 = vmatpush1.msra.mxu0 0.0
  %2434 = vmatprep.subr.mxu0 0.0
  %2435 = vmatpush1.msra.mxu0 0.0
  %2436 = vmatprep.subr.mxu0 0.0
  %2437 = vmatpush1.msra.mxu0 0.0
  %2438 = vmatprep.subr.mxu0 0.0
  %2439 = vmatpush1.msra.mxu0 0.0
  %2440 = vmatprep.subr.mxu0 0.0
  %2441 = vmatpush1.msra.mxu0 0.0
  %2442 = vmatprep.subr.mxu0 0.0
  %2443 = vmatpush1.msra.mxu0 0.0
  %2444 = vmatprep.subr.mxu0 0.0
  %2445 = vmatpush1.msra.mxu0 0.0
  %2446 = vmatprep.subr.mxu0 0.0
  %2447 = vmatpush1.msra.mxu0 0.0
  %2448 = vmatprep.subr.mxu0 0.0
  %2449 = vmatpush1.msra.mxu0 0.0
  %2450 = vmatprep.subr.mxu0 0.0
  %2451 = vmatpush1.msra.mxu0 0.0
  %2452 = vmatprep.subr.mxu0 0.0
  %2453 = vmatpush1.msra.mxu0 0.0
  %2454 = vmatprep.subr.mxu0 0.0
  %2455 = vmatpush1.msra.mxu0 0.0
  %2456 = vmatprep.subr.mxu0 0.0
  %2457 = vmatpush1.msra.mxu0 0.0
  %2458 = vmatprep.subr.mxu0 0.0
  %2459 = vmatpush1.msra.mxu0 %v2428
  %2460 = vmatprep.subr.mxu0 0.0
  %2461 = vmatpush1.msra.mxu0 %v2425
  %2462 = vmatprep.subr.mxu0 0.0
  %2463 = vmatpush2.msra.mxu0 0.0
  %2464 = vmatprep.subr.mxu0 0.0
  %2465 = vmatpush2.msra.mxu0 0.0
  %2466 = vmatprep.subr.mxu0 0.0
  %2467 = vmatpush2.msra.mxu0 0.0
  %2468 = vmatprep.subr.mxu0 0.0
  %2469 = vmatpush2.msra.mxu0 0.0
  %2470 = vmatprep.subr.mxu0 0.0
  %2471 = vmatpush2.msra.mxu0 0.0
  %2472 = vmatprep.subr.mxu0 0.0
  %2473 = vmatpush2.msra.mxu0 0.0
  %2474 = vmatprep.subr.mxu0 0.0
  %2475 = vmatpush2.msra.mxu0 0.0
  %2476 = vmatprep.subr.mxu0 0.0
  %2477 = vmatpush2.msra.mxu0 0.0
  %2478 = vmatprep.subr.mxu0 0.0
  %2479 = vmatpush2.msra.mxu0 0.0
  %2480 = vmatprep.subr.mxu0 0.0
  %2481 = vmatpush2.msra.mxu0 0.0
  %2482 = vmatprep.subr.mxu0 0.0
  %2483 = vmatpush2.msra.mxu0 0.0
  %2484 = vmatprep.subr.mxu0 0.0
  %2485 = vmatpush2.msra.mxu0 0.0
  %2486 = vmatprep.subr.mxu0 0.0
  %2487 = vmatpush2.msra.mxu0 0.0
  %2488 = vmatprep.subr.mxu0 0.0
  %2489 = vmatpush2.msra.mxu0 0.0
  %2490 = vmatprep.subr.mxu0 0.0
  %2491 = vmatpush2.msra.mxu0 0.0
  %2492 = vmatprep.subr.mxu0 0.0
  %2493 = vmatpush2.msra.mxu0 0.0
  %2494 = vmatprep.mubr.f32.mxu0 0.0
  %2495 = vmatmul.mubr.f32.gmra.mxu0 %v667
  %v2496 = vpop.f32.mrf.mxu0
  %v2497 = vadd.f32 0.0, %v2496
  %v2498 = vpop.f32.mrf.mxu0
  %2499 = vdwg.mxu0
  %v2500 = vmul.f32 %v2497, 0.2
  %v2502 = vsel %vm82, %v2500, 0
  %2504 = vmatprep.subr.mxu0 0.0
  %2505 = vmatpush1.msra.mxu0 0.0
  %2506 = vmatprep.subr.mxu0 0.0
  %2507 = vmatpush1.msra.mxu0 0.0
  %2508 = vmatprep.subr.mxu0 0.0
  %2509 = vmatpush1.msra.mxu0 0.0
  %2510 = vmatprep.subr.mxu0 0.0
  %2511 = vmatpush1.msra.mxu0 0.0
  %2512 = vmatprep.subr.mxu0 0.0
  %2513 = vmatpush1.msra.mxu0 0.0
  %2514 = vmatprep.subr.mxu0 0.0
  %2515 = vmatpush1.msra.mxu0 0.0
  %2516 = vmatprep.subr.mxu0 0.0
  %2517 = vmatpush1.msra.mxu0 0.0
  %2518 = vmatprep.subr.mxu0 0.0
  %2519 = vmatpush1.msra.mxu0 0.0
  %2520 = vmatprep.subr.mxu0 0.0
  %2521 = vmatpush1.msra.mxu0 0.0
  %2522 = vmatprep.subr.mxu0 0.0
  %2523 = vmatpush1.msra.mxu0 0.0
  %2524 = vmatprep.subr.mxu0 0.0
  %2525 = vmatpush1.msra.mxu0 0.0
  %2526 = vmatprep.subr.mxu0 0.0
  %2527 = vmatpush1.msra.mxu0 0.0
  %2528 = vmatprep.subr.mxu0 0.0
  %2529 = vmatpush1.msra.mxu0 0.0
  %2530 = vmatprep.subr.mxu0 0.0
  %2531 = vmatpush1.msra.mxu0 0.0
  %2532 = vmatprep.subr.mxu0 0.0
  %2533 = vmatpush1.msra.mxu0 0.0
  %2534 = vmatprep.subr.mxu0 0.0
  %2535 = vmatpush1.msra.mxu0 %v2502
  %2536 = vmatprep.subr.mxu0 0.0
  %2537 = vmatpush2.msra.mxu0 0.0
  %2538 = vmatprep.subr.mxu0 0.0
  %2539 = vmatpush2.msra.mxu0 0.0
  %2540 = vmatprep.subr.mxu0 0.0
  %2541 = vmatpush2.msra.mxu0 0.0
  %2542 = vmatprep.subr.mxu0 0.0
  %2543 = vmatpush2.msra.mxu0 0.0
  %2544 = vmatprep.subr.mxu0 0.0
  %2545 = vmatpush2.msra.mxu0 0.0
  %2546 = vmatprep.subr.mxu0 0.0
  %2547 = vmatpush2.msra.mxu0 0.0
  %2548 = vmatprep.subr.mxu0 0.0
  %2549 = vmatpush2.msra.mxu0 0.0
  %2550 = vmatprep.subr.mxu0 0.0
  %2551 = vmatpush2.msra.mxu0 0.0
  %2552 = vmatprep.subr.mxu0 0.0
  %2553 = vmatpush2.msra.mxu0 0.0
  %2554 = vmatprep.subr.mxu0 0.0
  %2555 = vmatpush2.msra.mxu0 0.0
  %2556 = vmatprep.subr.mxu0 0.0
  %2557 = vmatpush2.msra.mxu0 0.0
  %2558 = vmatprep.subr.mxu0 0.0
  %2559 = vmatpush2.msra.mxu0 0.0
  %2560 = vmatprep.subr.mxu0 0.0
  %2561 = vmatpush2.msra.mxu0 0.0
  %2562 = vmatprep.subr.mxu0 0.0
  %2563 = vmatpush2.msra.mxu0 0.0
  %2564 = vmatprep.subr.mxu0 0.0
  %2565 = vmatpush2.msra.mxu0 0.0
  %2566 = vmatprep.subr.mxu0 0.0
  %2567 = vmatpush2.msra.mxu0 0.0
  %2568 = vmatprep.mubr.f32.mxu0 0.0
  %2569 = vmatmul.mubr.f32.gmra.mxu0 %v777
  %v2570 = vpop.f32.mrf.mxu0
  %v2571 = vadd.f32 0.0, %v2570
  %v2572 = vpop.f32.mrf.mxu0
  %2573 = vmatprep.mubr.f32.mxu0 0.0
  %2574 = vmatmul.mubr.f32.gmra.mxu0 %v780
  %v2575 = vpop.f32.mrf.mxu0
  %v2576 = vadd.f32 0.0, %v2575
  %v2577 = vpop.f32.mrf.mxu0
  %2578 = vdwg.mxu0
  %v2579 = vsub.f32 %v2425, %v2571
  %v2580 = vsub.f32 %v2426, %v2576
  %v2581 = vmul.f32 %v2579, %v2579
  %v2582 = vmul.f32 %v2580, %v2580
  %v2583 = vsel %vm291, %v2581, 0.0
  %2584 = vadd.xlane.f32.xlu0 %v2583
  %v2585 = vpop.xlane.xlu0 %2584
  %v2586 = vsel %vm867, %v2582, 0.0
  %2587 = vadd.xlane.f32.xlu0 %v2586
  %v2588 = vpop.xlane.xlu0 %2587
  %v2590 = vsel %vm82, %v2588, 0
  %2592 = vmatprep.subr.mxu0 0.0
  %2593 = vmatpush1.msra.mxu0 0.0
  %2594 = vmatprep.subr.mxu0 0.0
  %2595 = vmatpush1.msra.mxu0 0.0
  %2596 = vmatprep.subr.mxu0 0.0
  %2597 = vmatpush1.msra.mxu0 0.0
  %2598 = vmatprep.subr.mxu0 0.0
  %2599 = vmatpush1.msra.mxu0 0.0
  %2600 = vmatprep.subr.mxu0 0.0
  %2601 = vmatpush1.msra.mxu0 0.0
  %2602 = vmatprep.subr.mxu0 0.0
  %2603 = vmatpush1.msra.mxu0 0.0
  %2604 = vmatprep.subr.mxu0 0.0
  %2605 = vmatpush1.msra.mxu0 0.0
  %2606 = vmatprep.subr.mxu0 0.0
  %2607 = vmatpush1.msra.mxu0 0.0
  %2608 = vmatprep.subr.mxu0 0.0
  %2609 = vmatpush1.msra.mxu0 0.0
  %2610 = vmatprep.subr.mxu0 0.0
  %2611 = vmatpush1.msra.mxu0 0.0
  %2612 = vmatprep.subr.mxu0 0.0
  %2613 = vmatpush1.msra.mxu0 0.0
  %2614 = vmatprep.subr.mxu0 0.0
  %2615 = vmatpush1.msra.mxu0 0.0
  %2616 = vmatprep.subr.mxu0 0.0
  %2617 = vmatpush1.msra.mxu0 0.0
  %2618 = vmatprep.subr.mxu0 0.0
  %2619 = vmatpush1.msra.mxu0 0.0
  %2620 = vmatprep.subr.mxu0 0.0
  %2621 = vmatpush1.msra.mxu0 %v2590
  %2622 = vmatprep.subr.mxu0 0.0
  %2623 = vmatpush1.msra.mxu0 %v2585
  %2624 = vmatprep.subr.mxu0 0.0
  %2625 = vmatpush2.msra.mxu0 0.0
  %2626 = vmatprep.subr.mxu0 0.0
  %2627 = vmatpush2.msra.mxu0 0.0
  %2628 = vmatprep.subr.mxu0 0.0
  %2629 = vmatpush2.msra.mxu0 0.0
  %2630 = vmatprep.subr.mxu0 0.0
  %2631 = vmatpush2.msra.mxu0 0.0
  %2632 = vmatprep.subr.mxu0 0.0
  %2633 = vmatpush2.msra.mxu0 0.0
  %2634 = vmatprep.subr.mxu0 0.0
  %2635 = vmatpush2.msra.mxu0 0.0
  %2636 = vmatprep.subr.mxu0 0.0
  %2637 = vmatpush2.msra.mxu0 0.0
  %2638 = vmatprep.subr.mxu0 0.0
  %2639 = vmatpush2.msra.mxu0 0.0
  %2640 = vmatprep.subr.mxu0 0.0
  %2641 = vmatpush2.msra.mxu0 0.0
  %2642 = vmatprep.subr.mxu0 0.0
  %2643 = vmatpush2.msra.mxu0 0.0
  %2644 = vmatprep.subr.mxu0 0.0
  %2645 = vmatpush2.msra.mxu0 0.0
  %2646 = vmatprep.subr.mxu0 0.0
  %2647 = vmatpush2.msra.mxu0 0.0
  %2648 = vmatprep.subr.mxu0 0.0
  %2649 = vmatpush2.msra.mxu0 0.0
  %2650 = vmatprep.subr.mxu0 0.0
  %2651 = vmatpush2.msra.mxu0 0.0
  %2652 = vmatprep.subr.mxu0 0.0
  %2653 = vmatpush2.msra.mxu0 0.0
  %2654 = vmatprep.subr.mxu0 0.0
  %2655 = vmatpush2.msra.mxu0 0.0
  %2656 = vmatprep.mubr.f32.mxu0 0.0
  %2657 = vmatmul.mubr.f32.gmra.mxu0 %v667
  %v2658 = vpop.f32.mrf.mxu0
  %v2659 = vadd.f32 0.0, %v2658
  %v2660 = vpop.f32.mrf.mxu0
  %2661 = vdwg.mxu0
  %v2662 = vrsqrt.pop %v2659
  %v2663 = vmul.f32 %v2659, %v2662
  %vm2664 = vcmp.eq.f32.partialorder %v2659, inf
  %v2665 = vsel %vm2664, %v2659, %v2663
  %vm2666 = vcmp.eq.f32.partialorder %v2659, 0.0
  %v2667 = vand.u32 %v2659, 2147483648
  %v2668 = vsel %vm2666, %v2667, %v2665
  %v2670 = vsel %vm82, %v2668, 0
  %2672 = vmatprep.subr.mxu0 0.0
  %2673 = vmatpush1.msra.mxu0 0.0
  %2674 = vmatprep.subr.mxu0 0.0
  %2675 = vmatpush1.msra.mxu0 0.0
  %2676 = vmatprep.subr.mxu0 0.0
  %2677 = vmatpush1.msra.mxu0 0.0
  %2678 = vmatprep.subr.mxu0 0.0
  %2679 = vmatpush1.msra.mxu0 0.0
  %2680 = vmatprep.subr.mxu0 0.0
  %2681 = vmatpush1.msra.mxu0 0.0
  %2682 = vmatprep.subr.mxu0 0.0
  %2683 = vmatpush1.msra.mxu0 0.0
  %2684 = vmatprep.subr.mxu0 0.0
  %2685 = vmatpush1.msra.mxu0 0.0
  %2686 = vmatprep.subr.mxu0 0.0
  %2687 = vmatpush1.msra.mxu0 0.0
  %2688 = vmatprep.subr.mxu0 0.0
  %2689 = vmatpush1.msra.mxu0 0.0
  %2690 = vmatprep.subr.mxu0 0.0
  %2691 = vmatpush1.msra.mxu0 0.0
  %2692 = vmatprep.subr.mxu0 0.0
  %2693 = vmatpush1.msra.mxu0 0.0
  %2694 = vmatprep.subr.mxu0 0.0
  %2695 = vmatpush1.msra.mxu0 0.0
  %2696 = vmatprep.subr.mxu0 0.0
  %2697 = vmatpush1.msra.mxu0 0.0
  %2698 = vmatprep.subr.mxu0 0.0
  %2699 = vmatpush1.msra.mxu0 0.0
  %2700 = vmatprep.subr.mxu0 0.0
  %2701 = vmatpush1.msra.mxu0 0.0
  %2702 = vmatprep.subr.mxu0 0.0
  %2703 = vmatpush1.msra.mxu0 %v2670
  %2704 = vmatprep.subr.mxu0 0.0
  %2705 = vmatpush2.msra.mxu0 0.0
  %2706 = vmatprep.subr.mxu0 0.0
  %2707 = vmatpush2.msra.mxu0 0.0
  %2708 = vmatprep.subr.mxu0 0.0
  %2709 = vmatpush2.msra.mxu0 0.0
  %2710 = vmatprep.subr.mxu0 0.0
  %2711 = vmatpush2.msra.mxu0 0.0
  %2712 = vmatprep.subr.mxu0 0.0
  %2713 = vmatpush2.msra.mxu0 0.0
  %2714 = vmatprep.subr.mxu0 0.0
  %2715 = vmatpush2.msra.mxu0 0.0
  %2716 = vmatprep.subr.mxu0 0.0
  %2717 = vmatpush2.msra.mxu0 0.0
  %2718 = vmatprep.subr.mxu0 0.0
  %2719 = vmatpush2.msra.mxu0 0.0
  %2720 = vmatprep.subr.mxu0 0.0
  %2721 = vmatpush2.msra.mxu0 0.0
  %2722 = vmatprep.subr.mxu0 0.0
  %2723 = vmatpush2.msra.mxu0 0.0
  %2724 = vmatprep.subr.mxu0 0.0
  %2725 = vmatpush2.msra.mxu0 0.0
  %2726 = vmatprep.subr.mxu0 0.0
  %2727 = vmatpush2.msra.mxu0 0.0
  %2728 = vmatprep.subr.mxu0 0.0
  %2729 = vmatpush2.msra.mxu0 0.0
  %2730 = vmatprep.subr.mxu0 0.0
  %2731 = vmatpush2.msra.mxu0 0.0
  %2732 = vmatprep.subr.mxu0 0.0
  %2733 = vmatpush2.msra.mxu0 0.0
  %2734 = vmatprep.subr.mxu0 0.0
  %2735 = vmatpush2.msra.mxu0 0.0
  %2736 = vmatprep.mubr.f32.mxu0 0.0
  %2737 = vmatmul.mubr.f32.gmra.mxu0 %v984
  %v2738 = vpop.f32.mrf.mxu0
  %v2739 = vadd.f32 1e-05, %v2738
  %v2740 = vpop.f32.mrf.mxu0
  %2741 = vmatprep.mubr.f32.mxu0 0.0
  %2742 = vmatmul.mubr.f32.gmra.mxu0 %v987
  %v2743 = vpop.f32.mrf.mxu0
  %v2744 = vadd.f32 1e-05, %v2743
  %v2745 = vpop.f32.mrf.mxu0
  %2746 = vdwg.mxu0
  %v2747 = vrcp.pop %v2739
  %v2748 = vrcp.pop %v2744
  %v2749 = vmul.f32 %v2739, %v2747
  %v2750 = vmul.f32 %v2744, %v2748
  %v2751 = vsub.f32 2.0, %v2749
  %v2752 = vsub.f32 2.0, %v2750
  %v2753 = vmul.f32 %v2747, %v2751
  %v2754 = vmul.f32 %v2748, %v2752
  %2756 = vset.pattern.permute.xlu0 0
  %2757 = vperm.xlu0 %2756, %v2753
  %v2758 = vpop.permute.xlu0 %2757
  %2761 = vset.pattern.permute.xlu0 0
  %2762 = vperm.xlu0 %2761, %v2754
  %v2763 = vpop.permute.xlu0 %2762
  %v2765 = vmul.f32 %v2579, %v2758
  %v2766 = vmul.f32 %v2580, %v2763
  %2768 = vset.pattern.permute.xlu0 0
  %2769 = vperm.xlu0 %2768, %v1944
  %v2770 = vpop.permute.xlu0 %2769
  %2773 = vset.pattern.permute.xlu0 0
  %2774 = vperm.xlu0 %2773, %v1945
  %v2775 = vpop.permute.xlu0 %2774
  %v2777 = vmul.f32 %v2770, %v2765
  %v2778 = vmul.f32 %v2775, %v2766
  %v2779 = vadd.f32 %v2777, %v2571
  %v2780 = vadd.f32 %v2778, %v2576
  %s2781 = scalar_lea.vmem %s9, 24
  %v2782 = vld [vmem:[%s2781] sm:$0xff]
  %s2783 = scalar_lea.vmem %s10, 48
  %v2784 = vld [vmem:[%s2783] sm:$0xff]
  %v2785 = vld [vmem:[%s2783 + $0x8] sm:$0x3]
  %v2787 = vsel %vm82, %v2780, 0
  %2789 = vmatprep.subr.mxu0 0.0
  %2790 = vmatpush1.msra.mxu0 0.0
  %2791 = vmatprep.subr.mxu0 0.0
  %2792 = vmatpush1.msra.mxu0 0.0
  %2793 = vmatprep.subr.mxu0 0.0
  %2794 = vmatpush1.msra.mxu0 0.0
  %2795 = vmatprep.subr.mxu0 0.0
  %2796 = vmatpush1.msra.mxu0 0.0
  %2797 = vmatprep.subr.mxu0 0.0
  %2798 = vmatpush1.msra.mxu0 0.0
  %2799 = vmatprep.subr.mxu0 0.0
  %2800 = vmatpush1.msra.mxu0 0.0
  %2801 = vmatprep.subr.mxu0 0.0
  %2802 = vmatpush1.msra.mxu0 0.0
  %2803 = vmatprep.subr.mxu0 0.0
  %2804 = vmatpush1.msra.mxu0 0.0
  %2805 = vmatprep.subr.mxu0 0.0
  %2806 = vmatpush1.msra.mxu0 0.0
  %2807 = vmatprep.subr.mxu0 0.0
  %2808 = vmatpush1.msra.mxu0 0.0
  %2809 = vmatprep.subr.mxu0 0.0
  %2810 = vmatpush1.msra.mxu0 0.0
  %2811 = vmatprep.subr.mxu0 0.0
  %2812 = vmatpush1.msra.mxu0 0.0
  %2813 = vmatprep.subr.mxu0 0.0
  %2814 = vmatpush1.msra.mxu0 0.0
  %2815 = vmatprep.subr.mxu0 0.0
  %2816 = vmatpush1.msra.mxu0 0.0
  %2817 = vmatprep.subr.mxu0 0.0
  %2818 = vmatpush1.msra.mxu0 %v2787
  %2819 = vmatprep.subr.mxu0 0.0
  %2820 = vmatpush1.msra.mxu0 %v2779
  %2821 = vmatprep.subr.mxu0 0.0
  %2822 = vmatpush2.msra.mxu0 0.0
  %2823 = vmatprep.subr.mxu0 0.0
  %2824 = vmatpush2.msra.mxu0 0.0
  %2825 = vmatprep.subr.mxu0 0.0
  %2826 = vmatpush2.msra.mxu0 0.0
  %2827 = vmatprep.subr.mxu0 0.0
  %2828 = vmatpush2.msra.mxu0 0.0
  %2829 = vmatprep.subr.mxu0 0.0
  %2830 = vmatpush2.msra.mxu0 0.0
  %2831 = vmatprep.subr.mxu0 0.0
  %2832 = vmatpush2.msra.mxu0 0.0
  %2833 = vmatprep.subr.mxu0 0.0
  %2834 = vmatpush2.msra.mxu0 0.0
  %2835 = vmatprep.subr.mxu0 0.0
  %2836 = vmatpush2.msra.mxu0 0.0
  %2837 = vmatprep.subr.mxu0 0.0
  %2838 = vmatpush2.msra.mxu0 0.0
  %2839 = vmatprep.subr.mxu0 0.0
  %2840 = vmatpush2.msra.mxu0 0.0
  %2841 = vmatprep.subr.mxu0 0.0
  %2842 = vmatpush2.msra.mxu0 0.0
  %2843 = vmatprep.subr.mxu0 0.0
  %2844 = vmatpush2.msra.mxu0 0.0
  %2845 = vmatprep.subr.mxu0 0.0
  %2846 = vmatpush2.msra.mxu0 0.0
  %2847 = vmatprep.subr.mxu0 0.0
  %2848 = vmatpush2.msra.mxu0 0.0
  %2849 = vmatprep.subr.mxu0 0.0
  %2850 = vmatpush2.msra.mxu0 0.0
  %2851 = vmatprep.subr.mxu0 0.0
  %2852 = vmatpush2.msra.mxu0 0.0
  %2853 = vmatprep.mubr.f32.mxu0 0.0
  %2854 = vmatmul.mubr.f32.gmra.mxu0 %v68
  %v2855 = vpop.f32.mrf.mxu0
  %v2856 = vadd.f32 0.0, %v2855
  %v2857 = vpop.f32.mrf.mxu0
  %2858 = vmatprep.mubr.f32.mxu0 0.0
  %2859 = vmatmul.mubr.f32.gmra.mxu0 %v71
  %v2860 = vpop.f32.mrf.mxu0
  %v2861 = vadd.f32 0.0, %v2860
  %v2862 = vpop.f32.mrf.mxu0
  %2863 = vmatprep.mubr.f32.mxu0 0.0
  %2864 = vmatmul.mubr.f32.gmra.mxu0 %v74
  %v2865 = vpop.f32.mrf.mxu0
  %v2866 = vadd.f32 0.0, %v2865
  %v2867 = vpop.f32.mrf.mxu0
  %2868 = vmatprep.mubr.f32.mxu0 0.0
  %2869 = vmatmul.mubr.f32.gmra.mxu0 %v77
  %v2870 = vpop.f32.mrf.mxu0
  %v2871 = vadd.f32 0.0, %v2870
  %v2872 = vpop.f32.mrf.mxu0
  %2873 = vmatprep.mubr.f32.mxu0 0.0
  %2874 = vmatmul.mubr.f32.gmra.mxu0 %v80
  %v2875 = vpop.f32.mrf.mxu0
  %v2876 = vadd.f32 0.0, %v2875
  %v2877 = vpop.f32.mrf.mxu0
  %2878 = vdwg.mxu0
  %2879 = vmatprep.subr.mxu0 0.0
  %2880 = vmatpush1.msra.mxu0 0.0
  %2881 = vmatprep.subr.mxu0 0.0
  %2882 = vmatpush1.msra.mxu0 0.0
  %2883 = vmatprep.subr.mxu0 0.0
  %2884 = vmatpush1.msra.mxu0 0.0
  %2885 = vmatprep.subr.mxu0 0.0
  %2886 = vmatpush1.msra.mxu0 0.0
  %2887 = vmatprep.subr.mxu0 0.0
  %2888 = vmatpush1.msra.mxu0 0.0
  %2889 = vmatprep.subr.mxu0 0.0
  %2890 = vmatpush1.msra.mxu0 0.0
  %2891 = vmatprep.subr.mxu0 0.0
  %2892 = vmatpush1.msra.mxu0 0.0
  %2893 = vmatprep.subr.mxu0 0.0
  %2894 = vmatpush1.msra.mxu0 0.0
  %2895 = vmatprep.subr.mxu0 0.0
  %2896 = vmatpush1.msra.mxu0 0.0
  %2897 = vmatprep.subr.mxu0 0.0
  %2898 = vmatpush1.msra.mxu0 0.0
  %2899 = vmatprep.subr.mxu0 0.0
  %2900 = vmatpush1.msra.mxu0 0.0
  %2901 = vmatprep.subr.mxu0 0.0
  %2902 = vmatpush1.msra.mxu0 0.0
  %2903 = vmatprep.subr.mxu0 0.0
  %2904 = vmatpush1.msra.mxu0 0.0
  %2905 = vmatprep.subr.mxu0 0.0
  %2906 = vmatpush1.msra.mxu0 0.0
  %2907 = vmatprep.subr.mxu0 0.0
  %2908 = vmatpush1.msra.mxu0 %v2787
  %2909 = vmatprep.subr.mxu0 0.0
  %2910 = vmatpush1.msra.mxu0 %v2779
  %2911 = vmatprep.subr.mxu0 0.0
  %2912 = vmatpush2.msra.mxu0 0.0
  %2913 = vmatprep.subr.mxu0 0.0
  %2914 = vmatpush2.msra.mxu0 0.0
  %2915 = vmatprep.subr.mxu0 0.0
  %2916 = vmatpush2.msra.mxu0 0.0
  %2917 = vmatprep.subr.mxu0 0.0
  %2918 = vmatpush2.msra.mxu0 0.0
  %2919 = vmatprep.subr.mxu0 0.0
  %2920 = vmatpush2.msra.mxu0 0.0
  %2921 = vmatprep.subr.mxu0 0.0
  %2922 = vmatpush2.msra.mxu0 0.0
  %2923 = vmatprep.subr.mxu0 0.0
  %2924 = vmatpush2.msra.mxu0 0.0
  %2925 = vmatprep.subr.mxu0 0.0
  %2926 = vmatpush2.msra.mxu0 0.0
  %2927 = vmatprep.subr.mxu0 0.0
  %2928 = vmatpush2.msra.mxu0 0.0
  %2929 = vmatprep.subr.mxu0 0.0
  %2930 = vmatpush2.msra.mxu0 0.0
  %2931 = vmatprep.subr.mxu0 0.0
  %2932 = vmatpush2.msra.mxu0 0.0
  %2933 = vmatprep.subr.mxu0 0.0
  %2934 = vmatpush2.msra.mxu0 0.0
  %2935 = vmatprep.subr.mxu0 0.0
  %2936 = vmatpush2.msra.mxu0 0.0
  %2937 = vmatprep.subr.mxu0 0.0
  %2938 = vmatpush2.msra.mxu0 0.0
  %2939 = vmatprep.subr.mxu0 0.0
  %2940 = vmatpush2.msra.mxu0 0.0
  %2941 = vmatprep.subr.mxu0 0.0
  %2942 = vmatpush2.msra.mxu0 0.0
  %2943 = vmatprep.mubr.f32.mxu0 0.0
  %2944 = vmatmul.mubr.f32.gmra.mxu0 %v177
  %v2945 = vpop.f32.mrf.mxu0
  %v2946 = vadd.f32 0.0, %v2945
  %v2947 = vpop.f32.mrf.mxu0
  %2948 = vmatprep.mubr.f32.mxu0 0.0
  %2949 = vmatmul.mubr.f32.gmra.mxu0 %v180
  %v2950 = vpop.f32.mrf.mxu0
  %v2951 = vadd.f32 0.0, %v2950
  %v2952 = vpop.f32.mrf.mxu0
  %2953 = vmatprep.mubr.f32.mxu0 0.0
  %2954 = vmatmul.mubr.f32.gmra.mxu0 %v183
  %v2955 = vpop.f32.mrf.mxu0
  %v2956 = vadd.f32 0.0, %v2955
  %v2957 = vpop.f32.mrf.mxu0
  %2958 = vmatprep.mubr.f32.mxu0 0.0
  %2959 = vmatmul.mubr.f32.gmra.mxu0 %v186
  %v2960 = vpop.f32.mrf.mxu0
  %v2961 = vadd.f32 0.0, %v2960
  %v2962 = vpop.f32.mrf.mxu0
  %2963 = vmatprep.mubr.f32.mxu0 0.0
  %2964 = vmatmul.mubr.f32.gmra.mxu0 %v189
  %v2965 = vpop.f32.mrf.mxu0
  %v2966 = vadd.f32 0.0, %v2965
  %v2967 = vpop.f32.mrf.mxu0
  %2968 = vdwg.mxu0
  %v2969 = vsub.f32 %v2856, %v2946
  %v2970 = vsub.f32 %v2861, %v2951
  %v2971 = vsub.f32 %v2866, %v2956
  %v2972 = vsub.f32 %v2871, %v2961
  %v2973 = vsub.f32 %v2876, %v2966
  %v2974 = vmul.f32 %v2969, %v2969
  %v2975 = vmul.f32 %v2970, %v2970
  %v2976 = vmul.f32 %v2971, %v2971
  %v2977 = vmul.f32 %v2972, %v2972
  %v2978 = vmul.f32 %v2973, %v2973
  %v2979 = vsel %vm291, %v2974, 0.0
  %2980 = vadd.xlane.f32.xlu0 %v2979
  %v2981 = vpop.xlane.xlu0 %2980
  %v2982 = vsel %vm291, %v2975, 0.0
  %2983 = vadd.xlane.f32.xlu0 %v2982
  %v2984 = vpop.xlane.xlu0 %2983
  %v2985 = vsel %vm291, %v2976, 0.0
  %2986 = vadd.xlane.f32.xlu0 %v2985
  %v2987 = vpop.xlane.xlu0 %2986
  %v2988 = vsel %vm291, %v2977, 0.0
  %2989 = vadd.xlane.f32.xlu0 %v2988
  %v2990 = vpop.xlane.xlu0 %2989
  %v2991 = vsel %vm291, %v2978, 0.0
  %2992 = vadd.xlane.f32.xlu0 %v2991
  %v2993 = vpop.xlane.xlu0 %2992
  %v2994 = vrsqrt.pop %v2981
  %v2995 = vmul.f32 %v2981, %v2994
  %vm2996 = vcmp.eq.f32.partialorder %v2981, inf
  %v2997 = vsel %vm2996, %v2981, %v2995
  %vm2998 = vcmp.eq.f32.partialorder %v2981, 0.0
  %v2999 = vand.u32 %v2981, 2147483648
  %v3000 = vsel %vm2998, %v2999, %v2997
  %v3001 = vrsqrt.pop %v2984
  %v3002 = vmul.f32 %v2984, %v3001
  %vm3003 = vcmp.eq.f32.partialorder %v2984, inf
  %v3004 = vsel %vm3003, %v2984, %v3002
  %vm3005 = vcmp.eq.f32.partialorder %v2984, 0.0
  %v3006 = vand.u32 %v2984, 2147483648
  %v3007 = vsel %vm3005, %v3006, %v3004
  %v3008 = vrsqrt.pop %v2987
  %v3009 = vmul.f32 %v2987, %v3008
  %vm3010 = vcmp.eq.f32.partialorder %v2987, inf
  %v3011 = vsel %vm3010, %v2987, %v3009
  %vm3012 = vcmp.eq.f32.partialorder %v2987, 0.0
  %v3013 = vand.u32 %v2987, 2147483648
  %v3014 = vsel %vm3012, %v3013, %v3011
  %v3015 = vrsqrt.pop %v2990
  %v3016 = vmul.f32 %v2990, %v3015
  %vm3017 = vcmp.eq.f32.partialorder %v2990, inf
  %v3018 = vsel %vm3017, %v2990, %v3016
  %vm3019 = vcmp.eq.f32.partialorder %v2990, 0.0
  %v3020 = vand.u32 %v2990, 2147483648
  %v3021 = vsel %vm3019, %v3020, %v3018
  %v3022 = vrsqrt.pop %v2993
  %v3023 = vmul.f32 %v2993, %v3022
  %vm3024 = vcmp.eq.f32.partialorder %v2993, inf
  %v3025 = vsel %vm3024, %v2993, %v3023
  %vm3026 = vcmp.eq.f32.partialorder %v2993, 0.0
  %v3027 = vand.u32 %v2993, 2147483648
  %v3028 = vsel %vm3026, %v3027, %v3025
  %v3029 = vlaneseq
  %v3030 = vshrl.u32 %v3029, 7
  %v3031 = vsub.s32 0, %v3030
  %v3032 = vrot.slane %v2782, %v3031
  %v3033 = vmul.f32 %v3000, %v3032
  %v3034 = vmul.f32 %v3007, %v3032
  %v3035 = vmul.f32 %v3014, %v3032
  %v3036 = vmul.f32 %v3021, %v3032
  %v3037 = vmul.f32 %v3028, %v3032
  %v3038 = vlaneseq
  %v3039 = vshrl.u32 %v3038, 7
  %v3040 = vsub.s32 1, %v3039
  %v3041 = vrot.slane %v2782, %v3040
  %v3042 = vmul.f32 %v354, %v3041
  %v3043 = vmul.f32 %v359, %v3041
  %v3044 = vmul.f32 %v364, %v3041
  %v3045 = vmul.f32 %v369, %v3041
  %v3046 = vmul.f32 %v374, %v3041
  %v3047 = vadd.f32 %v3033, %v3042
  %v3048 = vadd.f32 %v3034, %v3043
  %v3049 = vadd.f32 %v3035, %v3044
  %v3050 = vadd.f32 %v3036, %v3045
  %v3051 = vadd.f32 %v3037, %v3046
  %v3052 = vlaneseq
  %v3053 = vshrl.u32 %v3052, 7
  %v3054 = vsub.s32 2, %v3053
  %v3055 = vrot.slane %v2782, %v3054
  %v3056 = vadd.f32 %v3047, %v3055
  %v3057 = vadd.f32 %v3048, %v3055
  %v3058 = vadd.f32 %v3049, %v3055
  %v3059 = vadd.f32 %v3050, %v3055
  %v3060 = vadd.f32 %v3051, %v3055
  %v3061 = vxor.u32 %v3056, 2147483648
  %v3062 = vxor.u32 %v3057, 2147483648
  %v3063 = vxor.u32 %v3058, 2147483648
  %v3064 = vxor.u32 %v3059, 2147483648
  %v3065 = vxor.u32 %v3060, 2147483648
  %v3066 = vmul.f32 %v3061, 1.442695
  %v3067 = vpow.pop %v3066
  %v3068 = vmul.f32 %v3062, 1.442695
  %v3069 = vpow.pop %v3068
  %v3070 = vmul.f32 %v3063, 1.442695
  %v3071 = vpow.pop %v3070
  %v3072 = vmul.f32 %v3064, 1.442695
  %v3073 = vpow.pop %v3072
  %v3074 = vmul.f32 %v3065, 1.442695
  %v3075 = vpow.pop %v3074
  %v3076 = vadd.f32 %v3067, 1.0
  %v3077 = vadd.f32 %v3069, 1.0
  %v3078 = vadd.f32 %v3071, 1.0
  %v3079 = vadd.f32 %v3073, 1.0
  %v3080 = vadd.f32 %v3075, 1.0
  %v3081 = vrcp.pop %v3076
  %v3082 = vmul.f32 1.0, %v3081
  %v3083 = vrcp.pop %v3077
  %v3084 = vmul.f32 1.0, %v3083
  %v3085 = vrcp.pop %v3078
  %v3086 = vmul.f32 1.0, %v3085
  %v3087 = vrcp.pop %v3079
  %v3088 = vmul.f32 1.0, %v3087
  %v3089 = vrcp.pop %v3080
  %v3090 = vmul.f32 1.0, %v3089
  %v3091 = vmul.f32 %v3056, %v3082
  %v3092 = vmul.f32 %v3057, %v3084
  %v3093 = vmul.f32 %v3058, %v3086
  %v3094 = vmul.f32 %v3059, %v3088
  %v3095 = vmul.f32 %v3060, %v3090
  %v3096 = vlaneseq
  %v3097 = vshrl.u32 %v3096, 7
  %v3098 = vsub.s32 3, %v3097
  %v3099 = vrot.slane %v2782, %v3098
  %v3100 = vmul.f32 %v3091, %v3099
  %v3101 = vmul.f32 %v3092, %v3099
  %v3102 = vmul.f32 %v3093, %v3099
  %v3103 = vmul.f32 %v3094, %v3099
  %v3104 = vmul.f32 %v3095, %v3099
  %v3105 = vsel %vm443, %v3100, 0.0
  %3106 = vadd.xlane.f32.xlu0 %v3105
  %v3107 = vpop.xlane.xlu0 %3106
  %v3108 = vsel %vm443, %v3101, 0.0
  %3109 = vadd.xlane.f32.xlu0 %v3108
  %v3110 = vpop.xlane.xlu0 %3109
  %v3111 = vsel %vm443, %v3102, 0.0
  %3112 = vadd.xlane.f32.xlu0 %v3111
  %v3113 = vpop.xlane.xlu0 %3112
  %v3114 = vsel %vm443, %v3103, 0.0
  %3115 = vadd.xlane.f32.xlu0 %v3114
  %v3116 = vpop.xlane.xlu0 %3115
  %v3117 = vsel %vm443, %v3104, 0.0
  %3118 = vadd.xlane.f32.xlu0 %v3117
  %v3119 = vpop.xlane.xlu0 %3118
  %v3120 = vtanh.pop %v3107
  %v3121 = vtanh.pop %v3110
  %v3122 = vtanh.pop %v3113
  %v3123 = vtanh.pop %v3116
  %v3124 = vtanh.pop %v3119
  %v3125 = vmul.f32 %v2969, %v3120
  %v3126 = vmul.f32 %v2970, %v3121
  %v3127 = vmul.f32 %v2971, %v3122
  %v3128 = vmul.f32 %v2972, %v3123
  %v3129 = vmul.f32 %v2973, %v3124
  %3130 = vmatprep.subr.mxu0 0.0
  %3131 = vmatpush1.msra.mxu0 0.0
  %3132 = vmatprep.subr.mxu0 0.0
  %3133 = vmatpush1.msra.mxu0 0.0
  %3134 = vmatprep.subr.mxu0 0.0
  %3135 = vmatpush1.msra.mxu0 0.0
  %3136 = vmatprep.subr.mxu0 0.0
  %3137 = vmatpush1.msra.mxu0 0.0
  %3138 = vmatprep.subr.mxu0 0.0
  %3139 = vmatpush1.msra.mxu0 0.0
  %3140 = vmatprep.subr.mxu0 0.0
  %3141 = vmatpush1.msra.mxu0 0.0
  %3142 = vmatprep.subr.mxu0 0.0
  %3143 = vmatpush1.msra.mxu0 0.0
  %3144 = vmatprep.subr.mxu0 0.0
  %3145 = vmatpush1.msra.mxu0 0.0
  %3146 = vmatprep.subr.mxu0 0.0
  %3147 = vmatpush1.msra.mxu0 0.0
  %3148 = vmatprep.subr.mxu0 0.0
  %3149 = vmatpush1.msra.mxu0 0.0
  %3150 = vmatprep.subr.mxu0 0.0
  %3151 = vmatpush1.msra.mxu0 0.0
  %3152 = vmatprep.subr.mxu0 0.0
  %3153 = vmatpush1.msra.mxu0 %v3129
  %3154 = vmatprep.subr.mxu0 0.0
  %3155 = vmatpush1.msra.mxu0 %v3128
  %3156 = vmatprep.subr.mxu0 0.0
  %3157 = vmatpush1.msra.mxu0 %v3127
  %3158 = vmatprep.subr.mxu0 0.0
  %3159 = vmatpush1.msra.mxu0 %v3126
  %3160 = vmatprep.subr.mxu0 0.0
  %3161 = vmatpush1.msra.mxu0 %v3125
  %3162 = vmatprep.subr.mxu0 0.0
  %3163 = vmatpush2.msra.mxu0 0.0
  %3164 = vmatprep.subr.mxu0 0.0
  %3165 = vmatpush2.msra.mxu0 0.0
  %3166 = vmatprep.subr.mxu0 0.0
  %3167 = vmatpush2.msra.mxu0 0.0
  %3168 = vmatprep.subr.mxu0 0.0
  %3169 = vmatpush2.msra.mxu0 0.0
  %3170 = vmatprep.subr.mxu0 0.0
  %3171 = vmatpush2.msra.mxu0 0.0
  %3172 = vmatprep.subr.mxu0 0.0
  %3173 = vmatpush2.msra.mxu0 0.0
  %3174 = vmatprep.subr.mxu0 0.0
  %3175 = vmatpush2.msra.mxu0 0.0
  %3176 = vmatprep.subr.mxu0 0.0
  %3177 = vmatpush2.msra.mxu0 0.0
  %3178 = vmatprep.subr.mxu0 0.0
  %3179 = vmatpush2.msra.mxu0 0.0
  %3180 = vmatprep.subr.mxu0 0.0
  %3181 = vmatpush2.msra.mxu0 0.0
  %3182 = vmatprep.subr.mxu0 0.0
  %3183 = vmatpush2.msra.mxu0 0.0
  %3184 = vmatprep.subr.mxu0 0.0
  %3185 = vmatpush2.msra.mxu0 0.0
  %3186 = vmatprep.subr.mxu0 0.0
  %3187 = vmatpush2.msra.mxu0 0.0
  %3188 = vmatprep.subr.mxu0 0.0
  %3189 = vmatpush2.msra.mxu0 0.0
  %3190 = vmatprep.subr.mxu0 0.0
  %3191 = vmatpush2.msra.mxu0 0.0
  %3192 = vmatprep.subr.mxu0 0.0
  %3193 = vmatpush2.msra.mxu0 0.0
  %3194 = vmatprep.mubr.f32.mxu0 0.0
  %3195 = vmatmul.mubr.f32.gmra.mxu0 %v503
  %v3196 = vpop.f32.mrf.mxu0
  %v3197 = vadd.f32 0.0, %v3196
  %v3198 = vpop.f32.mrf.mxu0
  %3199 = vmatprep.mubr.f32.mxu0 0.0
  %3200 = vmatmul.mubr.f32.gmra.mxu0 %v506
  %v3201 = vpop.f32.mrf.mxu0
  %v3202 = vadd.f32 0.0, %v3201
  %v3203 = vpop.f32.mrf.mxu0
  %3204 = vdwg.mxu0
  %v3205 = vmul.f32 %v3197, %v586
  %v3206 = vmul.f32 %v3202, %v591
  %v3207 = vadd.f32 %v2779, %v3205
  %v3208 = vadd.f32 %v2780, %v3206
  %v3209 = vlaneseq
  %v3210 = vshrl.u32 %v3209, 7
  %v3211 = vsub.s32 4, %v3210
  %v3212 = vrot.slane %v2782, %v3211
  %v3213 = vmul.f32 %v600, %v3212
  %v3214 = vmul.f32 %v605, %v3212
  %v3215 = vlaneseq
  %v3216 = vshrl.u32 %v3215, 7
  %v3217 = vsub.s32 5, %v3216
  %v3218 = vrot.slane %v2782, %v3217
  %v3219 = vadd.f32 %v3213, %v3218
  %v3220 = vadd.f32 %v3214, %v3218
  %v3221 = vxor.u32 %v3219, 2147483648
  %v3222 = vxor.u32 %v3220, 2147483648
  %v3223 = vmul.f32 %v3221, 1.442695
  %v3224 = vpow.pop %v3223
  %v3225 = vmul.f32 %v3222, 1.442695
  %v3226 = vpow.pop %v3225
  %v3227 = vadd.f32 %v3224, 1.0
  %v3228 = vadd.f32 %v3226, 1.0
  %v3229 = vrcp.pop %v3227
  %v3230 = vmul.f32 1.0, %v3229
  %v3231 = vrcp.pop %v3228
  %v3232 = vmul.f32 1.0, %v3231
  %v3233 = vmul.f32 %v3219, %v3230
  %v3234 = vmul.f32 %v3220, %v3232
  %v3235 = vlaneseq
  %v3236 = vshrl.u32 %v3235, 7
  %v3237 = vsub.s32 6, %v3236
  %v3238 = vrot.slane %v2782, %v3237
  %v3239 = vmul.f32 %v3233, %v3238
  %v3240 = vmul.f32 %v3234, %v3238
  %v3241 = vsel %vm443, %v3239, 0.0
  %3242 = vadd.xlane.f32.xlu0 %v3241
  %v3243 = vpop.xlane.xlu0 %3242
  %v3244 = vsel %vm642, %v3240, 0.0
  %3245 = vadd.xlane.f32.xlu0 %v3244
  %v3246 = vpop.xlane.xlu0 %3245
  %v3247 = vlaneseq
  %v3248 = vshrl.u32 %v3247, 7
  %v3249 = vsub.s32 7, %v3248
  %v3250 = vrot.slane %v2782, %v3249
  %v3251 = vadd.f32 %v3243, %v3250
  %v3252 = vadd.f32 %v3246, %v3250
  %3254 = vset.pattern.permute.xlu0 0
  %3255 = vperm.xlu0 %3254, %v3251
  %v3256 = vpop.permute.xlu0 %3255
  %3259 = vset.pattern.permute.xlu0 0
  %3260 = vperm.xlu0 %3259, %v3252
  %v3261 = vpop.permute.xlu0 %3260
  %v3263 = vmul.f32 %v40, %v3256
  %v3264 = vmul.f32 %v41, %v3261
  %v3265 = vadd.f32 %v3207, %v3263
  %v3266 = vadd.f32 %v3208, %v3264
  %v3268 = vsel %vm82, %v3266, 0
  %3270 = vmatprep.subr.mxu0 0.0
  %3271 = vmatpush1.msra.mxu0 0.0
  %3272 = vmatprep.subr.mxu0 0.0
  %3273 = vmatpush1.msra.mxu0 0.0
  %3274 = vmatprep.subr.mxu0 0.0
  %3275 = vmatpush1.msra.mxu0 0.0
  %3276 = vmatprep.subr.mxu0 0.0
  %3277 = vmatpush1.msra.mxu0 0.0
  %3278 = vmatprep.subr.mxu0 0.0
  %3279 = vmatpush1.msra.mxu0 0.0
  %3280 = vmatprep.subr.mxu0 0.0
  %3281 = vmatpush1.msra.mxu0 0.0
  %3282 = vmatprep.subr.mxu0 0.0
  %3283 = vmatpush1.msra.mxu0 0.0
  %3284 = vmatprep.subr.mxu0 0.0
  %3285 = vmatpush1.msra.mxu0 0.0
  %3286 = vmatprep.subr.mxu0 0.0
  %3287 = vmatpush1.msra.mxu0 0.0
  %3288 = vmatprep.subr.mxu0 0.0
  %3289 = vmatpush1.msra.mxu0 0.0
  %3290 = vmatprep.subr.mxu0 0.0
  %3291 = vmatpush1.msra.mxu0 0.0
  %3292 = vmatprep.subr.mxu0 0.0
  %3293 = vmatpush1.msra.mxu0 0.0
  %3294 = vmatprep.subr.mxu0 0.0
  %3295 = vmatpush1.msra.mxu0 0.0
  %3296 = vmatprep.subr.mxu0 0.0
  %3297 = vmatpush1.msra.mxu0 0.0
  %3298 = vmatprep.subr.mxu0 0.0
  %3299 = vmatpush1.msra.mxu0 %v3268
  %3300 = vmatprep.subr.mxu0 0.0
  %3301 = vmatpush1.msra.mxu0 %v3265
  %3302 = vmatprep.subr.mxu0 0.0
  %3303 = vmatpush2.msra.mxu0 0.0
  %3304 = vmatprep.subr.mxu0 0.0
  %3305 = vmatpush2.msra.mxu0 0.0
  %3306 = vmatprep.subr.mxu0 0.0
  %3307 = vmatpush2.msra.mxu0 0.0
  %3308 = vmatprep.subr.mxu0 0.0
  %3309 = vmatpush2.msra.mxu0 0.0
  %3310 = vmatprep.subr.mxu0 0.0
  %3311 = vmatpush2.msra.mxu0 0.0
  %3312 = vmatprep.subr.mxu0 0.0
  %3313 = vmatpush2.msra.mxu0 0.0
  %3314 = vmatprep.subr.mxu0 0.0
  %3315 = vmatpush2.msra.mxu0 0.0
  %3316 = vmatprep.subr.mxu0 0.0
  %3317 = vmatpush2.msra.mxu0 0.0
  %3318 = vmatprep.subr.mxu0 0.0
  %3319 = vmatpush2.msra.mxu0 0.0
  %3320 = vmatprep.subr.mxu0 0.0
  %3321 = vmatpush2.msra.mxu0 0.0
  %3322 = vmatprep.subr.mxu0 0.0
  %3323 = vmatpush2.msra.mxu0 0.0
  %3324 = vmatprep.subr.mxu0 0.0
  %3325 = vmatpush2.msra.mxu0 0.0
  %3326 = vmatprep.subr.mxu0 0.0
  %3327 = vmatpush2.msra.mxu0 0.0
  %3328 = vmatprep.subr.mxu0 0.0
  %3329 = vmatpush2.msra.mxu0 0.0
  %3330 = vmatprep.subr.mxu0 0.0
  %3331 = vmatpush2.msra.mxu0 0.0
  %3332 = vmatprep.subr.mxu0 0.0
  %3333 = vmatpush2.msra.mxu0 0.0
  %3334 = vmatprep.mubr.f32.mxu0 0.0
  %3335 = vmatmul.mubr.f32.gmra.mxu0 %v667
  %v3336 = vpop.f32.mrf.mxu0
  %v3337 = vadd.f32 0.0, %v3336
  %v3338 = vpop.f32.mrf.mxu0
  %3339 = vdwg.mxu0
  %v3340 = vmul.f32 %v3337, 0.2
  %v3342 = vsel %vm82, %v3340, 0
  %3344 = vmatprep.subr.mxu0 0.0
  %3345 = vmatpush1.msra.mxu0 0.0
  %3346 = vmatprep.subr.mxu0 0.0
  %3347 = vmatpush1.msra.mxu0 0.0
  %3348 = vmatprep.subr.mxu0 0.0
  %3349 = vmatpush1.msra.mxu0 0.0
  %3350 = vmatprep.subr.mxu0 0.0
  %3351 = vmatpush1.msra.mxu0 0.0
  %3352 = vmatprep.subr.mxu0 0.0
  %3353 = vmatpush1.msra.mxu0 0.0
  %3354 = vmatprep.subr.mxu0 0.0
  %3355 = vmatpush1.msra.mxu0 0.0
  %3356 = vmatprep.subr.mxu0 0.0
  %3357 = vmatpush1.msra.mxu0 0.0
  %3358 = vmatprep.subr.mxu0 0.0
  %3359 = vmatpush1.msra.mxu0 0.0
  %3360 = vmatprep.subr.mxu0 0.0
  %3361 = vmatpush1.msra.mxu0 0.0
  %3362 = vmatprep.subr.mxu0 0.0
  %3363 = vmatpush1.msra.mxu0 0.0
  %3364 = vmatprep.subr.mxu0 0.0
  %3365 = vmatpush1.msra.mxu0 0.0
  %3366 = vmatprep.subr.mxu0 0.0
  %3367 = vmatpush1.msra.mxu0 0.0
  %3368 = vmatprep.subr.mxu0 0.0
  %3369 = vmatpush1.msra.mxu0 0.0
  %3370 = vmatprep.subr.mxu0 0.0
  %3371 = vmatpush1.msra.mxu0 0.0
  %3372 = vmatprep.subr.mxu0 0.0
  %3373 = vmatpush1.msra.mxu0 0.0
  %3374 = vmatprep.subr.mxu0 0.0
  %3375 = vmatpush1.msra.mxu0 %v3342
  %3376 = vmatprep.subr.mxu0 0.0
  %3377 = vmatpush2.msra.mxu0 0.0
  %3378 = vmatprep.subr.mxu0 0.0
  %3379 = vmatpush2.msra.mxu0 0.0
  %3380 = vmatprep.subr.mxu0 0.0
  %3381 = vmatpush2.msra.mxu0 0.0
  %3382 = vmatprep.subr.mxu0 0.0
  %3383 = vmatpush2.msra.mxu0 0.0
  %3384 = vmatprep.subr.mxu0 0.0
  %3385 = vmatpush2.msra.mxu0 0.0
  %3386 = vmatprep.subr.mxu0 0.0
  %3387 = vmatpush2.msra.mxu0 0.0
  %3388 = vmatprep.subr.mxu0 0.0
  %3389 = vmatpush2.msra.mxu0 0.0
  %3390 = vmatprep.subr.mxu0 0.0
  %3391 = vmatpush2.msra.mxu0 0.0
  %3392 = vmatprep.subr.mxu0 0.0
  %3393 = vmatpush2.msra.mxu0 0.0
  %3394 = vmatprep.subr.mxu0 0.0
  %3395 = vmatpush2.msra.mxu0 0.0
  %3396 = vmatprep.subr.mxu0 0.0
  %3397 = vmatpush2.msra.mxu0 0.0
  %3398 = vmatprep.subr.mxu0 0.0
  %3399 = vmatpush2.msra.mxu0 0.0
  %3400 = vmatprep.subr.mxu0 0.0
  %3401 = vmatpush2.msra.mxu0 0.0
  %3402 = vmatprep.subr.mxu0 0.0
  %3403 = vmatpush2.msra.mxu0 0.0
  %3404 = vmatprep.subr.mxu0 0.0
  %3405 = vmatpush2.msra.mxu0 0.0
  %3406 = vmatprep.subr.mxu0 0.0
  %3407 = vmatpush2.msra.mxu0 0.0
  %3408 = vmatprep.mubr.f32.mxu0 0.0
  %3409 = vmatmul.mubr.f32.gmra.mxu0 %v777
  %v3410 = vpop.f32.mrf.mxu0
  %v3411 = vadd.f32 0.0, %v3410
  %v3412 = vpop.f32.mrf.mxu0
  %3413 = vmatprep.mubr.f32.mxu0 0.0
  %3414 = vmatmul.mubr.f32.gmra.mxu0 %v780
  %v3415 = vpop.f32.mrf.mxu0
  %v3416 = vadd.f32 0.0, %v3415
  %v3417 = vpop.f32.mrf.mxu0
  %3418 = vdwg.mxu0
  %v3419 = vsub.f32 %v3265, %v3411
  %v3420 = vsub.f32 %v3266, %v3416
  %v3421 = vmul.f32 %v3419, %v3419
  %v3422 = vmul.f32 %v3420, %v3420
  %v3423 = vsel %vm291, %v3421, 0.0
  %3424 = vadd.xlane.f32.xlu0 %v3423
  %v3425 = vpop.xlane.xlu0 %3424
  %v3426 = vsel %vm867, %v3422, 0.0
  %3427 = vadd.xlane.f32.xlu0 %v3426
  %v3428 = vpop.xlane.xlu0 %3427
  %v3430 = vsel %vm82, %v3428, 0
  %3432 = vmatprep.subr.mxu0 0.0
  %3433 = vmatpush1.msra.mxu0 0.0
  %3434 = vmatprep.subr.mxu0 0.0
  %3435 = vmatpush1.msra.mxu0 0.0
  %3436 = vmatprep.subr.mxu0 0.0
  %3437 = vmatpush1.msra.mxu0 0.0
  %3438 = vmatprep.subr.mxu0 0.0
  %3439 = vmatpush1.msra.mxu0 0.0
  %3440 = vmatprep.subr.mxu0 0.0
  %3441 = vmatpush1.msra.mxu0 0.0
  %3442 = vmatprep.subr.mxu0 0.0
  %3443 = vmatpush1.msra.mxu0 0.0
  %3444 = vmatprep.subr.mxu0 0.0
  %3445 = vmatpush1.msra.mxu0 0.0
  %3446 = vmatprep.subr.mxu0 0.0
  %3447 = vmatpush1.msra.mxu0 0.0
  %3448 = vmatprep.subr.mxu0 0.0
  %3449 = vmatpush1.msra.mxu0 0.0
  %3450 = vmatprep.subr.mxu0 0.0
  %3451 = vmatpush1.msra.mxu0 0.0
  %3452 = vmatprep.subr.mxu0 0.0
  %3453 = vmatpush1.msra.mxu0 0.0
  %3454 = vmatprep.subr.mxu0 0.0
  %3455 = vmatpush1.msra.mxu0 0.0
  %3456 = vmatprep.subr.mxu0 0.0
  %3457 = vmatpush1.msra.mxu0 0.0
  %3458 = vmatprep.subr.mxu0 0.0
  %3459 = vmatpush1.msra.mxu0 0.0
  %3460 = vmatprep.subr.mxu0 0.0
  %3461 = vmatpush1.msra.mxu0 %v3430
  %3462 = vmatprep.subr.mxu0 0.0
  %3463 = vmatpush1.msra.mxu0 %v3425
  %3464 = vmatprep.subr.mxu0 0.0
  %3465 = vmatpush2.msra.mxu0 0.0
  %3466 = vmatprep.subr.mxu0 0.0
  %3467 = vmatpush2.msra.mxu0 0.0
  %3468 = vmatprep.subr.mxu0 0.0
  %3469 = vmatpush2.msra.mxu0 0.0
  %3470 = vmatprep.subr.mxu0 0.0
  %3471 = vmatpush2.msra.mxu0 0.0
  %3472 = vmatprep.subr.mxu0 0.0
  %3473 = vmatpush2.msra.mxu0 0.0
  %3474 = vmatprep.subr.mxu0 0.0
  %3475 = vmatpush2.msra.mxu0 0.0
  %3476 = vmatprep.subr.mxu0 0.0
  %3477 = vmatpush2.msra.mxu0 0.0
  %3478 = vmatprep.subr.mxu0 0.0
  %3479 = vmatpush2.msra.mxu0 0.0
  %3480 = vmatprep.subr.mxu0 0.0
  %3481 = vmatpush2.msra.mxu0 0.0
  %3482 = vmatprep.subr.mxu0 0.0
  %3483 = vmatpush2.msra.mxu0 0.0
  %3484 = vmatprep.subr.mxu0 0.0
  %3485 = vmatpush2.msra.mxu0 0.0
  %3486 = vmatprep.subr.mxu0 0.0
  %3487 = vmatpush2.msra.mxu0 0.0
  %3488 = vmatprep.subr.mxu0 0.0
  %3489 = vmatpush2.msra.mxu0 0.0
  %3490 = vmatprep.subr.mxu0 0.0
  %3491 = vmatpush2.msra.mxu0 0.0
  %3492 = vmatprep.subr.mxu0 0.0
  %3493 = vmatpush2.msra.mxu0 0.0
  %3494 = vmatprep.subr.mxu0 0.0
  %3495 = vmatpush2.msra.mxu0 0.0
  %3496 = vmatprep.mubr.f32.mxu0 0.0
  %3497 = vmatmul.mubr.f32.gmra.mxu0 %v667
  %v3498 = vpop.f32.mrf.mxu0
  %v3499 = vadd.f32 0.0, %v3498
  %v3500 = vpop.f32.mrf.mxu0
  %3501 = vdwg.mxu0
  %v3502 = vrsqrt.pop %v3499
  %v3503 = vmul.f32 %v3499, %v3502
  %vm3504 = vcmp.eq.f32.partialorder %v3499, inf
  %v3505 = vsel %vm3504, %v3499, %v3503
  %vm3506 = vcmp.eq.f32.partialorder %v3499, 0.0
  %v3507 = vand.u32 %v3499, 2147483648
  %v3508 = vsel %vm3506, %v3507, %v3505
  %v3510 = vsel %vm82, %v3508, 0
  %3512 = vmatprep.subr.mxu0 0.0
  %3513 = vmatpush1.msra.mxu0 0.0
  %3514 = vmatprep.subr.mxu0 0.0
  %3515 = vmatpush1.msra.mxu0 0.0
  %3516 = vmatprep.subr.mxu0 0.0
  %3517 = vmatpush1.msra.mxu0 0.0
  %3518 = vmatprep.subr.mxu0 0.0
  %3519 = vmatpush1.msra.mxu0 0.0
  %3520 = vmatprep.subr.mxu0 0.0
  %3521 = vmatpush1.msra.mxu0 0.0
  %3522 = vmatprep.subr.mxu0 0.0
  %3523 = vmatpush1.msra.mxu0 0.0
  %3524 = vmatprep.subr.mxu0 0.0
  %3525 = vmatpush1.msra.mxu0 0.0
  %3526 = vmatprep.subr.mxu0 0.0
  %3527 = vmatpush1.msra.mxu0 0.0
  %3528 = vmatprep.subr.mxu0 0.0
  %3529 = vmatpush1.msra.mxu0 0.0
  %3530 = vmatprep.subr.mxu0 0.0
  %3531 = vmatpush1.msra.mxu0 0.0
  %3532 = vmatprep.subr.mxu0 0.0
  %3533 = vmatpush1.msra.mxu0 0.0
  %3534 = vmatprep.subr.mxu0 0.0
  %3535 = vmatpush1.msra.mxu0 0.0
  %3536 = vmatprep.subr.mxu0 0.0
  %3537 = vmatpush1.msra.mxu0 0.0
  %3538 = vmatprep.subr.mxu0 0.0
  %3539 = vmatpush1.msra.mxu0 0.0
  %3540 = vmatprep.subr.mxu0 0.0
  %3541 = vmatpush1.msra.mxu0 0.0
  %3542 = vmatprep.subr.mxu0 0.0
  %3543 = vmatpush1.msra.mxu0 %v3510
  %3544 = vmatprep.subr.mxu0 0.0
  %3545 = vmatpush2.msra.mxu0 0.0
  %3546 = vmatprep.subr.mxu0 0.0
  %3547 = vmatpush2.msra.mxu0 0.0
  %3548 = vmatprep.subr.mxu0 0.0
  %3549 = vmatpush2.msra.mxu0 0.0
  %3550 = vmatprep.subr.mxu0 0.0
  %3551 = vmatpush2.msra.mxu0 0.0
  %3552 = vmatprep.subr.mxu0 0.0
  %3553 = vmatpush2.msra.mxu0 0.0
  %3554 = vmatprep.subr.mxu0 0.0
  %3555 = vmatpush2.msra.mxu0 0.0
  %3556 = vmatprep.subr.mxu0 0.0
  %3557 = vmatpush2.msra.mxu0 0.0
  %3558 = vmatprep.subr.mxu0 0.0
  %3559 = vmatpush2.msra.mxu0 0.0
  %3560 = vmatprep.subr.mxu0 0.0
  %3561 = vmatpush2.msra.mxu0 0.0
  %3562 = vmatprep.subr.mxu0 0.0
  %3563 = vmatpush2.msra.mxu0 0.0
  %3564 = vmatprep.subr.mxu0 0.0
  %3565 = vmatpush2.msra.mxu0 0.0
  %3566 = vmatprep.subr.mxu0 0.0
  %3567 = vmatpush2.msra.mxu0 0.0
  %3568 = vmatprep.subr.mxu0 0.0
  %3569 = vmatpush2.msra.mxu0 0.0
  %3570 = vmatprep.subr.mxu0 0.0
  %3571 = vmatpush2.msra.mxu0 0.0
  %3572 = vmatprep.subr.mxu0 0.0
  %3573 = vmatpush2.msra.mxu0 0.0
  %3574 = vmatprep.subr.mxu0 0.0
  %3575 = vmatpush2.msra.mxu0 0.0
  %3576 = vmatprep.mubr.f32.mxu0 0.0
  %3577 = vmatmul.mubr.f32.gmra.mxu0 %v984
  %v3578 = vpop.f32.mrf.mxu0
  %v3579 = vadd.f32 1e-05, %v3578
  %v3580 = vpop.f32.mrf.mxu0
  %3581 = vmatprep.mubr.f32.mxu0 0.0
  %3582 = vmatmul.mubr.f32.gmra.mxu0 %v987
  %v3583 = vpop.f32.mrf.mxu0
  %v3584 = vadd.f32 1e-05, %v3583
  %v3585 = vpop.f32.mrf.mxu0
  %3586 = vdwg.mxu0
  %v3587 = vrcp.pop %v3579
  %v3588 = vrcp.pop %v3584
  %v3589 = vmul.f32 %v3579, %v3587
  %v3590 = vmul.f32 %v3584, %v3588
  %v3591 = vsub.f32 2.0, %v3589
  %v3592 = vsub.f32 2.0, %v3590
  %v3593 = vmul.f32 %v3587, %v3591
  %v3594 = vmul.f32 %v3588, %v3592
  %3596 = vset.pattern.permute.xlu0 0
  %3597 = vperm.xlu0 %3596, %v3593
  %v3598 = vpop.permute.xlu0 %3597
  %3601 = vset.pattern.permute.xlu0 0
  %3602 = vperm.xlu0 %3601, %v3594
  %v3603 = vpop.permute.xlu0 %3602
  %v3605 = vmul.f32 %v3419, %v3598
  %v3606 = vmul.f32 %v3420, %v3603
  %3608 = vset.pattern.permute.xlu0 0
  %3609 = vperm.xlu0 %3608, %v2784
  %v3610 = vpop.permute.xlu0 %3609
  %3613 = vset.pattern.permute.xlu0 0
  %3614 = vperm.xlu0 %3613, %v2785
  %v3615 = vpop.permute.xlu0 %3614
  %v3617 = vmul.f32 %v3610, %v3605
  %v3618 = vmul.f32 %v3615, %v3606
  %v3619 = vadd.f32 %v3617, %v3411
  %v3620 = vadd.f32 %v3618, %v3416
  %3621 = vst.msk [vmem:[%s11] sm:$0xff] %vm291, %v3619
  %3622 = vst.msk [vmem:[%s11 + $0x8] sm:$0x3] %vm867, %v3620
  // Predicated region
  $region46: #{tpu_custom_call.1} parent=0 // pred_check
    _
  $region47: #{tpu_custom_call.1} parent=0 // pred_check_branch
    %3624 = sbr.rel (0) target = $region49
  $region48: #{tpu_custom_call.1} parent=0 // pred_region
    _
  $region49: #{tpu_custom_call.1} parent=0 // pred_fallthru
    _
  // Predicated region
  $region50: #{tpu_custom_call.1} parent=0 // pred_check
    _
  $region51: #{tpu_custom_call.1} parent=0 // pred_check_branch
    %3626 = sbr.rel (0) target = $region53
  $region52: #{tpu_custom_call.1} parent=0 // pred_region
    _
  $region53: #{tpu_custom_call.1} parent=0 // pred_fallthru
    _

</llo_original>
